<compile_context>
chip_gen: v6e
topology: v6e:2x2x1
jax: 0.10.0
libtpu: 0.0.40
codegen_flags: <defaults>
</compile_context>

<pallas_src>
import functools

import jax
import jax.numpy as jnp
from jax.experimental import pallas as pl
from jax.experimental.pallas import tpu as pltpu


def _round_up(x, m):
    return (x + m - 1) // m * m


def _vmem_limit_bytes():
    """Generation-aware VMEM budget (~70% of physical, capped), safe fallback if query fails."""
    try:
        cap = int(pltpu.get_tpu_info().vmem_capacity_bytes)
        if cap > 0:
            return min(int(cap * 0.7), 100 * 1024 * 1024)
    except Exception:
        pass
    return 44 * 1024 * 1024  # fits v7x's 64 MiB physical VMEM


def _conv_accumulate(x, w_ref, *, H, W, Cin, K):
    """Conv as K*K accumulated shifted matmuls (no materialized im2col).

    x:     (Hp, Wp, Cin) padded input image (operand dtype).
    w_ref: (K*K, Cin, Cout_pad) tap-major weights (operand dtype).
    returns f32 (H*W, Cout_pad) conv output held in VMEM/vregs only.
    """
    acc = None
    for kh in range(K):                      # static python loops; K is small
        for kw in range(K):
            xs = x[kh:kh + H, kw:kw + W, :].reshape(H * W, Cin)
            w_tap = w_ref[kh * K + kw]       # (Cin, Cout_pad)
            p = jnp.dot(xs, w_tap, preferred_element_type=jnp.float32)
            acc = p if acc is None else acc + p
    return acc                               # (H*W, Cout_pad) f32


def _stats_kernel(x_ref, w_ref, mean_ref, m2_ref, *, H, W, Cin, K):
    """One image per grid step: conv (VMEM only) -> per-image BN partials. No y writeback.

    mean_ref: (1, 1, Cout_pad) per-image channel mean (f32)
    m2_ref:   (1, 1, Cout_pad) per-image sum of squared deviations from that mean (f32)
    """
    acc = _conv_accumulate(x_ref[0], w_ref, H=H, W=W, Cin=Cin, K=K)
    mean = jnp.sum(acc, axis=0, keepdims=True) * (1.0 / float(H * W))   # (1, Cout_pad)
    d = acc - mean
    mean_ref[0] = mean
    m2_ref[0] = jnp.sum(d * d, axis=0, keepdims=True)


def _conv_bn_relu_kernel(x_ref, w_ref, scale_ref, shift_ref, o_ref, *, H, W, Cin, K, Cout):
    """Recompute conv fused with folded BN scale/shift + ReLU; lane-dense NCHW store.

    o_ref: (1, Cout, H*W) — H*W on the lane axis, no channel padding written to HBM.
    """
    acc = _conv_accumulate(x_ref[0], w_ref, H=H, W=W, Cin=Cin, K=K)      # (H*W, Cout_pad) f32
    y = jnp.maximum(acc * scale_ref[...] + shift_ref[...], 0.0)          # f32 math (v5e-safe)
    # (H*W, Cout_pad) -> (Cout_pad, H*W) on the XLU, drop padded channels, store lane-dense.
    o_ref[0] = jnp.transpose(y)[:Cout, :].astype(o_ref.dtype)


def conv_bn_relu(x_nchw, w_oikk, gamma, beta, *, stride=1, padding=1, eps=1e-5):
    """x_nchw: (N, Cin, H, W); w_oikk: (Cout, Cin, K, K); gamma/beta: (Cout,)."""
    assert stride == 1, "kernel implements stride=1"
    N, Cin, H, W = x_nchw.shape
    Cout, Cin_w, K, _ = w_oikk.shape
    assert Cin_w == Cin

    LANES = 128
    Cout_pad = _round_up(Cout, LANES)

    # NCHW -> NHWC + zero spatial padding (XLA pre-pass; see TODO at top).
    x_nhwc = jnp.transpose(x_nchw, (0, 2, 3, 1))
    x_pad = jnp.pad(x_nhwc, ((0, 0), (padding, padding), (padding, padding), (0, 0)))
    Hp, Wp = H + 2 * padding, W + 2 * padding
    Hout, Wout = Hp - K + 1, Wp - K + 1
    HWo = Hout * Wout

    # Weights: (Cout, Cin, K, K) -> (K*K, Cin, Cout_pad), tap-major so every tap is a clean
    # (Cin, Cout_pad) page for the accumulated shifted-matmul conv.
    w_taps = jnp.transpose(w_oikk, (2, 3, 1, 0)).reshape(K * K, Cin, Cout)
    w_taps = jnp.pad(w_taps, ((0, 0), (0, 0), (0, Cout_pad - Cout))).astype(x_nchw.dtype)

    cparams = pltpu.CompilerParams(
        dimension_semantics=("parallel",),       # megacore sharding on v7x; no-op on v5e/v6e
        vmem_limit_bytes=_vmem_limit_bytes(),    # generation-aware budget
    )

    itemsize = jnp.dtype(x_nchw.dtype).itemsize
    conv_flops = 2 * N * HWo * K * K * Cin * Cout_pad

    # ---- Pass 1: per-image BN partial statistics (conv output stays in VMEM) ----
    stats_cost = pl.CostEstimate(
        flops=conv_flops + 4 * N * HWo * Cout_pad,
        transcendentals=0,
        bytes_accessed=(N * Hp * Wp * Cin + K * K * Cin * Cout_pad) * itemsize
        + 2 * N * Cout_pad * 4,
    )
    kern1 = functools.partial(_stats_kernel, H=Hout, W=Wout, Cin=Cin, K=K)
    mean_p, m2_p = pl.pallas_call(
        kern1,
        grid=(N,),
        in_specs=[
            pl.BlockSpec((1, Hp, Wp, Cin), lambda n: (n, 0, 0, 0)),
            pl.BlockSpec((K * K, Cin, Cout_pad), lambda n: (0, 0, 0)),
        ],
        out_specs=[
            pl.BlockSpec((1, 1, Cout_pad), lambda n: (n, 0, 0)),
            pl.BlockSpec((1, 1, Cout_pad), lambda n: (n, 0, 0)),
        ],
        out_shape=[
            jax.ShapeDtypeStruct((N, 1, Cout_pad), jnp.float32),
            jax.ShapeDtypeStruct((N, 1, Cout_pad), jnp.float32),
        ],
        compiler_params=cparams,
        cost_estimate=stats_cost,
    )(x_pad, w_taps)

    # ---- Fold BN: parallel-variance combination (no E[y^2]-E[y]^2 cancellation), O(Cout) ----
    means = mean_p[:, 0, :]                                   # (N, Cout_pad)
    m2s = m2_p[:, 0, :]                                       # (N, Cout_pad)
    mean = jnp.mean(means, axis=0)                            # (Cout_pad,)
    m2 = jnp.sum(m2s, axis=0) + float(HWo) * jnp.sum((means - mean) ** 2, axis=0)
    var = m2 / float(N * HWo)                                 # biased variance (PyTorch train BN)
    inv_std = jax.lax.rsqrt(var + eps)
    gamma_pad = jnp.pad(gamma.astype(jnp.float32), (0, Cout_pad - Cout))
    beta_pad = jnp.pad(beta.astype(jnp.float32), (0, Cout_pad - Cout))
    scale = (gamma_pad * inv_std).reshape(1, Cout_pad)
    shift = (beta_pad - mean * gamma_pad * inv_std).reshape(1, Cout_pad)

    # ---- Pass 2: recompute conv fused with scale/shift + ReLU; unpadded NCHW-layout output ----
    out_cost = pl.CostEstimate(
        flops=conv_flops + 3 * N * HWo * Cout_pad,
        transcendentals=0,
        bytes_accessed=(N * Hp * Wp * Cin + K * K * Cin * Cout_pad + N * Cout * HWo) * itemsize
        + 2 * Cout_pad * 4,
    )
    kern2 = functools.partial(_conv_bn_relu_kernel, H=Hout, W=Wout, Cin=Cin, K=K, Cout=Cout)
    out = pl.pallas_call(
        kern2,
        grid=(N,),
        in_specs=[
            pl.BlockSpec((1, Hp, Wp, Cin), lambda n: (n, 0, 0, 0)),
            pl.BlockSpec((K * K, Cin, Cout_pad), lambda n: (0, 0, 0)),
            pl.BlockSpec((1, Cout_pad), lambda n: (0, 0)),
            pl.BlockSpec((1, Cout_pad), lambda n: (0, 0)),
        ],
        out_specs=pl.BlockSpec((1, Cout, HWo), lambda n: (n, 0, 0)),
        out_shape=jax.ShapeDtypeStruct((N, Cout, HWo), x_nchw.dtype),
        compiler_params=cparams,
        cost_estimate=out_cost,
    )(x_pad, w_taps, scale, shift)

    # Already NCHW channel-major; reshape is free (contiguous), no transpose pass.
    return out.reshape(N, Cout, Hout, Wout)


def _reference(x_nchw, w_oikk, gamma, beta, *, stride=1, padding=1, eps=1e-5):
    y = jax.lax.conv_general_dilated(
        x_nchw.astype(jnp.float32), w_oikk.astype(jnp.float32),
        window_strides=(stride, stride),
        padding=[(padding, padding), (padding, padding)],
        dimension_numbers=("NCHW", "OIHW", "NCHW"))
    mean = jnp.mean(y, axis=(0, 2, 3), keepdims=True)
    var = jnp.mean((y - mean) ** 2, axis=(0, 2, 3), keepdims=True)
    y = (y - mean) * jax.lax.rsqrt(var + eps)
    y = y * gamma.reshape(1, -1, 1, 1) + beta.reshape(1, -1, 1, 1)
    return jnp.maximum(y, 0.0)


if __name__ == "__main__":
    key = jax.random.PRNGKey(0)
    k_x, k_w, k_g, k_b = jax.random.split(key, 4)

    N, Cin, H, W = 2, 4, 16, 16
    Cout, K, S, P = 8, 3, 1, 1

    x = jax.random.normal(k_x, (N, Cin, H, W), dtype=jnp.float32)
    # deterministic synthetic parameters (Conv2d has bias=False; BN gamma/beta made nontrivial)
    fan_in = Cin * K * K
    w = jax.random.uniform(k_w, (Cout, Cin, K, K), dtype=jnp.float32,
                           minval=-1.0, maxval=1.0) / jnp.sqrt(fan_in)
    gamma = 1.0 + 0.1 * jax.random.normal(k_g, (Cout,), dtype=jnp.float32)
    beta = 0.1 * jax.random.normal(k_b, (Cout,), dtype=jnp.float32)

    out = conv_bn_relu(x, w, gamma, beta, stride=S, padding=P)
    out = jax.block_until_ready(out)

    ref = _reference(x, w, gamma, beta, stride=S, padding=P)
    assert out.shape == (N, Cout, H, W)
    assert jnp.allclose(out, ref, atol=1e-4, rtol=1e-4), "mismatch vs reference"

    print("KERNEL_OK")
</pallas_src>

<mosaic_0001>
module attributes {stable_mosaic.version = 11 : i64} {
  func.func @_stats_kernel(%arg0: i32, %arg1: memref<1x18x18x4xf32, #tpu.memory_space<vmem>>, %arg2: memref<9x4x128xf32, #tpu.memory_space<vmem>>, %arg3: memref<1x1x128xf32, #tpu.memory_space<vmem>>, %arg4: memref<1x1x128xf32, #tpu.memory_space<vmem>>) attributes {dimension_semantics = [#tpu.dimension_semantics<parallel>], iteration_bounds = array<i64: 2>, scalar_prefetch = 0 : i64, scratch_operands = 0 : i64, tpu.core_type = #tpu.core_type<tc>, window_params = [{transform_indices = @transform_0, window_bounds = array<i64: 1, 18, 18, 4>}, {pipeline_mode = #tpu.pipeline_mode<synchronous>, transform_indices = @transform_1, window_bounds = array<i64: 9, 4, 128>}, {transform_indices = @transform_2, window_bounds = array<i64: 1, 1, 128>}, {transform_indices = @transform_3, window_bounds = array<i64: 1, 1, 128>}]} {
    %c0 = arith.constant 0 : index
    %c0_0 = arith.constant 0 : index
    %c0_1 = arith.constant 0 : index
    %c0_2 = arith.constant 0 : index
    %0 = vector.load %arg1[%c0, %c0_0, %c0_1, %c0_2] : memref<1x18x18x4xf32, #tpu.memory_space<vmem>>, vector<1x18x18x4xf32>
    %1 = vector.shape_cast %0 : vector<1x18x18x4xf32> to vector<18x18x4xf32>
    %2 = vector.extract_strided_slice %1 {offsets = [0, 0, 0], sizes = [16, 16, 4], strides = [1, 1, 1]} : vector<18x18x4xf32> to vector<16x16x4xf32>
    %3 = vector.shape_cast %2 : vector<16x16x4xf32> to vector<256x4xf32>
    %c0_3 = arith.constant 0 : index
    %c0_4 = arith.constant 0 : index
    %c0_5 = arith.constant 0 : index
    %4 = vector.load %arg2[%c0_3, %c0_4, %c0_5] : memref<9x4x128xf32, #tpu.memory_space<vmem>>, vector<1x4x128xf32>
    %5 = vector.shape_cast %4 : vector<1x4x128xf32> to vector<4x128xf32>
    %cst = arith.constant dense<0.000000e+00> : vector<256x128xf32>
    %6 = tpu.matmul %3, %5, %cst {dimension_numbers = #tpu.dot_dimension_numbers<[1], [0], [0], [1], [0, 0, 1, 1], [], []>} : vector<256x4xf32>, vector<4x128xf32>, vector<256x128xf32> -> vector<256x128xf32>
    %7 = vector.extract_strided_slice %1 {offsets = [0, 1, 0], sizes = [16, 16, 4], strides = [1, 1, 1]} : vector<18x18x4xf32> to vector<16x16x4xf32>
    %8 = vector.shape_cast %7 : vector<16x16x4xf32> to vector<256x4xf32>
    %c1 = arith.constant 1 : index
    %c0_6 = arith.constant 0 : index
    %c0_7 = arith.constant 0 : index
    %9 = vector.load %arg2[%c1, %c0_6, %c0_7] : memref<9x4x128xf32, #tpu.memory_space<vmem>>, vector<1x4x128xf32>
    %10 = vector.shape_cast %9 : vector<1x4x128xf32> to vector<4x128xf32>
    %cst_8 = arith.constant dense<0.000000e+00> : vector<256x128xf32>
    %11 = tpu.matmul %8, %10, %cst_8 {dimension_numbers = #tpu.dot_dimension_numbers<[1], [0], [0], [1], [0, 0, 1, 1], [], []>} : vector<256x4xf32>, vector<4x128xf32>, vector<256x128xf32> -> vector<256x128xf32>
    %12 = arith.addf %6, %11 : vector<256x128xf32>
    %13 = vector.extract_strided_slice %1 {offsets = [0, 2, 0], sizes = [16, 16, 4], strides = [1, 1, 1]} : vector<18x18x4xf32> to vector<16x16x4xf32>
    %14 = vector.shape_cast %13 : vector<16x16x4xf32> to vector<256x4xf32>
    %c2 = arith.constant 2 : index
    %c0_9 = arith.constant 0 : index
    %c0_10 = arith.constant 0 : index
    %15 = vector.load %arg2[%c2, %c0_9, %c0_10] : memref<9x4x128xf32, #tpu.memory_space<vmem>>, vector<1x4x128xf32>
    %16 = vector.shape_cast %15 : vector<1x4x128xf32> to vector<4x128xf32>
    %cst_11 = arith.constant dense<0.000000e+00> : vector<256x128xf32>
    %17 = tpu.matmul %14, %16, %cst_11 {dimension_numbers = #tpu.dot_dimension_numbers<[1], [0], [0], [1], [0, 0, 1, 1], [], []>} : vector<256x4xf32>, vector<4x128xf32>, vector<256x128xf32> -> vector<256x128xf32>
    %18 = arith.addf %12, %17 : vector<256x128xf32>
    %19 = vector.extract_strided_slice %1 {offsets = [1, 0, 0], sizes = [16, 16, 4], strides = [1, 1, 1]} : vector<18x18x4xf32> to vector<16x16x4xf32>
    %20 = vector.shape_cast %19 : vector<16x16x4xf32> to vector<256x4xf32>
    %c3 = arith.constant 3 : index
    %c0_12 = arith.constant 0 : index
    %c0_13 = arith.constant 0 : index
    %21 = vector.load %arg2[%c3, %c0_12, %c0_13] : memref<9x4x128xf32, #tpu.memory_space<vmem>>, vector<1x4x128xf32>
    %22 = vector.shape_cast %21 : vector<1x4x128xf32> to vector<4x128xf32>
    %cst_14 = arith.constant dense<0.000000e+00> : vector<256x128xf32>
    %23 = tpu.matmul %20, %22, %cst_14 {dimension_numbers = #tpu.dot_dimension_numbers<[1], [0], [0], [1], [0, 0, 1, 1], [], []>} : vector<256x4xf32>, vector<4x128xf32>, vector<256x128xf32> -> vector<256x128xf32>
    %24 = arith.addf %18, %23 : vector<256x128xf32>
    %25 = vector.extract_strided_slice %1 {offsets = [1, 1, 0], sizes = [16, 16, 4], strides = [1, 1, 1]} : vector<18x18x4xf32> to vector<16x16x4xf32>
    %26 = vector.shape_cast %25 : vector<16x16x4xf32> to vector<256x4xf32>
    %c4 = arith.constant 4 : index
    %c0_15 = arith.constant 0 : index
    %c0_16 = arith.constant 0 : index
    %27 = vector.load %arg2[%c4, %c0_15, %c0_16] : memref<9x4x128xf32, #tpu.memory_space<vmem>>, vector<1x4x128xf32>
    %28 = vector.shape_cast %27 : vector<1x4x128xf32> to vector<4x128xf32>
    %cst_17 = arith.constant dense<0.000000e+00> : vector<256x128xf32>
    %29 = tpu.matmul %26, %28, %cst_17 {dimension_numbers = #tpu.dot_dimension_numbers<[1], [0], [0], [1], [0, 0, 1, 1], [], []>} : vector<256x4xf32>, vector<4x128xf32>, vector<256x128xf32> -> vector<256x128xf32>
    %30 = arith.addf %24, %29 : vector<256x128xf32>
    %31 = vector.extract_strided_slice %1 {offsets = [1, 2, 0], sizes = [16, 16, 4], strides = [1, 1, 1]} : vector<18x18x4xf32> to vector<16x16x4xf32>
    %32 = vector.shape_cast %31 : vector<16x16x4xf32> to vector<256x4xf32>
    %c5 = arith.constant 5 : index
    %c0_18 = arith.constant 0 : index
    %c0_19 = arith.constant 0 : index
    %33 = vector.load %arg2[%c5, %c0_18, %c0_19] : memref<9x4x128xf32, #tpu.memory_space<vmem>>, vector<1x4x128xf32>
    %34 = vector.shape_cast %33 : vector<1x4x128xf32> to vector<4x128xf32>
    %cst_20 = arith.constant dense<0.000000e+00> : vector<256x128xf32>
    %35 = tpu.matmul %32, %34, %cst_20 {dimension_numbers = #tpu.dot_dimension_numbers<[1], [0], [0], [1], [0, 0, 1, 1], [], []>} : vector<256x4xf32>, vector<4x128xf32>, vector<256x128xf32> -> vector<256x128xf32>
    %36 = arith.addf %30, %35 : vector<256x128xf32>
    %37 = vector.extract_strided_slice %1 {offsets = [2, 0, 0], sizes = [16, 16, 4], strides = [1, 1, 1]} : vector<18x18x4xf32> to vector<16x16x4xf32>
    %38 = vector.shape_cast %37 : vector<16x16x4xf32> to vector<256x4xf32>
    %c6 = arith.constant 6 : index
    %c0_21 = arith.constant 0 : index
    %c0_22 = arith.constant 0 : index
    %39 = vector.load %arg2[%c6, %c0_21, %c0_22] : memref<9x4x128xf32, #tpu.memory_space<vmem>>, vector<1x4x128xf32>
    %40 = vector.shape_cast %39 : vector<1x4x128xf32> to vector<4x128xf32>
    %cst_23 = arith.constant dense<0.000000e+00> : vector<256x128xf32>
    %41 = tpu.matmul %38, %40, %cst_23 {dimension_numbers = #tpu.dot_dimension_numbers<[1], [0], [0], [1], [0, 0, 1, 1], [], []>} : vector<256x4xf32>, vector<4x128xf32>, vector<256x128xf32> -> vector<256x128xf32>
    %42 = arith.addf %36, %41 : vector<256x128xf32>
    %43 = vector.extract_strided_slice %1 {offsets = [2, 1, 0], sizes = [16, 16, 4], strides = [1, 1, 1]} : vector<18x18x4xf32> to vector<16x16x4xf32>
    %44 = vector.shape_cast %43 : vector<16x16x4xf32> to vector<256x4xf32>
    %c7 = arith.constant 7 : index
    %c0_24 = arith.constant 0 : index
    %c0_25 = arith.constant 0 : index
    %45 = vector.load %arg2[%c7, %c0_24, %c0_25] : memref<9x4x128xf32, #tpu.memory_space<vmem>>, vector<1x4x128xf32>
    %46 = vector.shape_cast %45 : vector<1x4x128xf32> to vector<4x128xf32>
    %cst_26 = arith.constant dense<0.000000e+00> : vector<256x128xf32>
    %47 = tpu.matmul %44, %46, %cst_26 {dimension_numbers = #tpu.dot_dimension_numbers<[1], [0], [0], [1], [0, 0, 1, 1], [], []>} : vector<256x4xf32>, vector<4x128xf32>, vector<256x128xf32> -> vector<256x128xf32>
    %48 = arith.addf %42, %47 : vector<256x128xf32>
    %49 = vector.extract_strided_slice %1 {offsets = [2, 2, 0], sizes = [16, 16, 4], strides = [1, 1, 1]} : vector<18x18x4xf32> to vector<16x16x4xf32>
    %50 = vector.shape_cast %49 : vector<16x16x4xf32> to vector<256x4xf32>
    %c8 = arith.constant 8 : index
    %c0_27 = arith.constant 0 : index
    %c0_28 = arith.constant 0 : index
    %51 = vector.load %arg2[%c8, %c0_27, %c0_28] : memref<9x4x128xf32, #tpu.memory_space<vmem>>, vector<1x4x128xf32>
    %52 = vector.shape_cast %51 : vector<1x4x128xf32> to vector<4x128xf32>
    %cst_29 = arith.constant dense<0.000000e+00> : vector<256x128xf32>
    %53 = tpu.matmul %50, %52, %cst_29 {dimension_numbers = #tpu.dot_dimension_numbers<[1], [0], [0], [1], [0, 0, 1, 1], [], []>} : vector<256x4xf32>, vector<4x128xf32>, vector<256x128xf32> -> vector<256x128xf32>
    %54 = arith.addf %48, %53 : vector<256x128xf32>
    %cst_30 = arith.constant dense<0.000000e+00> : vector<128xf32>
    %55 = vector.multi_reduction <add>, %54, %cst_30 [0] : vector<256x128xf32> to vector<128xf32>
    %56 = vector.shape_cast %55 : vector<128xf32> to vector<1x128xf32>
    %cst_31 = arith.constant 3.906250e-03 : f32
    %57 = vector.broadcast %cst_31 : f32 to vector<1x128xf32>
    %58 = arith.mulf %56, %57 : vector<1x128xf32>
    %59 = vector.broadcast %58 : vector<1x128xf32> to vector<256x128xf32>
    %60 = arith.subf %54, %59 : vector<256x128xf32>
    %c0_32 = arith.constant 0 : index
    %c0_33 = arith.constant 0 : index
    %c0_34 = arith.constant 0 : index
    %61 = vector.load %arg3[%c0_32, %c0_33, %c0_34] : memref<1x1x128xf32, #tpu.memory_space<vmem>>, vector<1x1x128xf32>
    %62 = vector.shape_cast %61 : vector<1x1x128xf32> to vector<1x128xf32>
    %63 = vector.shape_cast %58 : vector<1x128xf32> to vector<1x1x128xf32>
    tpu.vector_store %arg3[%c0_32, %c0_33, %c0_34], %63 {strides = array<i32>} : memref<1x1x128xf32, #tpu.memory_space<vmem>>, vector<1x1x128xf32>,
    %64 = arith.mulf %60, %60 : vector<256x128xf32>
    %cst_35 = arith.constant dense<0.000000e+00> : vector<128xf32>
    %65 = vector.multi_reduction <add>, %64, %cst_35 [0] : vector<256x128xf32> to vector<128xf32>
    %66 = vector.shape_cast %65 : vector<128xf32> to vector<1x128xf32>
    %c0_36 = arith.constant 0 : index
    %c0_37 = arith.constant 0 : index
    %c0_38 = arith.constant 0 : index
    %67 = vector.load %arg4[%c0_36, %c0_37, %c0_38] : memref<1x1x128xf32, #tpu.memory_space<vmem>>, vector<1x1x128xf32>
    %68 = vector.shape_cast %67 : vector<1x1x128xf32> to vector<1x128xf32>
    %69 = vector.shape_cast %66 : vector<1x128xf32> to vector<1x1x128xf32>
    tpu.vector_store %arg4[%c0_36, %c0_37, %c0_38], %69 {strides = array<i32>} : memref<1x1x128xf32, #tpu.memory_space<vmem>>, vector<1x1x128xf32>,
    return
  }
  func.func @transform_0(%arg0: i32) -> (i32, i32, i32, i32) {
    %c0_i32 = arith.constant 0 : i32
    %c0_i32_0 = arith.constant 0 : i32
    %c0_i32_1 = arith.constant 0 : i32
    %c0_i32_2 = arith.constant 0 : i32
    return %arg0, %c0_i32, %c0_i32_0, %c0_i32_1 : i32, i32, i32, i32
  }
  func.func @transform_1(%arg0: i32) -> (i32, i32, i32) {
    %c0_i32 = arith.constant 0 : i32
    %c0_i32_0 = arith.constant 0 : i32
    %c0_i32_1 = arith.constant 0 : i32
    %c0_i32_2 = arith.constant 0 : i32
    return %c0_i32, %c0_i32_0, %c0_i32_1 : i32, i32, i32
  }
  func.func @transform_2(%arg0: i32) -> (i32, i32, i32) {
    %c0_i32 = arith.constant 0 : i32
    %c0_i32_0 = arith.constant 0 : i32
    %c0_i32_1 = arith.constant 0 : i32
    return %arg0, %c0_i32, %c0_i32_0 : i32, i32, i32
  }
  func.func @transform_3(%arg0: i32) -> (i32, i32, i32) {
    %c0_i32 = arith.constant 0 : i32
    %c0_i32_0 = arith.constant 0 : i32
    %c0_i32_1 = arith.constant 0 : i32
    return %arg0, %c0_i32, %c0_i32_0 : i32, i32, i32
  }
}

</mosaic_0001>

<llo_original>
// kernel: tpu_custom_call.1
$region0: #{tpu_custom_call.1}
  #allocation0 [shape = 'u32[]', space=smem, size = 0x4, offset = 0x4, fixed_abs, tag = 'smem constant byte address 0x4 - core index']
  #allocation1 [shape = 'u32[144,128]{1,0:T(1,128)}', space=vmem, size = 0x12000, scoped, tag = 'internal scratch']
  %s0 = inlined_call_operand.vmem [shape: f32[2,18,18,4], index: 0, kind: input, shape index: {}]
  %s1 = inlined_call_operand.vmem [shape: f32[9,4,128], index: 1, kind: input, shape index: {}]
  %s2 = inlined_call_operand.hbm [shape: f32[2,1,128], index: 2, kind: output, shape index: {0}]
  %s3 = inlined_call_operand.hbm [shape: f32[2,1,128], index: 3, kind: output, shape index: {1}]
  %4 = xla_tuple %s2, %s3
  %s5 = sld [smem:[#allocation0]]
  $region49: #{tpu_custom_call.1} parent=0
    _
  %s7 = ssub.s32 1, %s5
  %s8 = scalar_select 0, %s7, %s5
  $region1: #{tpu_custom_call.1} parent=0
    #allocation2 [shape = 'u8[1024]{0}', space=vmem, size = 0x400, scoped, tag = 'output window, operand 0']
    #allocation3 [shape = 's32[2]{0}', space=sflag, size = 0x8, scoped, tag = 'scoped memory for tpu_custom_call.1']
    #allocation4 [shape = 'u8[1024]{0}', space=vmem, size = 0x400, scoped, tag = 'output window, operand 1']
    #allocation5 [shape = 's32[2]{0}', space=sflag, size = 0x8, scoped, tag = 'scoped memory for tpu_custom_call.1']
    %9 = vsyncpa [#allocation3], 0
    %s10 = scalar_lea.sflag [#allocation3], 1
    %11 = vsyncpa %s10, 0
    %12 = vsyncpa [#allocation5], 0
    %s13 = scalar_lea.sflag [#allocation5], 1
    %14 = vsyncpa %s13, 0
    loop: start=0, step=1, limit=4
    $region2: #{tpu_custom_call.1} parent=1 // loop_pre_header
      _
    $region3: #{tpu_custom_call.1} parent=1 // loop_header
      %s16 = sphi 0, %s20
      %p17 = scmp.ge.s32.totalorder %s16, 4
      %s26 = sphi 0, %s28
      %s29 = sphi 0, %s26
      %s30 = sphi 0, %s29
      %s46 = sphi 0, %s30
      %s50 = sphi 0, %s50
      %s52 = sphi 0, %s50
      %s53 = sphi 0, %s52
      %s67 = sphi 0, %s53
      %s73 = sphi 0, %s75
      %s76 = sphi 0, %s73
      %s77 = sphi 0, %s76
      %s93 = sphi 0, %s77
      %s99 = sphi 0, %s101
      %s102 = sphi 0, %s99
      %s103 = sphi 0, %s102
      %s119 = sphi 0, %s103
    $region4: #{tpu_custom_call.1} parent=1 // loop_header_branch
      %19 = sbr.rel (%p17) target = $region8
    $region5: #{tpu_custom_call.1} parent=1 // loop_body
      %s21 = ssub.s32 %s16, 1
      %s22 = ssub.s32 %s16, 2
      %s23 = sadd.s32 %s16, 1
      %s24 = ssub.s32 %s16, %s23
      %p25 = scmp.eq.s32.totalorder %s24, 0
      %s27 = sadd.s32 %s26, 1
      %s28 = scalar_select %p25, %s26, %s27
      %p31 = pneg %p25
      %p32 = scmp.eq.s32.totalorder %s16, 1
      %p33 = por %p31, %p32
      %p34 = scmp.ne.s32.totalorder %s26, %s29
      %p35 = scmp.eq.s32.totalorder %s16, 0
      %p36 = por %p34, %p35
      %p37 = scmp.ne.s32.totalorder %s26, %s29
      %p38 = scmp.eq.s32.totalorder %s21, 1
      %p39 = por %p37, %p38
      %p40 = scmp.ne.s32.totalorder %s29, %s30
      %p41 = scmp.eq.s32.totalorder %s21, 0
      %p42 = por %p40, %p41
      %p43 = scmp.ne.s32.totalorder %s29, %s30
      %p44 = scmp.eq.s32.totalorder %s22, 1
      %p45 = por %p43, %p44
      %p47 = scmp.ne.s32.totalorder %s30, %s46
      %p48 = scmp.eq.s32.totalorder %s22, 0
      %p49 = por %p47, %p48
      %s51 = sadd.s32 %s50, 1
      %p54 = scmp.eq.s32.totalorder %s16, 1
      %p55 = scmp.ne.s32.totalorder %s50, %s52
      %p56 = scmp.eq.s32.totalorder %s16, 0
      %p57 = por %p55, %p56
      %p58 = scmp.ne.s32.totalorder %s50, %s52
      %p59 = scmp.eq.s32.totalorder %s21, 1
      %p60 = por %p58, %p59
      %p61 = scmp.ne.s32.totalorder %s52, %s53
      %p62 = scmp.eq.s32.totalorder %s21, 0
      %p63 = por %p61, %p62
      %p64 = scmp.ne.s32.totalorder %s52, %s53
      %p65 = scmp.eq.s32.totalorder %s22, 1
      %p66 = por %p64, %p65
      %p68 = scmp.ne.s32.totalorder %s53, %s67
      %p69 = scmp.eq.s32.totalorder %s22, 0
      %p70 = por %p68, %p69
      %s71 = ssub.s32 %s16, %s23
      %p72 = scmp.eq.s32.totalorder %s71, 0
      %s74 = sadd.s32 %s73, 1
      %s75 = scalar_select %p72, %s73, %s74
      %p78 = pneg %p72
      %p79 = scmp.eq.s32.totalorder %s16, 1
      %p80 = por %p78, %p79
      %p81 = scmp.ne.s32.totalorder %s73, %s76
      %p82 = scmp.eq.s32.totalorder %s16, 0
      %p83 = por %p81, %p82
      %p84 = scmp.ne.s32.totalorder %s73, %s76
      %p85 = scmp.eq.s32.totalorder %s21, 1
      %p86 = por %p84, %p85
      %p87 = scmp.ne.s32.totalorder %s76, %s77
      %p88 = scmp.eq.s32.totalorder %s21, 0
      %p89 = por %p87, %p88
      %p90 = scmp.ne.s32.totalorder %s76, %s77
      %p91 = scmp.eq.s32.totalorder %s22, 1
      %p92 = por %p90, %p91
      %p94 = scmp.ne.s32.totalorder %s77, %s93
      %p95 = scmp.eq.s32.totalorder %s22, 0
      %p96 = por %p94, %p95
      %s97 = ssub.s32 %s16, %s23
      %p98 = scmp.eq.s32.totalorder %s97, 0
      %s100 = sadd.s32 %s99, 1
      %s101 = scalar_select %p98, %s99, %s100
      %p104 = pneg %p98
      %p105 = scmp.eq.s32.totalorder %s16, 1
      %p106 = por %p104, %p105
      %p107 = scmp.ne.s32.totalorder %s99, %s102
      %p108 = scmp.eq.s32.totalorder %s16, 0
      %p109 = por %p107, %p108
      %p110 = scmp.ne.s32.totalorder %s99, %s102
      %p111 = scmp.eq.s32.totalorder %s21, 1
      %p112 = por %p110, %p111
      %p113 = scmp.ne.s32.totalorder %s102, %s103
      %p114 = scmp.eq.s32.totalorder %s21, 0
      %p115 = por %p113, %p114
      %p116 = scmp.ne.s32.totalorder %s102, %s103
      %p117 = scmp.eq.s32.totalorder %s22, 1
      %p118 = por %p116, %p117
      %p120 = scmp.ne.s32.totalorder %s103, %s119
      %p121 = scmp.eq.s32.totalorder %s22, 0
      %p122 = por %p120, %p121
      %p123 = scmp.le.s32.totalorder 1, %s16
      %p124 = scmp.lt.s32.totalorder %s16, 3
      %p125 = pnand %p123, %p124
      %p126 = pneg %p125
      // Predicated region
      $region9: #{tpu_custom_call.1} parent=5 // pred_check
        _
      $region10: #{tpu_custom_call.1} parent=5 // pred_check_branch
        %128 = sbr.rel (%p125) target = $region12
      $region11: #{tpu_custom_call.1} parent=5 // pred_region
        %s129 = ssub.s32 %s16, 1
        // Predicated region
        $region13: #{tpu_custom_call.1} parent=11 // pred_check
          %p130 = pneg %p63
        $region14: #{tpu_custom_call.1} parent=11 // pred_check_branch
          %132 = sbr.rel (%p130) target = $region16
        $region15: #{tpu_custom_call.1} parent=11 // pred_region
          _
        $region16: #{tpu_custom_call.1} parent=11 // pred_fallthru
          _
      $region12: #{tpu_custom_call.1} parent=5 // pred_fallthru
        _
      %p133 = scmp.lt.s32.totalorder %s16, 2
      // Predicated region
      $region17: #{tpu_custom_call.1} parent=5 // pred_check
        %p134 = pneg %p133
      $region18: #{tpu_custom_call.1} parent=5 // pred_check_branch
        %136 = sbr.rel (%p134) target = $region20
      $region19: #{tpu_custom_call.1} parent=5 // pred_region
        // Predicated region
        $region21: #{tpu_custom_call.1} parent=19 // pred_check
          %p137 = pneg %p36
        $region22: #{tpu_custom_call.1} parent=19 // pred_check_branch
          %139 = sbr.rel (%p137) target = $region24
        $region23: #{tpu_custom_call.1} parent=19 // pred_region
          %p140 = scmp.lt.s32.totalorder %s16, 1
          %s141 = scalar_select %p140, %s16, 1
          %s142 = smul.addr %s141, 54
          %s143 = smul.addr %s142, 8
          %s144 = scalar_lea.vmem %s0, %s143
        $region24: #{tpu_custom_call.1} parent=19 // pred_fallthru
          _
      $region20: #{tpu_custom_call.1} parent=5 // pred_fallthru
        _
      %p145 = scmp.le.s32.totalorder 1, %s16
      %p146 = scmp.lt.s32.totalorder %s16, 3
      %p147 = pnand %p145, %p146
      %p148 = pneg %p147
      // Predicated region
      $region25: #{tpu_custom_call.1} parent=5 // pred_check
        _
      $region26: #{tpu_custom_call.1} parent=5 // pred_check_branch
        %150 = sbr.rel (%p147) target = $region28
      $region27: #{tpu_custom_call.1} parent=5 // pred_region
        %s151 = ssub.s32 %s16, 1
        %p152 = scmp.lt.s32.totalorder %s21, 1
        %s153 = scalar_select %p152, %s21, 1
        %s154 = smul.addr %s153, 54
        %s155 = smul.addr %s154, 8
        %s156 = scalar_lea.vmem %s0, %s155
        %p157 = pneg %p42
        %p158 = pneg %p39
        %p159 = pneg %p63
        %p160 = pneg %p60
        %p161 = pneg %p89
        %p162 = pneg %p86
        %s163 = sand.u32 %s76, 1
        %s164 = scalar_lea.sflag [#allocation3], %s163
        %s165 = sand.u32 %s76, 1
        %s166 = scalar_lea.vmem [#allocation2], %s165
        %p167 = pneg %p115
        %p168 = pneg %p112
        %s169 = sand.u32 %s102, 1
        %s170 = scalar_lea.sflag [#allocation5], %s169
        %s171 = sand.u32 %s102, 1
        %s172 = scalar_lea.vmem [#allocation4], %s171
        %p173 = scmp.lt.s32.totalorder %s21, 1
        %s174 = scalar_select %p173, %s21, 1
        %s175 = smul.addr %s174, 54
        %s176 = smul.addr %s175, 8
        %s177 = scalar_lea.vmem %s0, %s176
        %v178 = vld [vmem:[%s177] sm:$0xff]
        %v179 = vld [vmem:[%s177 + $0x8] sm:$0xff]
        %v180 = vld [vmem:[%s177 + $0x10] sm:$0x3]
        %v181 = vld [vmem:[%s177 + $0x18] sm:$0xff]
        %v182 = vld [vmem:[%s177 + $0x20] sm:$0xff]
        %v183 = vld [vmem:[%s177 + $0x28] sm:$0x3]
        %v184 = vld [vmem:[%s177 + $0x30] sm:$0xff]
        %v185 = vld [vmem:[%s177 + $0x38] sm:$0xff]
        %v186 = vld [vmem:[%s177 + $0x40] sm:$0x3]
        %v187 = vld [vmem:[%s177 + $0x48] sm:$0xff]
        %v188 = vld [vmem:[%s177 + $0x50] sm:$0xff]
        %v189 = vld [vmem:[%s177 + $0x58] sm:$0x3]
        %v190 = vld [vmem:[%s177 + $0x60] sm:$0xff]
        %v191 = vld [vmem:[%s177 + $0x68] sm:$0xff]
        %v192 = vld [vmem:[%s177 + $0x70] sm:$0x3]
        %v193 = vld [vmem:[%s177 + $0x78] sm:$0xff]
        %v194 = vld [vmem:[%s177 + $0x80] sm:$0xff]
        %v195 = vld [vmem:[%s177 + $0x88] sm:$0x3]
        %v196 = vld [vmem:[%s177 + $0x90] sm:$0xff]
        %v197 = vld [vmem:[%s177 + $0x98] sm:$0xff]
        %v198 = vld [vmem:[%s177 + $0xa0] sm:$0x3]
        %v199 = vld [vmem:[%s177 + $0xa8] sm:$0xff]
        %v200 = vld [vmem:[%s177 + $0xb0] sm:$0xff]
        %v201 = vld [vmem:[%s177 + $0xb8] sm:$0x3]
        %v202 = vld [vmem:[%s177 + $0xc0] sm:$0xff]
        %v203 = vld [vmem:[%s177 + $0xc8] sm:$0xff]
        %v204 = vld [vmem:[%s177 + $0xd0] sm:$0x3]
        %v205 = vld [vmem:[%s177 + $0xd8] sm:$0xff]
        %v206 = vld [vmem:[%s177 + $0xe0] sm:$0xff]
        %v207 = vld [vmem:[%s177 + $0xe8] sm:$0x3]
        %v208 = vld [vmem:[%s177 + $0xf0] sm:$0xff]
        %v209 = vld [vmem:[%s177 + $0xf8] sm:$0xff]
        %v210 = vld [vmem:[%s177 + $0x100] sm:$0x3]
        %v211 = vld [vmem:[%s177 + $0x108] sm:$0xff]
        %v212 = vld [vmem:[%s177 + $0x110] sm:$0xff]
        %v213 = vld [vmem:[%s177 + $0x118] sm:$0x3]
        %v214 = vld [vmem:[%s177 + $0x120] sm:$0xff]
        %v215 = vld [vmem:[%s177 + $0x128] sm:$0xff]
        %v216 = vld [vmem:[%s177 + $0x130] sm:$0x3]
        %v217 = vld [vmem:[%s177 + $0x138] sm:$0xff]
        %v218 = vld [vmem:[%s177 + $0x140] sm:$0xff]
        %v219 = vld [vmem:[%s177 + $0x148] sm:$0x3]
        %v220 = vld [vmem:[%s177 + $0x150] sm:$0xff]
        %v221 = vld [vmem:[%s177 + $0x158] sm:$0xff]
        %v222 = vld [vmem:[%s177 + $0x160] sm:$0x3]
        %v223 = vld [vmem:[%s177 + $0x168] sm:$0xff]
        %v224 = vld [vmem:[%s177 + $0x170] sm:$0xff]
        %v225 = vld [vmem:[%s177 + $0x178] sm:$0x3]
        %v226 = vld [vmem:[%s177 + $0x180] sm:$0xff]
        %v227 = vld [vmem:[%s177 + $0x188] sm:$0xff]
        %v228 = vld [vmem:[%s177 + $0x190] sm:$0x3]
        %v229 = vld [vmem:[%s177 + $0x198] sm:$0xff]
        %v230 = vld [vmem:[%s177 + $0x1a0] sm:$0xff]
        %v231 = vld [vmem:[%s177 + $0x1a8] sm:$0x3]
        %v232 = vld [vmem:[%s1] sm:$0xf]
        %vm281 = vcmask 1046528
        %v282 = vrot.slane %v178, 1
        %v283 = vrot.slane %v179, 1
        %v284 = vsel %vm281, %v282, %v283
        %v285 = vrot.slane %v180, 1
        %v286 = vsel %vm281, %v283, %v285
        %v287 = vrot.slane %v181, 1
        %v288 = vrot.slane %v182, 1
        %v289 = vsel %vm281, %v287, %v288
        %v290 = vrot.slane %v183, 1
        %v291 = vsel %vm281, %v288, %v290
        %v292 = vrot.slane %v184, 1
        %v293 = vrot.slane %v185, 1
        %v294 = vsel %vm281, %v292, %v293
        %v295 = vrot.slane %v186, 1
        %v296 = vsel %vm281, %v293, %v295
        %v297 = vrot.slane %v187, 1
        %v298 = vrot.slane %v188, 1
        %v299 = vsel %vm281, %v297, %v298
        %v300 = vrot.slane %v189, 1
        %v301 = vsel %vm281, %v298, %v300
        %v302 = vrot.slane %v190, 1
        %v303 = vrot.slane %v191, 1
        %v304 = vsel %vm281, %v302, %v303
        %v305 = vrot.slane %v192, 1
        %v306 = vsel %vm281, %v303, %v305
        %v307 = vrot.slane %v193, 1
        %v308 = vrot.slane %v194, 1
        %v309 = vsel %vm281, %v307, %v308
        %v310 = vrot.slane %v195, 1
        %v311 = vsel %vm281, %v308, %v310
        %v312 = vrot.slane %v196, 1
        %v313 = vrot.slane %v197, 1
        %v314 = vsel %vm281, %v312, %v313
        %v315 = vrot.slane %v198, 1
        %v316 = vsel %vm281, %v313, %v315
        %v317 = vrot.slane %v199, 1
        %v318 = vrot.slane %v200, 1
        %v319 = vsel %vm281, %v317, %v318
        %v320 = vrot.slane %v201, 1
        %v321 = vsel %vm281, %v318, %v320
        %v322 = vrot.slane %v202, 1
        %v323 = vrot.slane %v203, 1
        %v324 = vsel %vm281, %v322, %v323
        %v325 = vrot.slane %v204, 1
        %v326 = vsel %vm281, %v323, %v325
        %v327 = vrot.slane %v205, 1
        %v328 = vrot.slane %v206, 1
        %v329 = vsel %vm281, %v327, %v328
        %v330 = vrot.slane %v207, 1
        %v331 = vsel %vm281, %v328, %v330
        %v332 = vrot.slane %v208, 1
        %v333 = vrot.slane %v209, 1
        %v334 = vsel %vm281, %v332, %v333
        %v335 = vrot.slane %v210, 1
        %v336 = vsel %vm281, %v333, %v335
        %v337 = vrot.slane %v211, 1
        %v338 = vrot.slane %v212, 1
        %v339 = vsel %vm281, %v337, %v338
        %v340 = vrot.slane %v213, 1
        %v341 = vsel %vm281, %v338, %v340
        %v342 = vrot.slane %v214, 1
        %v343 = vrot.slane %v215, 1
        %v344 = vsel %vm281, %v342, %v343
        %v345 = vrot.slane %v216, 1
        %v346 = vsel %vm281, %v343, %v345
        %v347 = vrot.slane %v217, 1
        %v348 = vrot.slane %v218, 1
        %v349 = vsel %vm281, %v347, %v348
        %v350 = vrot.slane %v219, 1
        %v351 = vsel %vm281, %v348, %v350
        %v352 = vrot.slane %v220, 1
        %v353 = vrot.slane %v221, 1
        %v354 = vsel %vm281, %v352, %v353
        %v355 = vrot.slane %v222, 1
        %v356 = vsel %vm281, %v353, %v355
        %v357 = vrot.slane %v223, 1
        %v358 = vrot.slane %v224, 1
        %v359 = vsel %vm281, %v357, %v358
        %v360 = vrot.slane %v225, 1
        %v361 = vsel %vm281, %v358, %v360
        %s362 = scalar_lea.vmem %s1, 4
        %v363 = vld [vmem:[%s362] sm:$0xf]
        %vm364 = vcmask 31744
        %v365 = vsel %vm364, %v284, 0
        %v367 = vsel %vm364, %v286, 0
        %v369 = vsel %vm364, %v289, 0
        %v371 = vsel %vm364, %v291, 0
        %v373 = vsel %vm364, %v294, 0
        %v375 = vsel %vm364, %v296, 0
        %v377 = vsel %vm364, %v299, 0
        %v379 = vsel %vm364, %v301, 0
        %v381 = vsel %vm364, %v304, 0
        %v383 = vsel %vm364, %v306, 0
        %v385 = vsel %vm364, %v309, 0
        %v387 = vsel %vm364, %v311, 0
        %v389 = vsel %vm364, %v314, 0
        %v391 = vsel %vm364, %v316, 0
        %v393 = vsel %vm364, %v319, 0
        %v395 = vsel %vm364, %v321, 0
        %v397 = vsel %vm364, %v324, 0
        %v399 = vsel %vm364, %v326, 0
        %v401 = vsel %vm364, %v329, 0
        %v403 = vsel %vm364, %v331, 0
        %v405 = vsel %vm364, %v334, 0
        %v407 = vsel %vm364, %v336, 0
        %v409 = vsel %vm364, %v339, 0
        %v411 = vsel %vm364, %v341, 0
        %v413 = vsel %vm364, %v344, 0
        %v415 = vsel %vm364, %v346, 0
        %v417 = vsel %vm364, %v349, 0
        %v419 = vsel %vm364, %v351, 0
        %v421 = vsel %vm364, %v354, 0
        %v423 = vsel %vm364, %v356, 0
        %v425 = vsel %vm364, %v359, 0
        %v427 = vsel %vm364, %v361, 0
        %vm429 = vcmask 1043456
        %v431 = vsel %vm429, %v363, 0
        %433 = vmatprep.subr.mxu0 0.0
        %434 = vmatpush1.msra.mxu0 0.0
        %435 = vmatprep.subr.mxu0 0.0
        %436 = vmatpush1.msra.mxu0 0.0
        %437 = vmatprep.subr.mxu0 0.0
        %438 = vmatpush1.msra.mxu0 0.0
        %439 = vmatprep.subr.mxu0 0.0
        %440 = vmatpush1.msra.mxu0 0.0
        %441 = vmatprep.subr.mxu0 0.0
        %442 = vmatpush1.msra.mxu0 0.0
        %443 = vmatprep.subr.mxu0 0.0
        %444 = vmatpush1.msra.mxu0 0.0
        %445 = vmatprep.subr.mxu0 0.0
        %446 = vmatpush1.msra.mxu0 0.0
        %447 = vmatprep.subr.mxu0 0.0
        %448 = vmatpush1.msra.mxu0 0.0
        %449 = vmatprep.subr.mxu0 0.0
        %450 = vmatpush1.msra.mxu0 0.0
        %451 = vmatprep.subr.mxu0 0.0
        %452 = vmatpush1.msra.mxu0 0.0
        %453 = vmatprep.subr.mxu0 0.0
        %454 = vmatpush1.msra.mxu0 0.0
        %455 = vmatprep.subr.mxu0 0.0
        %456 = vmatpush1.msra.mxu0 0.0
        %457 = vmatprep.subr.mxu0 0.0
        %458 = vmatpush1.msra.mxu0 0.0
        %459 = vmatprep.subr.mxu0 0.0
        %460 = vmatpush1.msra.mxu0 0.0
        %461 = vmatprep.subr.mxu0 0.0
        %462 = vmatpush1.msra.mxu0 0.0
        %463 = vmatprep.subr.mxu0 0.0
        %464 = vmatpush1.msra.mxu0 %v431
        %465 = vmatprep.subr.mxu0 0.0
        %466 = vmatpush2.msra.mxu0 0.0
        %467 = vmatprep.subr.mxu0 0.0
        %468 = vmatpush2.msra.mxu0 0.0
        %469 = vmatprep.subr.mxu0 0.0
        %470 = vmatpush2.msra.mxu0 0.0
        %471 = vmatprep.subr.mxu0 0.0
        %472 = vmatpush2.msra.mxu0 0.0
        %473 = vmatprep.subr.mxu0 0.0
        %474 = vmatpush2.msra.mxu0 0.0
        %475 = vmatprep.subr.mxu0 0.0
        %476 = vmatpush2.msra.mxu0 0.0
        %477 = vmatprep.subr.mxu0 0.0
        %478 = vmatpush2.msra.mxu0 0.0
        %479 = vmatprep.subr.mxu0 0.0
        %480 = vmatpush2.msra.mxu0 0.0
        %481 = vmatprep.subr.mxu0 0.0
        %482 = vmatpush2.msra.mxu0 0.0
        %483 = vmatprep.subr.mxu0 0.0
        %484 = vmatpush2.msra.mxu0 0.0
        %485 = vmatprep.subr.mxu0 0.0
        %486 = vmatpush2.msra.mxu0 0.0
        %487 = vmatprep.subr.mxu0 0.0
        %488 = vmatpush2.msra.mxu0 0.0
        %489 = vmatprep.subr.mxu0 0.0
        %490 = vmatpush2.msra.mxu0 0.0
        %491 = vmatprep.subr.mxu0 0.0
        %492 = vmatpush2.msra.mxu0 0.0
        %493 = vmatprep.subr.mxu0 0.0
        %494 = vmatpush2.msra.mxu0 0.0
        %495 = vmatprep.subr.mxu0 0.0
        %496 = vmatpush2.msra.mxu0 0.0
        %497 = vmatprep.mubr.f32.mxu0 0.0
        %498 = vmatmul.mubr.f32.gmra.mxu0 %v365
        %v499 = vpop.f32.mrf.mxu0
        %v500 = vadd.f32 0.0, %v499
        %v501 = vpop.f32.mrf.mxu0
        %502 = vmatprep.mubr.f32.mxu0 0.0
        %503 = vmatmul.mubr.f32.gmra.mxu0 %v367
        %v504 = vpop.f32.mrf.mxu0
        %v505 = vadd.f32 0.0, %v504
        %v506 = vpop.f32.mrf.mxu0
        %507 = vmatprep.mubr.f32.mxu0 0.0
        %508 = vmatmul.mubr.f32.gmra.mxu0 %v369
        %v509 = vpop.f32.mrf.mxu0
        %v510 = vadd.f32 0.0, %v509
        %v511 = vpop.f32.mrf.mxu0
        %512 = vmatprep.mubr.f32.mxu0 0.0
        %513 = vmatmul.mubr.f32.gmra.mxu0 %v371
        %v514 = vpop.f32.mrf.mxu0
        %v515 = vadd.f32 0.0, %v514
        %v516 = vpop.f32.mrf.mxu0
        %517 = vmatprep.mubr.f32.mxu0 0.0
        %518 = vmatmul.mubr.f32.gmra.mxu0 %v373
        %v519 = vpop.f32.mrf.mxu0
        %v520 = vadd.f32 0.0, %v519
        %v521 = vpop.f32.mrf.mxu0
        %522 = vmatprep.mubr.f32.mxu0 0.0
        %523 = vmatmul.mubr.f32.gmra.mxu0 %v375
        %v524 = vpop.f32.mrf.mxu0
        %v525 = vadd.f32 0.0, %v524
        %v526 = vpop.f32.mrf.mxu0
        %527 = vmatprep.mubr.f32.mxu0 0.0
        %528 = vmatmul.mubr.f32.gmra.mxu0 %v377
        %v529 = vpop.f32.mrf.mxu0
        %v530 = vadd.f32 0.0, %v529
        %v531 = vpop.f32.mrf.mxu0
        %532 = vmatprep.mubr.f32.mxu0 0.0
        %533 = vmatmul.mubr.f32.gmra.mxu0 %v379
        %v534 = vpop.f32.mrf.mxu0
        %v535 = vadd.f32 0.0, %v534
        %v536 = vpop.f32.mrf.mxu0
        %537 = vmatprep.mubr.f32.mxu0 0.0
        %538 = vmatmul.mubr.f32.gmra.mxu0 %v381
        %v539 = vpop.f32.mrf.mxu0
        %v540 = vadd.f32 0.0, %v539
        %v541 = vpop.f32.mrf.mxu0
        %542 = vmatprep.mubr.f32.mxu0 0.0
        %543 = vmatmul.mubr.f32.gmra.mxu0 %v383
        %v544 = vpop.f32.mrf.mxu0
        %v545 = vadd.f32 0.0, %v544
        %v546 = vpop.f32.mrf.mxu0
        %547 = vmatprep.mubr.f32.mxu0 0.0
        %548 = vmatmul.mubr.f32.gmra.mxu0 %v385
        %v549 = vpop.f32.mrf.mxu0
        %v550 = vadd.f32 0.0, %v549
        %v551 = vpop.f32.mrf.mxu0
        %552 = vmatprep.mubr.f32.mxu0 0.0
        %553 = vmatmul.mubr.f32.gmra.mxu0 %v387
        %v554 = vpop.f32.mrf.mxu0
        %v555 = vadd.f32 0.0, %v554
        %v556 = vpop.f32.mrf.mxu0
        %557 = vmatprep.mubr.f32.mxu0 0.0
        %558 = vmatmul.mubr.f32.gmra.mxu0 %v389
        %v559 = vpop.f32.mrf.mxu0
        %v560 = vadd.f32 0.0, %v559
        %v561 = vpop.f32.mrf.mxu0
        %562 = vmatprep.mubr.f32.mxu0 0.0
        %563 = vmatmul.mubr.f32.gmra.mxu0 %v391
        %v564 = vpop.f32.mrf.mxu0
        %v565 = vadd.f32 0.0, %v564
        %v566 = vpop.f32.mrf.mxu0
        %567 = vmatprep.mubr.f32.mxu0 0.0
        %568 = vmatmul.mubr.f32.gmra.mxu0 %v393
        %v569 = vpop.f32.mrf.mxu0
        %v570 = vadd.f32 0.0, %v569
        %v571 = vpop.f32.mrf.mxu0
        %572 = vmatprep.mubr.f32.mxu0 0.0
        %573 = vmatmul.mubr.f32.gmra.mxu0 %v395
        %v574 = vpop.f32.mrf.mxu0
        %v575 = vadd.f32 0.0, %v574
        %v576 = vpop.f32.mrf.mxu0
        %577 = vmatprep.mubr.f32.mxu0 0.0
        %578 = vmatmul.mubr.f32.gmra.mxu0 %v397
        %v579 = vpop.f32.mrf.mxu0
        %v580 = vadd.f32 0.0, %v579
        %v581 = vpop.f32.mrf.mxu0
        %582 = vmatprep.mubr.f32.mxu0 0.0
        %583 = vmatmul.mubr.f32.gmra.mxu0 %v399
        %v584 = vpop.f32.mrf.mxu0
        %v585 = vadd.f32 0.0, %v584
        %v586 = vpop.f32.mrf.mxu0
        %587 = vmatprep.mubr.f32.mxu0 0.0
        %588 = vmatmul.mubr.f32.gmra.mxu0 %v401
        %v589 = vpop.f32.mrf.mxu0
        %v590 = vadd.f32 0.0, %v589
        %v591 = vpop.f32.mrf.mxu0
        %592 = vmatprep.mubr.f32.mxu0 0.0
        %593 = vmatmul.mubr.f32.gmra.mxu0 %v403
        %v594 = vpop.f32.mrf.mxu0
        %v595 = vadd.f32 0.0, %v594
        %v596 = vpop.f32.mrf.mxu0
        %597 = vmatprep.mubr.f32.mxu0 0.0
        %598 = vmatmul.mubr.f32.gmra.mxu0 %v405
        %v599 = vpop.f32.mrf.mxu0
        %v600 = vadd.f32 0.0, %v599
        %v601 = vpop.f32.mrf.mxu0
        %602 = vmatprep.mubr.f32.mxu0 0.0
        %603 = vmatmul.mubr.f32.gmra.mxu0 %v407
        %v604 = vpop.f32.mrf.mxu0
        %v605 = vadd.f32 0.0, %v604
        %v606 = vpop.f32.mrf.mxu0
        %607 = vmatprep.mubr.f32.mxu0 0.0
        %608 = vmatmul.mubr.f32.gmra.mxu0 %v409
        %v609 = vpop.f32.mrf.mxu0
        %v610 = vadd.f32 0.0, %v609
        %v611 = vpop.f32.mrf.mxu0
        %612 = vmatprep.mubr.f32.mxu0 0.0
        %613 = vmatmul.mubr.f32.gmra.mxu0 %v411
        %v614 = vpop.f32.mrf.mxu0
        %v615 = vadd.f32 0.0, %v614
        %v616 = vpop.f32.mrf.mxu0
        %617 = vmatprep.mubr.f32.mxu0 0.0
        %618 = vmatmul.mubr.f32.gmra.mxu0 %v413
        %v619 = vpop.f32.mrf.mxu0
        %v620 = vadd.f32 0.0, %v619
        %v621 = vpop.f32.mrf.mxu0
        %622 = vmatprep.mubr.f32.mxu0 0.0
        %623 = vmatmul.mubr.f32.gmra.mxu0 %v415
        %v624 = vpop.f32.mrf.mxu0
        %v625 = vadd.f32 0.0, %v624
        %v626 = vpop.f32.mrf.mxu0
        %627 = vmatprep.mubr.f32.mxu0 0.0
        %628 = vmatmul.mubr.f32.gmra.mxu0 %v417
        %v629 = vpop.f32.mrf.mxu0
        %v630 = vadd.f32 0.0, %v629
        %v631 = vpop.f32.mrf.mxu0
        %632 = vmatprep.mubr.f32.mxu0 0.0
        %633 = vmatmul.mubr.f32.gmra.mxu0 %v419
        %v634 = vpop.f32.mrf.mxu0
        %v635 = vadd.f32 0.0, %v634
        %v636 = vpop.f32.mrf.mxu0
        %637 = vmatprep.mubr.f32.mxu0 0.0
        %638 = vmatmul.mubr.f32.gmra.mxu0 %v421
        %v639 = vpop.f32.mrf.mxu0
        %v640 = vadd.f32 0.0, %v639
        %v641 = vpop.f32.mrf.mxu0
        %642 = vmatprep.mubr.f32.mxu0 0.0
        %643 = vmatmul.mubr.f32.gmra.mxu0 %v423
        %v644 = vpop.f32.mrf.mxu0
        %v645 = vadd.f32 0.0, %v644
        %v646 = vpop.f32.mrf.mxu0
        %647 = vmatprep.mubr.f32.mxu0 0.0
        %648 = vmatmul.mubr.f32.gmra.mxu0 %v425
        %v649 = vpop.f32.mrf.mxu0
        %v650 = vadd.f32 0.0, %v649
        %v651 = vpop.f32.mrf.mxu0
        %652 = vmatprep.mubr.f32.mxu0 0.0
        %653 = vmatmul.mubr.f32.gmra.mxu0 %v427
        %v654 = vpop.f32.mrf.mxu0
        %v655 = vadd.f32 0.0, %v654
        %v656 = vpop.f32.mrf.mxu0
        %657 = vdwg.mxu0
        %v658 = vsel %vm364, %v178, 0
        %v660 = vsel %vm364, %v179, 0
        %v662 = vsel %vm364, %v181, 0
        %v664 = vsel %vm364, %v182, 0
        %v666 = vsel %vm364, %v184, 0
        %v668 = vsel %vm364, %v185, 0
        %v670 = vsel %vm364, %v187, 0
        %v672 = vsel %vm364, %v188, 0
        %v674 = vsel %vm364, %v190, 0
        %v676 = vsel %vm364, %v191, 0
        %v678 = vsel %vm364, %v193, 0
        %v680 = vsel %vm364, %v194, 0
        %v682 = vsel %vm364, %v196, 0
        %v684 = vsel %vm364, %v197, 0
        %v686 = vsel %vm364, %v199, 0
        %v688 = vsel %vm364, %v200, 0
        %v690 = vsel %vm364, %v202, 0
        %v692 = vsel %vm364, %v203, 0
        %v694 = vsel %vm364, %v205, 0
        %v696 = vsel %vm364, %v206, 0
        %v698 = vsel %vm364, %v208, 0
        %v700 = vsel %vm364, %v209, 0
        %v702 = vsel %vm364, %v211, 0
        %v704 = vsel %vm364, %v212, 0
        %v706 = vsel %vm364, %v214, 0
        %v708 = vsel %vm364, %v215, 0
        %v710 = vsel %vm364, %v217, 0
        %v712 = vsel %vm364, %v218, 0
        %v714 = vsel %vm364, %v220, 0
        %v716 = vsel %vm364, %v221, 0
        %v718 = vsel %vm364, %v223, 0
        %v720 = vsel %vm364, %v224, 0
        %v723 = vsel %vm429, %v232, 0
        %725 = vmatprep.subr.mxu0 0.0
        %726 = vmatpush1.msra.mxu0 0.0
        %727 = vmatprep.subr.mxu0 0.0
        %728 = vmatpush1.msra.mxu0 0.0
        %729 = vmatprep.subr.mxu0 0.0
        %730 = vmatpush1.msra.mxu0 0.0
        %731 = vmatprep.subr.mxu0 0.0
        %732 = vmatpush1.msra.mxu0 0.0
        %733 = vmatprep.subr.mxu0 0.0
        %734 = vmatpush1.msra.mxu0 0.0
        %735 = vmatprep.subr.mxu0 0.0
        %736 = vmatpush1.msra.mxu0 0.0
        %737 = vmatprep.subr.mxu0 0.0
        %738 = vmatpush1.msra.mxu0 0.0
        %739 = vmatprep.subr.mxu0 0.0
        %740 = vmatpush1.msra.mxu0 0.0
        %741 = vmatprep.subr.mxu0 0.0
        %742 = vmatpush1.msra.mxu0 0.0
        %743 = vmatprep.subr.mxu0 0.0
        %744 = vmatpush1.msra.mxu0 0.0
        %745 = vmatprep.subr.mxu0 0.0
        %746 = vmatpush1.msra.mxu0 0.0
        %747 = vmatprep.subr.mxu0 0.0
        %748 = vmatpush1.msra.mxu0 0.0
        %749 = vmatprep.subr.mxu0 0.0
        %750 = vmatpush1.msra.mxu0 0.0
        %751 = vmatprep.subr.mxu0 0.0
        %752 = vmatpush1.msra.mxu0 0.0
        %753 = vmatprep.subr.mxu0 0.0
        %754 = vmatpush1.msra.mxu0 0.0
        %755 = vmatprep.subr.mxu0 0.0
        %756 = vmatpush1.msra.mxu0 %v723
        %757 = vmatprep.subr.mxu0 0.0
        %758 = vmatpush2.msra.mxu0 0.0
        %759 = vmatprep.subr.mxu0 0.0
        %760 = vmatpush2.msra.mxu0 0.0
        %761 = vmatprep.subr.mxu0 0.0
        %762 = vmatpush2.msra.mxu0 0.0
        %763 = vmatprep.subr.mxu0 0.0
        %764 = vmatpush2.msra.mxu0 0.0
        %765 = vmatprep.subr.mxu0 0.0
        %766 = vmatpush2.msra.mxu0 0.0
        %767 = vmatprep.subr.mxu0 0.0
        %768 = vmatpush2.msra.mxu0 0.0
        %769 = vmatprep.subr.mxu0 0.0
        %770 = vmatpush2.msra.mxu0 0.0
        %771 = vmatprep.subr.mxu0 0.0
        %772 = vmatpush2.msra.mxu0 0.0
        %773 = vmatprep.subr.mxu0 0.0
        %774 = vmatpush2.msra.mxu0 0.0
        %775 = vmatprep.subr.mxu0 0.0
        %776 = vmatpush2.msra.mxu0 0.0
        %777 = vmatprep.subr.mxu0 0.0
        %778 = vmatpush2.msra.mxu0 0.0
        %779 = vmatprep.subr.mxu0 0.0
        %780 = vmatpush2.msra.mxu0 0.0
        %781 = vmatprep.subr.mxu0 0.0
        %782 = vmatpush2.msra.mxu0 0.0
        %783 = vmatprep.subr.mxu0 0.0
        %784 = vmatpush2.msra.mxu0 0.0
        %785 = vmatprep.subr.mxu0 0.0
        %786 = vmatpush2.msra.mxu0 0.0
        %787 = vmatprep.subr.mxu0 0.0
        %788 = vmatpush2.msra.mxu0 0.0
        %789 = vmatprep.mubr.f32.mxu0 0.0
        %790 = vmatmul.mubr.f32.gmra.mxu0 %v658
        %v791 = vpop.f32.mrf.mxu0
        %v792 = vadd.f32 %v500, %v791
        %v793 = vpop.f32.mrf.mxu0
        %794 = vmatprep.mubr.f32.mxu0 0.0
        %795 = vmatmul.mubr.f32.gmra.mxu0 %v660
        %v796 = vpop.f32.mrf.mxu0
        %v797 = vadd.f32 %v505, %v796
        %v798 = vpop.f32.mrf.mxu0
        %799 = vmatprep.mubr.f32.mxu0 0.0
        %800 = vmatmul.mubr.f32.gmra.mxu0 %v662
        %v801 = vpop.f32.mrf.mxu0
        %v802 = vadd.f32 %v510, %v801
        %v803 = vpop.f32.mrf.mxu0
        %804 = vmatprep.mubr.f32.mxu0 0.0
        %805 = vmatmul.mubr.f32.gmra.mxu0 %v664
        %v806 = vpop.f32.mrf.mxu0
        %v807 = vadd.f32 %v515, %v806
        %v808 = vpop.f32.mrf.mxu0
        %809 = vmatprep.mubr.f32.mxu0 0.0
        %810 = vmatmul.mubr.f32.gmra.mxu0 %v666
        %v811 = vpop.f32.mrf.mxu0
        %v812 = vadd.f32 %v520, %v811
        %v813 = vpop.f32.mrf.mxu0
        %814 = vmatprep.mubr.f32.mxu0 0.0
        %815 = vmatmul.mubr.f32.gmra.mxu0 %v668
        %v816 = vpop.f32.mrf.mxu0
        %v817 = vadd.f32 %v525, %v816
        %v818 = vpop.f32.mrf.mxu0
        %819 = vmatprep.mubr.f32.mxu0 0.0
        %820 = vmatmul.mubr.f32.gmra.mxu0 %v670
        %v821 = vpop.f32.mrf.mxu0
        %v822 = vadd.f32 %v530, %v821
        %v823 = vpop.f32.mrf.mxu0
        %824 = vmatprep.mubr.f32.mxu0 0.0
        %825 = vmatmul.mubr.f32.gmra.mxu0 %v672
        %v826 = vpop.f32.mrf.mxu0
        %v827 = vadd.f32 %v535, %v826
        %v828 = vpop.f32.mrf.mxu0
        %829 = vmatprep.mubr.f32.mxu0 0.0
        %830 = vmatmul.mubr.f32.gmra.mxu0 %v674
        %v831 = vpop.f32.mrf.mxu0
        %v832 = vadd.f32 %v540, %v831
        %v833 = vpop.f32.mrf.mxu0
        %834 = vmatprep.mubr.f32.mxu0 0.0
        %835 = vmatmul.mubr.f32.gmra.mxu0 %v676
        %v836 = vpop.f32.mrf.mxu0
        %v837 = vadd.f32 %v545, %v836
        %v838 = vpop.f32.mrf.mxu0
        %839 = vmatprep.mubr.f32.mxu0 0.0
        %840 = vmatmul.mubr.f32.gmra.mxu0 %v678
        %v841 = vpop.f32.mrf.mxu0
        %v842 = vadd.f32 %v550, %v841
        %v843 = vpop.f32.mrf.mxu0
        %844 = vmatprep.mubr.f32.mxu0 0.0
        %845 = vmatmul.mubr.f32.gmra.mxu0 %v680
        %v846 = vpop.f32.mrf.mxu0
        %v847 = vadd.f32 %v555, %v846
        %v848 = vpop.f32.mrf.mxu0
        %849 = vmatprep.mubr.f32.mxu0 0.0
        %850 = vmatmul.mubr.f32.gmra.mxu0 %v682
        %v851 = vpop.f32.mrf.mxu0
        %v852 = vadd.f32 %v560, %v851
        %v853 = vpop.f32.mrf.mxu0
        %854 = vmatprep.mubr.f32.mxu0 0.0
        %855 = vmatmul.mubr.f32.gmra.mxu0 %v684
        %v856 = vpop.f32.mrf.mxu0
        %v857 = vadd.f32 %v565, %v856
        %v858 = vpop.f32.mrf.mxu0
        %859 = vmatprep.mubr.f32.mxu0 0.0
        %860 = vmatmul.mubr.f32.gmra.mxu0 %v686
        %v861 = vpop.f32.mrf.mxu0
        %v862 = vadd.f32 %v570, %v861
        %v863 = vpop.f32.mrf.mxu0
        %864 = vmatprep.mubr.f32.mxu0 0.0
        %865 = vmatmul.mubr.f32.gmra.mxu0 %v688
        %v866 = vpop.f32.mrf.mxu0
        %v867 = vadd.f32 %v575, %v866
        %v868 = vpop.f32.mrf.mxu0
        %869 = vmatprep.mubr.f32.mxu0 0.0
        %870 = vmatmul.mubr.f32.gmra.mxu0 %v690
        %v871 = vpop.f32.mrf.mxu0
        %v872 = vadd.f32 %v580, %v871
        %v873 = vpop.f32.mrf.mxu0
        %874 = vmatprep.mubr.f32.mxu0 0.0
        %875 = vmatmul.mubr.f32.gmra.mxu0 %v692
        %v876 = vpop.f32.mrf.mxu0
        %v877 = vadd.f32 %v585, %v876
        %v878 = vpop.f32.mrf.mxu0
        %879 = vmatprep.mubr.f32.mxu0 0.0
        %880 = vmatmul.mubr.f32.gmra.mxu0 %v694
        %v881 = vpop.f32.mrf.mxu0
        %v882 = vadd.f32 %v590, %v881
        %v883 = vpop.f32.mrf.mxu0
        %884 = vmatprep.mubr.f32.mxu0 0.0
        %885 = vmatmul.mubr.f32.gmra.mxu0 %v696
        %v886 = vpop.f32.mrf.mxu0
        %v887 = vadd.f32 %v595, %v886
        %v888 = vpop.f32.mrf.mxu0
        %889 = vmatprep.mubr.f32.mxu0 0.0
        %890 = vmatmul.mubr.f32.gmra.mxu0 %v698
        %v891 = vpop.f32.mrf.mxu0
        %v892 = vadd.f32 %v600, %v891
        %v893 = vpop.f32.mrf.mxu0
        %894 = vmatprep.mubr.f32.mxu0 0.0
        %895 = vmatmul.mubr.f32.gmra.mxu0 %v700
        %v896 = vpop.f32.mrf.mxu0
        %v897 = vadd.f32 %v605, %v896
        %v898 = vpop.f32.mrf.mxu0
        %899 = vmatprep.mubr.f32.mxu0 0.0
        %900 = vmatmul.mubr.f32.gmra.mxu0 %v702
        %v901 = vpop.f32.mrf.mxu0
        %v902 = vadd.f32 %v610, %v901
        %v903 = vpop.f32.mrf.mxu0
        %904 = vmatprep.mubr.f32.mxu0 0.0
        %905 = vmatmul.mubr.f32.gmra.mxu0 %v704
        %v906 = vpop.f32.mrf.mxu0
        %v907 = vadd.f32 %v615, %v906
        %v908 = vpop.f32.mrf.mxu0
        %909 = vmatprep.mubr.f32.mxu0 0.0
        %910 = vmatmul.mubr.f32.gmra.mxu0 %v706
        %v911 = vpop.f32.mrf.mxu0
        %v912 = vadd.f32 %v620, %v911
        %v913 = vpop.f32.mrf.mxu0
        %914 = vmatprep.mubr.f32.mxu0 0.0
        %915 = vmatmul.mubr.f32.gmra.mxu0 %v708
        %v916 = vpop.f32.mrf.mxu0
        %v917 = vadd.f32 %v625, %v916
        %v918 = vpop.f32.mrf.mxu0
        %919 = vmatprep.mubr.f32.mxu0 0.0
        %920 = vmatmul.mubr.f32.gmra.mxu0 %v710
        %v921 = vpop.f32.mrf.mxu0
        %v922 = vadd.f32 %v630, %v921
        %v923 = vpop.f32.mrf.mxu0
        %924 = vmatprep.mubr.f32.mxu0 0.0
        %925 = vmatmul.mubr.f32.gmra.mxu0 %v712
        %v926 = vpop.f32.mrf.mxu0
        %v927 = vadd.f32 %v635, %v926
        %v928 = vpop.f32.mrf.mxu0
        %929 = vmatprep.mubr.f32.mxu0 0.0
        %930 = vmatmul.mubr.f32.gmra.mxu0 %v714
        %v931 = vpop.f32.mrf.mxu0
        %v932 = vadd.f32 %v640, %v931
        %v933 = vpop.f32.mrf.mxu0
        %934 = vmatprep.mubr.f32.mxu0 0.0
        %935 = vmatmul.mubr.f32.gmra.mxu0 %v716
        %v936 = vpop.f32.mrf.mxu0
        %v937 = vadd.f32 %v645, %v936
        %v938 = vpop.f32.mrf.mxu0
        %939 = vmatprep.mubr.f32.mxu0 0.0
        %940 = vmatmul.mubr.f32.gmra.mxu0 %v718
        %v941 = vpop.f32.mrf.mxu0
        %v942 = vadd.f32 %v650, %v941
        %v943 = vpop.f32.mrf.mxu0
        %944 = vmatprep.mubr.f32.mxu0 0.0
        %945 = vmatmul.mubr.f32.gmra.mxu0 %v720
        %v946 = vpop.f32.mrf.mxu0
        %v947 = vadd.f32 %v655, %v946
        %v948 = vpop.f32.mrf.mxu0
        %949 = vdwg.mxu0
        %vm950 = vcmask 1045504
        %v951 = vrot.slane %v178, 2
        %v952 = vrot.slane %v179, 2
        %v953 = vsel %vm950, %v951, %v952
        %v954 = vrot.slane %v180, 2
        %v955 = vsel %vm950, %v952, %v954
        %v956 = vrot.slane %v181, 2
        %v957 = vrot.slane %v182, 2
        %v958 = vsel %vm950, %v956, %v957
        %v959 = vrot.slane %v183, 2
        %v960 = vsel %vm950, %v957, %v959
        %v961 = vrot.slane %v184, 2
        %v962 = vrot.slane %v185, 2
        %v963 = vsel %vm950, %v961, %v962
        %v964 = vrot.slane %v186, 2
        %v965 = vsel %vm950, %v962, %v964
        %v966 = vrot.slane %v187, 2
        %v967 = vrot.slane %v188, 2
        %v968 = vsel %vm950, %v966, %v967
        %v969 = vrot.slane %v189, 2
        %v970 = vsel %vm950, %v967, %v969
        %v971 = vrot.slane %v190, 2
        %v972 = vrot.slane %v191, 2
        %v973 = vsel %vm950, %v971, %v972
        %v974 = vrot.slane %v192, 2
        %v975 = vsel %vm950, %v972, %v974
        %v976 = vrot.slane %v193, 2
        %v977 = vrot.slane %v194, 2
        %v978 = vsel %vm950, %v976, %v977
        %v979 = vrot.slane %v195, 2
        %v980 = vsel %vm950, %v977, %v979
        %v981 = vrot.slane %v196, 2
        %v982 = vrot.slane %v197, 2
        %v983 = vsel %vm950, %v981, %v982
        %v984 = vrot.slane %v198, 2
        %v985 = vsel %vm950, %v982, %v984
        %v986 = vrot.slane %v199, 2
        %v987 = vrot.slane %v200, 2
        %v988 = vsel %vm950, %v986, %v987
        %v989 = vrot.slane %v201, 2
        %v990 = vsel %vm950, %v987, %v989
        %v991 = vrot.slane %v202, 2
        %v992 = vrot.slane %v203, 2
        %v993 = vsel %vm950, %v991, %v992
        %v994 = vrot.slane %v204, 2
        %v995 = vsel %vm950, %v992, %v994
        %v996 = vrot.slane %v205, 2
        %v997 = vrot.slane %v206, 2
        %v998 = vsel %vm950, %v996, %v997
        %v999 = vrot.slane %v207, 2
        %v1000 = vsel %vm950, %v997, %v999
        %v1001 = vrot.slane %v208, 2
        %v1002 = vrot.slane %v209, 2
        %v1003 = vsel %vm950, %v1001, %v1002
        %v1004 = vrot.slane %v210, 2
        %v1005 = vsel %vm950, %v1002, %v1004
        %v1006 = vrot.slane %v211, 2
        %v1007 = vrot.slane %v212, 2
        %v1008 = vsel %vm950, %v1006, %v1007
        %v1009 = vrot.slane %v213, 2
        %v1010 = vsel %vm950, %v1007, %v1009
        %v1011 = vrot.slane %v214, 2
        %v1012 = vrot.slane %v215, 2
        %v1013 = vsel %vm950, %v1011, %v1012
        %v1014 = vrot.slane %v216, 2
        %v1015 = vsel %vm950, %v1012, %v1014
        %v1016 = vrot.slane %v217, 2
        %v1017 = vrot.slane %v218, 2
        %v1018 = vsel %vm950, %v1016, %v1017
        %v1019 = vrot.slane %v219, 2
        %v1020 = vsel %vm950, %v1017, %v1019
        %v1021 = vrot.slane %v220, 2
        %v1022 = vrot.slane %v221, 2
        %v1023 = vsel %vm950, %v1021, %v1022
        %v1024 = vrot.slane %v222, 2
        %v1025 = vsel %vm950, %v1022, %v1024
        %v1026 = vrot.slane %v223, 2
        %v1027 = vrot.slane %v224, 2
        %v1028 = vsel %vm950, %v1026, %v1027
        %v1029 = vrot.slane %v225, 2
        %v1030 = vsel %vm950, %v1027, %v1029
        %s1031 = scalar_lea.vmem %s1, 8
        %v1032 = vld [vmem:[%s1031] sm:$0xf]
        %v1033 = vsel %vm364, %v953, 0
        %v1035 = vsel %vm364, %v955, 0
        %v1037 = vsel %vm364, %v958, 0
        %v1039 = vsel %vm364, %v960, 0
        %v1041 = vsel %vm364, %v963, 0
        %v1043 = vsel %vm364, %v965, 0
        %v1045 = vsel %vm364, %v968, 0
        %v1047 = vsel %vm364, %v970, 0
        %v1049 = vsel %vm364, %v973, 0
        %v1051 = vsel %vm364, %v975, 0
        %v1053 = vsel %vm364, %v978, 0
        %v1055 = vsel %vm364, %v980, 0
        %v1057 = vsel %vm364, %v983, 0
        %v1059 = vsel %vm364, %v985, 0
        %v1061 = vsel %vm364, %v988, 0
        %v1063 = vsel %vm364, %v990, 0
        %v1065 = vsel %vm364, %v993, 0
        %v1067 = vsel %vm364, %v995, 0
        %v1069 = vsel %vm364, %v998, 0
        %v1071 = vsel %vm364, %v1000, 0
        %v1073 = vsel %vm364, %v1003, 0
        %v1075 = vsel %vm364, %v1005, 0
        %v1077 = vsel %vm364, %v1008, 0
        %v1079 = vsel %vm364, %v1010, 0
        %v1081 = vsel %vm364, %v1013, 0
        %v1083 = vsel %vm364, %v1015, 0
        %v1085 = vsel %vm364, %v1018, 0
        %v1087 = vsel %vm364, %v1020, 0
        %v1089 = vsel %vm364, %v1023, 0
        %v1091 = vsel %vm364, %v1025, 0
        %v1093 = vsel %vm364, %v1028, 0
        %v1095 = vsel %vm364, %v1030, 0
        %v1098 = vsel %vm429, %v1032, 0
        %1100 = vmatprep.subr.mxu0 0.0
        %1101 = vmatpush1.msra.mxu0 0.0
        %1102 = vmatprep.subr.mxu0 0.0
        %1103 = vmatpush1.msra.mxu0 0.0
        %1104 = vmatprep.subr.mxu0 0.0
        %1105 = vmatpush1.msra.mxu0 0.0
        %1106 = vmatprep.subr.mxu0 0.0
        %1107 = vmatpush1.msra.mxu0 0.0
        %1108 = vmatprep.subr.mxu0 0.0
        %1109 = vmatpush1.msra.mxu0 0.0
        %1110 = vmatprep.subr.mxu0 0.0
        %1111 = vmatpush1.msra.mxu0 0.0
        %1112 = vmatprep.subr.mxu0 0.0
        %1113 = vmatpush1.msra.mxu0 0.0
        %1114 = vmatprep.subr.mxu0 0.0
        %1115 = vmatpush1.msra.mxu0 0.0
        %1116 = vmatprep.subr.mxu0 0.0
        %1117 = vmatpush1.msra.mxu0 0.0
        %1118 = vmatprep.subr.mxu0 0.0
        %1119 = vmatpush1.msra.mxu0 0.0
        %1120 = vmatprep.subr.mxu0 0.0
        %1121 = vmatpush1.msra.mxu0 0.0
        %1122 = vmatprep.subr.mxu0 0.0
        %1123 = vmatpush1.msra.mxu0 0.0
        %1124 = vmatprep.subr.mxu0 0.0
        %1125 = vmatpush1.msra.mxu0 0.0
        %1126 = vmatprep.subr.mxu0 0.0
        %1127 = vmatpush1.msra.mxu0 0.0
        %1128 = vmatprep.subr.mxu0 0.0
        %1129 = vmatpush1.msra.mxu0 0.0
        %1130 = vmatprep.subr.mxu0 0.0
        %1131 = vmatpush1.msra.mxu0 %v1098
        %1132 = vmatprep.subr.mxu0 0.0
        %1133 = vmatpush2.msra.mxu0 0.0
        %1134 = vmatprep.subr.mxu0 0.0
        %1135 = vmatpush2.msra.mxu0 0.0
        %1136 = vmatprep.subr.mxu0 0.0
        %1137 = vmatpush2.msra.mxu0 0.0
        %1138 = vmatprep.subr.mxu0 0.0
        %1139 = vmatpush2.msra.mxu0 0.0
        %1140 = vmatprep.subr.mxu0 0.0
        %1141 = vmatpush2.msra.mxu0 0.0
        %1142 = vmatprep.subr.mxu0 0.0
        %1143 = vmatpush2.msra.mxu0 0.0
        %1144 = vmatprep.subr.mxu0 0.0
        %1145 = vmatpush2.msra.mxu0 0.0
        %1146 = vmatprep.subr.mxu0 0.0
        %1147 = vmatpush2.msra.mxu0 0.0
        %1148 = vmatprep.subr.mxu0 0.0
        %1149 = vmatpush2.msra.mxu0 0.0
        %1150 = vmatprep.subr.mxu0 0.0
        %1151 = vmatpush2.msra.mxu0 0.0
        %1152 = vmatprep.subr.mxu0 0.0
        %1153 = vmatpush2.msra.mxu0 0.0
        %1154 = vmatprep.subr.mxu0 0.0
        %1155 = vmatpush2.msra.mxu0 0.0
        %1156 = vmatprep.subr.mxu0 0.0
        %1157 = vmatpush2.msra.mxu0 0.0
        %1158 = vmatprep.subr.mxu0 0.0
        %1159 = vmatpush2.msra.mxu0 0.0
        %1160 = vmatprep.subr.mxu0 0.0
        %1161 = vmatpush2.msra.mxu0 0.0
        %1162 = vmatprep.subr.mxu0 0.0
        %1163 = vmatpush2.msra.mxu0 0.0
        %1164 = vmatprep.mubr.f32.mxu0 0.0
        %1165 = vmatmul.mubr.f32.gmra.mxu0 %v1033
        %v1166 = vpop.f32.mrf.mxu0
        %v1167 = vadd.f32 0.0, %v1166
        %v1168 = vpop.f32.mrf.mxu0
        %1169 = vmatprep.mubr.f32.mxu0 0.0
        %1170 = vmatmul.mubr.f32.gmra.mxu0 %v1035
        %v1171 = vpop.f32.mrf.mxu0
        %v1172 = vadd.f32 0.0, %v1171
        %v1173 = vpop.f32.mrf.mxu0
        %1174 = vmatprep.mubr.f32.mxu0 0.0
        %1175 = vmatmul.mubr.f32.gmra.mxu0 %v1037
        %v1176 = vpop.f32.mrf.mxu0
        %v1177 = vadd.f32 0.0, %v1176
        %v1178 = vpop.f32.mrf.mxu0
        %1179 = vmatprep.mubr.f32.mxu0 0.0
        %1180 = vmatmul.mubr.f32.gmra.mxu0 %v1039
        %v1181 = vpop.f32.mrf.mxu0
        %v1182 = vadd.f32 0.0, %v1181
        %v1183 = vpop.f32.mrf.mxu0
        %1184 = vmatprep.mubr.f32.mxu0 0.0
        %1185 = vmatmul.mubr.f32.gmra.mxu0 %v1041
        %v1186 = vpop.f32.mrf.mxu0
        %v1187 = vadd.f32 0.0, %v1186
        %v1188 = vpop.f32.mrf.mxu0
        %1189 = vmatprep.mubr.f32.mxu0 0.0
        %1190 = vmatmul.mubr.f32.gmra.mxu0 %v1043
        %v1191 = vpop.f32.mrf.mxu0
        %v1192 = vadd.f32 0.0, %v1191
        %v1193 = vpop.f32.mrf.mxu0
        %1194 = vmatprep.mubr.f32.mxu0 0.0
        %1195 = vmatmul.mubr.f32.gmra.mxu0 %v1045
        %v1196 = vpop.f32.mrf.mxu0
        %v1197 = vadd.f32 0.0, %v1196
        %v1198 = vpop.f32.mrf.mxu0
        %1199 = vmatprep.mubr.f32.mxu0 0.0
        %1200 = vmatmul.mubr.f32.gmra.mxu0 %v1047
        %v1201 = vpop.f32.mrf.mxu0
        %v1202 = vadd.f32 0.0, %v1201
        %v1203 = vpop.f32.mrf.mxu0
        %1204 = vmatprep.mubr.f32.mxu0 0.0
        %1205 = vmatmul.mubr.f32.gmra.mxu0 %v1049
        %v1206 = vpop.f32.mrf.mxu0
        %v1207 = vadd.f32 0.0, %v1206
        %v1208 = vpop.f32.mrf.mxu0
        %1209 = vmatprep.mubr.f32.mxu0 0.0
        %1210 = vmatmul.mubr.f32.gmra.mxu0 %v1051
        %v1211 = vpop.f32.mrf.mxu0
        %v1212 = vadd.f32 0.0, %v1211
        %v1213 = vpop.f32.mrf.mxu0
        %1214 = vmatprep.mubr.f32.mxu0 0.0
        %1215 = vmatmul.mubr.f32.gmra.mxu0 %v1053
        %v1216 = vpop.f32.mrf.mxu0
        %v1217 = vadd.f32 0.0, %v1216
        %v1218 = vpop.f32.mrf.mxu0
        %1219 = vmatprep.mubr.f32.mxu0 0.0
        %1220 = vmatmul.mubr.f32.gmra.mxu0 %v1055
        %v1221 = vpop.f32.mrf.mxu0
        %v1222 = vadd.f32 0.0, %v1221
        %v1223 = vpop.f32.mrf.mxu0
        %1224 = vmatprep.mubr.f32.mxu0 0.0
        %1225 = vmatmul.mubr.f32.gmra.mxu0 %v1057
        %v1226 = vpop.f32.mrf.mxu0
        %v1227 = vadd.f32 0.0, %v1226
        %v1228 = vpop.f32.mrf.mxu0
        %1229 = vmatprep.mubr.f32.mxu0 0.0
        %1230 = vmatmul.mubr.f32.gmra.mxu0 %v1059
        %v1231 = vpop.f32.mrf.mxu0
        %v1232 = vadd.f32 0.0, %v1231
        %v1233 = vpop.f32.mrf.mxu0
        %1234 = vmatprep.mubr.f32.mxu0 0.0
        %1235 = vmatmul.mubr.f32.gmra.mxu0 %v1061
        %v1236 = vpop.f32.mrf.mxu0
        %v1237 = vadd.f32 0.0, %v1236
        %v1238 = vpop.f32.mrf.mxu0
        %1239 = vmatprep.mubr.f32.mxu0 0.0
        %1240 = vmatmul.mubr.f32.gmra.mxu0 %v1063
        %v1241 = vpop.f32.mrf.mxu0
        %v1242 = vadd.f32 0.0, %v1241
        %v1243 = vpop.f32.mrf.mxu0
        %1244 = vmatprep.mubr.f32.mxu0 0.0
        %1245 = vmatmul.mubr.f32.gmra.mxu0 %v1065
        %v1246 = vpop.f32.mrf.mxu0
        %v1247 = vadd.f32 0.0, %v1246
        %v1248 = vpop.f32.mrf.mxu0
        %1249 = vmatprep.mubr.f32.mxu0 0.0
        %1250 = vmatmul.mubr.f32.gmra.mxu0 %v1067
        %v1251 = vpop.f32.mrf.mxu0
        %v1252 = vadd.f32 0.0, %v1251
        %v1253 = vpop.f32.mrf.mxu0
        %1254 = vmatprep.mubr.f32.mxu0 0.0
        %1255 = vmatmul.mubr.f32.gmra.mxu0 %v1069
        %v1256 = vpop.f32.mrf.mxu0
        %v1257 = vadd.f32 0.0, %v1256
        %v1258 = vpop.f32.mrf.mxu0
        %1259 = vmatprep.mubr.f32.mxu0 0.0
        %1260 = vmatmul.mubr.f32.gmra.mxu0 %v1071
        %v1261 = vpop.f32.mrf.mxu0
        %v1262 = vadd.f32 0.0, %v1261
        %v1263 = vpop.f32.mrf.mxu0
        %1264 = vmatprep.mubr.f32.mxu0 0.0
        %1265 = vmatmul.mubr.f32.gmra.mxu0 %v1073
        %v1266 = vpop.f32.mrf.mxu0
        %v1267 = vadd.f32 0.0, %v1266
        %v1268 = vpop.f32.mrf.mxu0
        %1269 = vmatprep.mubr.f32.mxu0 0.0
        %1270 = vmatmul.mubr.f32.gmra.mxu0 %v1075
        %v1271 = vpop.f32.mrf.mxu0
        %v1272 = vadd.f32 0.0, %v1271
        %v1273 = vpop.f32.mrf.mxu0
        %1274 = vmatprep.mubr.f32.mxu0 0.0
        %1275 = vmatmul.mubr.f32.gmra.mxu0 %v1077
        %v1276 = vpop.f32.mrf.mxu0
        %v1277 = vadd.f32 0.0, %v1276
        %v1278 = vpop.f32.mrf.mxu0
        %1279 = vmatprep.mubr.f32.mxu0 0.0
        %1280 = vmatmul.mubr.f32.gmra.mxu0 %v1079
        %v1281 = vpop.f32.mrf.mxu0
        %v1282 = vadd.f32 0.0, %v1281
        %v1283 = vpop.f32.mrf.mxu0
        %1284 = vmatprep.mubr.f32.mxu0 0.0
        %1285 = vmatmul.mubr.f32.gmra.mxu0 %v1081
        %v1286 = vpop.f32.mrf.mxu0
        %v1287 = vadd.f32 0.0, %v1286
        %v1288 = vpop.f32.mrf.mxu0
        %1289 = vmatprep.mubr.f32.mxu0 0.0
        %1290 = vmatmul.mubr.f32.gmra.mxu0 %v1083
        %v1291 = vpop.f32.mrf.mxu0
        %v1292 = vadd.f32 0.0, %v1291
        %v1293 = vpop.f32.mrf.mxu0
        %1294 = vmatprep.mubr.f32.mxu0 0.0
        %1295 = vmatmul.mubr.f32.gmra.mxu0 %v1085
        %v1296 = vpop.f32.mrf.mxu0
        %v1297 = vadd.f32 0.0, %v1296
        %v1298 = vpop.f32.mrf.mxu0
        %1299 = vmatprep.mubr.f32.mxu0 0.0
        %1300 = vmatmul.mubr.f32.gmra.mxu0 %v1087
        %v1301 = vpop.f32.mrf.mxu0
        %v1302 = vadd.f32 0.0, %v1301
        %v1303 = vpop.f32.mrf.mxu0
        %1304 = vmatprep.mubr.f32.mxu0 0.0
        %1305 = vmatmul.mubr.f32.gmra.mxu0 %v1089
        %v1306 = vpop.f32.mrf.mxu0
        %v1307 = vadd.f32 0.0, %v1306
        %v1308 = vpop.f32.mrf.mxu0
        %1309 = vmatprep.mubr.f32.mxu0 0.0
        %1310 = vmatmul.mubr.f32.gmra.mxu0 %v1091
        %v1311 = vpop.f32.mrf.mxu0
        %v1312 = vadd.f32 0.0, %v1311
        %v1313 = vpop.f32.mrf.mxu0
        %1314 = vmatprep.mubr.f32.mxu0 0.0
        %1315 = vmatmul.mubr.f32.gmra.mxu0 %v1093
        %v1316 = vpop.f32.mrf.mxu0
        %v1317 = vadd.f32 0.0, %v1316
        %v1318 = vpop.f32.mrf.mxu0
        %1319 = vmatprep.mubr.f32.mxu0 0.0
        %1320 = vmatmul.mubr.f32.gmra.mxu0 %v1095
        %v1321 = vpop.f32.mrf.mxu0
        %v1322 = vadd.f32 0.0, %v1321
        %v1323 = vpop.f32.mrf.mxu0
        %1324 = vdwg.mxu0
        %v1325 = vadd.f32 %v792, %v1167
        %v1326 = vadd.f32 %v797, %v1172
        %v1327 = vadd.f32 %v802, %v1177
        %v1328 = vadd.f32 %v807, %v1182
        %v1329 = vadd.f32 %v812, %v1187
        %v1330 = vadd.f32 %v817, %v1192
        %v1331 = vadd.f32 %v822, %v1197
        %v1332 = vadd.f32 %v827, %v1202
        %v1333 = vadd.f32 %v832, %v1207
        %v1334 = vadd.f32 %v837, %v1212
        %v1335 = vadd.f32 %v842, %v1217
        %v1336 = vadd.f32 %v847, %v1222
        %v1337 = vadd.f32 %v852, %v1227
        %v1338 = vadd.f32 %v857, %v1232
        %v1339 = vadd.f32 %v862, %v1237
        %v1340 = vadd.f32 %v867, %v1242
        %v1341 = vadd.f32 %v872, %v1247
        %v1342 = vadd.f32 %v877, %v1252
        %v1343 = vadd.f32 %v882, %v1257
        %v1344 = vadd.f32 %v887, %v1262
        %v1345 = vadd.f32 %v892, %v1267
        %v1346 = vadd.f32 %v897, %v1272
        %v1347 = vadd.f32 %v902, %v1277
        %v1348 = vadd.f32 %v907, %v1282
        %v1349 = vadd.f32 %v912, %v1287
        %v1350 = vadd.f32 %v917, %v1292
        %v1351 = vadd.f32 %v922, %v1297
        %v1352 = vadd.f32 %v927, %v1302
        %v1353 = vadd.f32 %v932, %v1307
        %v1354 = vadd.f32 %v937, %v1312
        %v1355 = vadd.f32 %v942, %v1317
        %v1356 = vadd.f32 %v947, %v1322
        %s1357 = scalar_lea.vmem %s1, 12
        %v1358 = vld [vmem:[%s1357] sm:$0xf]
        %v1360 = vsel %vm364, %v226, 0
        %v1363 = vsel %vm364, %v227, 0
        %v1366 = vsel %vm429, %v1358, 0
        %1368 = vmatprep.subr.mxu0 0.0
        %1369 = vmatpush1.msra.mxu0 0.0
        %1370 = vmatprep.subr.mxu0 0.0
        %1371 = vmatpush1.msra.mxu0 0.0
        %1372 = vmatprep.subr.mxu0 0.0
        %1373 = vmatpush1.msra.mxu0 0.0
        %1374 = vmatprep.subr.mxu0 0.0
        %1375 = vmatpush1.msra.mxu0 0.0
        %1376 = vmatprep.subr.mxu0 0.0
        %1377 = vmatpush1.msra.mxu0 0.0
        %1378 = vmatprep.subr.mxu0 0.0
        %1379 = vmatpush1.msra.mxu0 0.0
        %1380 = vmatprep.subr.mxu0 0.0
        %1381 = vmatpush1.msra.mxu0 0.0
        %1382 = vmatprep.subr.mxu0 0.0
        %1383 = vmatpush1.msra.mxu0 0.0
        %1384 = vmatprep.subr.mxu0 0.0
        %1385 = vmatpush1.msra.mxu0 0.0
        %1386 = vmatprep.subr.mxu0 0.0
        %1387 = vmatpush1.msra.mxu0 0.0
        %1388 = vmatprep.subr.mxu0 0.0
        %1389 = vmatpush1.msra.mxu0 0.0
        %1390 = vmatprep.subr.mxu0 0.0
        %1391 = vmatpush1.msra.mxu0 0.0
        %1392 = vmatprep.subr.mxu0 0.0
        %1393 = vmatpush1.msra.mxu0 0.0
        %1394 = vmatprep.subr.mxu0 0.0
        %1395 = vmatpush1.msra.mxu0 0.0
        %1396 = vmatprep.subr.mxu0 0.0
        %1397 = vmatpush1.msra.mxu0 0.0
        %1398 = vmatprep.subr.mxu0 0.0
        %1399 = vmatpush1.msra.mxu0 %v1366
        %1400 = vmatprep.subr.mxu0 0.0
        %1401 = vmatpush2.msra.mxu0 0.0
        %1402 = vmatprep.subr.mxu0 0.0
        %1403 = vmatpush2.msra.mxu0 0.0
        %1404 = vmatprep.subr.mxu0 0.0
        %1405 = vmatpush2.msra.mxu0 0.0
        %1406 = vmatprep.subr.mxu0 0.0
        %1407 = vmatpush2.msra.mxu0 0.0
        %1408 = vmatprep.subr.mxu0 0.0
        %1409 = vmatpush2.msra.mxu0 0.0
        %1410 = vmatprep.subr.mxu0 0.0
        %1411 = vmatpush2.msra.mxu0 0.0
        %1412 = vmatprep.subr.mxu0 0.0
        %1413 = vmatpush2.msra.mxu0 0.0
        %1414 = vmatprep.subr.mxu0 0.0
        %1415 = vmatpush2.msra.mxu0 0.0
        %1416 = vmatprep.subr.mxu0 0.0
        %1417 = vmatpush2.msra.mxu0 0.0
        %1418 = vmatprep.subr.mxu0 0.0
        %1419 = vmatpush2.msra.mxu0 0.0
        %1420 = vmatprep.subr.mxu0 0.0
        %1421 = vmatpush2.msra.mxu0 0.0
        %1422 = vmatprep.subr.mxu0 0.0
        %1423 = vmatpush2.msra.mxu0 0.0
        %1424 = vmatprep.subr.mxu0 0.0
        %1425 = vmatpush2.msra.mxu0 0.0
        %1426 = vmatprep.subr.mxu0 0.0
        %1427 = vmatpush2.msra.mxu0 0.0
        %1428 = vmatprep.subr.mxu0 0.0
        %1429 = vmatpush2.msra.mxu0 0.0
        %1430 = vmatprep.subr.mxu0 0.0
        %1431 = vmatpush2.msra.mxu0 0.0
        %1432 = vmatprep.mubr.f32.mxu0 0.0
        %1433 = vmatmul.mubr.f32.gmra.mxu0 %v662
        %v1434 = vpop.f32.mrf.mxu0
        %v1435 = vadd.f32 0.0, %v1434
        %v1436 = vpop.f32.mrf.mxu0
        %1437 = vmatprep.mubr.f32.mxu0 0.0
        %1438 = vmatmul.mubr.f32.gmra.mxu0 %v664
        %v1439 = vpop.f32.mrf.mxu0
        %v1440 = vadd.f32 0.0, %v1439
        %v1441 = vpop.f32.mrf.mxu0
        %1442 = vmatprep.mubr.f32.mxu0 0.0
        %1443 = vmatmul.mubr.f32.gmra.mxu0 %v666
        %v1444 = vpop.f32.mrf.mxu0
        %v1445 = vadd.f32 0.0, %v1444
        %v1446 = vpop.f32.mrf.mxu0
        %1447 = vmatprep.mubr.f32.mxu0 0.0
        %1448 = vmatmul.mubr.f32.gmra.mxu0 %v668
        %v1449 = vpop.f32.mrf.mxu0
        %v1450 = vadd.f32 0.0, %v1449
        %v1451 = vpop.f32.mrf.mxu0
        %1452 = vmatprep.mubr.f32.mxu0 0.0
        %1453 = vmatmul.mubr.f32.gmra.mxu0 %v670
        %v1454 = vpop.f32.mrf.mxu0
        %v1455 = vadd.f32 0.0, %v1454
        %v1456 = vpop.f32.mrf.mxu0
        %1457 = vmatprep.mubr.f32.mxu0 0.0
        %1458 = vmatmul.mubr.f32.gmra.mxu0 %v672
        %v1459 = vpop.f32.mrf.mxu0
        %v1460 = vadd.f32 0.0, %v1459
        %v1461 = vpop.f32.mrf.mxu0
        %1462 = vmatprep.mubr.f32.mxu0 0.0
        %1463 = vmatmul.mubr.f32.gmra.mxu0 %v674
        %v1464 = vpop.f32.mrf.mxu0
        %v1465 = vadd.f32 0.0, %v1464
        %v1466 = vpop.f32.mrf.mxu0
        %1467 = vmatprep.mubr.f32.mxu0 0.0
        %1468 = vmatmul.mubr.f32.gmra.mxu0 %v676
        %v1469 = vpop.f32.mrf.mxu0
        %v1470 = vadd.f32 0.0, %v1469
        %v1471 = vpop.f32.mrf.mxu0
        %1472 = vmatprep.mubr.f32.mxu0 0.0
        %1473 = vmatmul.mubr.f32.gmra.mxu0 %v678
        %v1474 = vpop.f32.mrf.mxu0
        %v1475 = vadd.f32 0.0, %v1474
        %v1476 = vpop.f32.mrf.mxu0
        %1477 = vmatprep.mubr.f32.mxu0 0.0
        %1478 = vmatmul.mubr.f32.gmra.mxu0 %v680
        %v1479 = vpop.f32.mrf.mxu0
        %v1480 = vadd.f32 0.0, %v1479
        %v1481 = vpop.f32.mrf.mxu0
        %1482 = vmatprep.mubr.f32.mxu0 0.0
        %1483 = vmatmul.mubr.f32.gmra.mxu0 %v682
        %v1484 = vpop.f32.mrf.mxu0
        %v1485 = vadd.f32 0.0, %v1484
        %v1486 = vpop.f32.mrf.mxu0
        %1487 = vmatprep.mubr.f32.mxu0 0.0
        %1488 = vmatmul.mubr.f32.gmra.mxu0 %v684
        %v1489 = vpop.f32.mrf.mxu0
        %v1490 = vadd.f32 0.0, %v1489
        %v1491 = vpop.f32.mrf.mxu0
        %1492 = vmatprep.mubr.f32.mxu0 0.0
        %1493 = vmatmul.mubr.f32.gmra.mxu0 %v686
        %v1494 = vpop.f32.mrf.mxu0
        %v1495 = vadd.f32 0.0, %v1494
        %v1496 = vpop.f32.mrf.mxu0
        %1497 = vmatprep.mubr.f32.mxu0 0.0
        %1498 = vmatmul.mubr.f32.gmra.mxu0 %v688
        %v1499 = vpop.f32.mrf.mxu0
        %v1500 = vadd.f32 0.0, %v1499
        %v1501 = vpop.f32.mrf.mxu0
        %1502 = vmatprep.mubr.f32.mxu0 0.0
        %1503 = vmatmul.mubr.f32.gmra.mxu0 %v690
        %v1504 = vpop.f32.mrf.mxu0
        %v1505 = vadd.f32 0.0, %v1504
        %v1506 = vpop.f32.mrf.mxu0
        %1507 = vmatprep.mubr.f32.mxu0 0.0
        %1508 = vmatmul.mubr.f32.gmra.mxu0 %v692
        %v1509 = vpop.f32.mrf.mxu0
        %v1510 = vadd.f32 0.0, %v1509
        %v1511 = vpop.f32.mrf.mxu0
        %1512 = vmatprep.mubr.f32.mxu0 0.0
        %1513 = vmatmul.mubr.f32.gmra.mxu0 %v694
        %v1514 = vpop.f32.mrf.mxu0
        %v1515 = vadd.f32 0.0, %v1514
        %v1516 = vpop.f32.mrf.mxu0
        %1517 = vmatprep.mubr.f32.mxu0 0.0
        %1518 = vmatmul.mubr.f32.gmra.mxu0 %v696
        %v1519 = vpop.f32.mrf.mxu0
        %v1520 = vadd.f32 0.0, %v1519
        %v1521 = vpop.f32.mrf.mxu0
        %1522 = vmatprep.mubr.f32.mxu0 0.0
        %1523 = vmatmul.mubr.f32.gmra.mxu0 %v698
        %v1524 = vpop.f32.mrf.mxu0
        %v1525 = vadd.f32 0.0, %v1524
        %v1526 = vpop.f32.mrf.mxu0
        %1527 = vmatprep.mubr.f32.mxu0 0.0
        %1528 = vmatmul.mubr.f32.gmra.mxu0 %v700
        %v1529 = vpop.f32.mrf.mxu0
        %v1530 = vadd.f32 0.0, %v1529
        %v1531 = vpop.f32.mrf.mxu0
        %1532 = vmatprep.mubr.f32.mxu0 0.0
        %1533 = vmatmul.mubr.f32.gmra.mxu0 %v702
        %v1534 = vpop.f32.mrf.mxu0
        %v1535 = vadd.f32 0.0, %v1534
        %v1536 = vpop.f32.mrf.mxu0
        %1537 = vmatprep.mubr.f32.mxu0 0.0
        %1538 = vmatmul.mubr.f32.gmra.mxu0 %v704
        %v1539 = vpop.f32.mrf.mxu0
        %v1540 = vadd.f32 0.0, %v1539
        %v1541 = vpop.f32.mrf.mxu0
        %1542 = vmatprep.mubr.f32.mxu0 0.0
        %1543 = vmatmul.mubr.f32.gmra.mxu0 %v706
        %v1544 = vpop.f32.mrf.mxu0
        %v1545 = vadd.f32 0.0, %v1544
        %v1546 = vpop.f32.mrf.mxu0
        %1547 = vmatprep.mubr.f32.mxu0 0.0
        %1548 = vmatmul.mubr.f32.gmra.mxu0 %v708
        %v1549 = vpop.f32.mrf.mxu0
        %v1550 = vadd.f32 0.0, %v1549
        %v1551 = vpop.f32.mrf.mxu0
        %1552 = vmatprep.mubr.f32.mxu0 0.0
        %1553 = vmatmul.mubr.f32.gmra.mxu0 %v710
        %v1554 = vpop.f32.mrf.mxu0
        %v1555 = vadd.f32 0.0, %v1554
        %v1556 = vpop.f32.mrf.mxu0
        %1557 = vmatprep.mubr.f32.mxu0 0.0
        %1558 = vmatmul.mubr.f32.gmra.mxu0 %v712
        %v1559 = vpop.f32.mrf.mxu0
        %v1560 = vadd.f32 0.0, %v1559
        %v1561 = vpop.f32.mrf.mxu0
        %1562 = vmatprep.mubr.f32.mxu0 0.0
        %1563 = vmatmul.mubr.f32.gmra.mxu0 %v714
        %v1564 = vpop.f32.mrf.mxu0
        %v1565 = vadd.f32 0.0, %v1564
        %v1566 = vpop.f32.mrf.mxu0
        %1567 = vmatprep.mubr.f32.mxu0 0.0
        %1568 = vmatmul.mubr.f32.gmra.mxu0 %v716
        %v1569 = vpop.f32.mrf.mxu0
        %v1570 = vadd.f32 0.0, %v1569
        %v1571 = vpop.f32.mrf.mxu0
        %1572 = vmatprep.mubr.f32.mxu0 0.0
        %1573 = vmatmul.mubr.f32.gmra.mxu0 %v718
        %v1574 = vpop.f32.mrf.mxu0
        %v1575 = vadd.f32 0.0, %v1574
        %v1576 = vpop.f32.mrf.mxu0
        %1577 = vmatprep.mubr.f32.mxu0 0.0
        %1578 = vmatmul.mubr.f32.gmra.mxu0 %v720
        %v1579 = vpop.f32.mrf.mxu0
        %v1580 = vadd.f32 0.0, %v1579
        %v1581 = vpop.f32.mrf.mxu0
        %1582 = vmatprep.mubr.f32.mxu0 0.0
        %1583 = vmatmul.mubr.f32.gmra.mxu0 %v1360
        %v1584 = vpop.f32.mrf.mxu0
        %v1585 = vadd.f32 0.0, %v1584
        %v1586 = vpop.f32.mrf.mxu0
        %1587 = vmatprep.mubr.f32.mxu0 0.0
        %1588 = vmatmul.mubr.f32.gmra.mxu0 %v1363
        %v1589 = vpop.f32.mrf.mxu0
        %v1590 = vadd.f32 0.0, %v1589
        %v1591 = vpop.f32.mrf.mxu0
        %1592 = vdwg.mxu0
        %v1593 = vadd.f32 %v1325, %v1435
        %v1594 = vadd.f32 %v1326, %v1440
        %v1595 = vadd.f32 %v1327, %v1445
        %v1596 = vadd.f32 %v1328, %v1450
        %v1597 = vadd.f32 %v1329, %v1455
        %v1598 = vadd.f32 %v1330, %v1460
        %v1599 = vadd.f32 %v1331, %v1465
        %v1600 = vadd.f32 %v1332, %v1470
        %v1601 = vadd.f32 %v1333, %v1475
        %v1602 = vadd.f32 %v1334, %v1480
        %v1603 = vadd.f32 %v1335, %v1485
        %v1604 = vadd.f32 %v1336, %v1490
        %v1605 = vadd.f32 %v1337, %v1495
        %v1606 = vadd.f32 %v1338, %v1500
        %v1607 = vadd.f32 %v1339, %v1505
        %v1608 = vadd.f32 %v1340, %v1510
        %v1609 = vadd.f32 %v1341, %v1515
        %v1610 = vadd.f32 %v1342, %v1520
        %v1611 = vadd.f32 %v1343, %v1525
        %v1612 = vadd.f32 %v1344, %v1530
        %v1613 = vadd.f32 %v1345, %v1535
        %v1614 = vadd.f32 %v1346, %v1540
        %v1615 = vadd.f32 %v1347, %v1545
        %v1616 = vadd.f32 %v1348, %v1550
        %v1617 = vadd.f32 %v1349, %v1555
        %v1618 = vadd.f32 %v1350, %v1560
        %v1619 = vadd.f32 %v1351, %v1565
        %v1620 = vadd.f32 %v1352, %v1570
        %v1621 = vadd.f32 %v1353, %v1575
        %v1622 = vadd.f32 %v1354, %v1580
        %v1623 = vadd.f32 %v1355, %v1585
        %v1624 = vadd.f32 %v1356, %v1590
        %v1626 = vrot.slane %v226, 1
        %v1627 = vrot.slane %v227, 1
        %v1628 = vsel %vm281, %v1626, %v1627
        %v1629 = vrot.slane %v228, 1
        %v1630 = vsel %vm281, %v1627, %v1629
        %s1631 = scalar_lea.vmem %s1, 16
        %v1632 = vld [vmem:[%s1631] sm:$0xf]
        %v1633 = vsel %vm364, %v1628, 0
        %v1635 = vsel %vm364, %v1630, 0
        %v1638 = vsel %vm429, %v1632, 0
        %1640 = vmatprep.subr.mxu0 0.0
        %1641 = vmatpush1.msra.mxu0 0.0
        %1642 = vmatprep.subr.mxu0 0.0
        %1643 = vmatpush1.msra.mxu0 0.0
        %1644 = vmatprep.subr.mxu0 0.0
        %1645 = vmatpush1.msra.mxu0 0.0
        %1646 = vmatprep.subr.mxu0 0.0
        %1647 = vmatpush1.msra.mxu0 0.0
        %1648 = vmatprep.subr.mxu0 0.0
        %1649 = vmatpush1.msra.mxu0 0.0
        %1650 = vmatprep.subr.mxu0 0.0
        %1651 = vmatpush1.msra.mxu0 0.0
        %1652 = vmatprep.subr.mxu0 0.0
        %1653 = vmatpush1.msra.mxu0 0.0
        %1654 = vmatprep.subr.mxu0 0.0
        %1655 = vmatpush1.msra.mxu0 0.0
        %1656 = vmatprep.subr.mxu0 0.0
        %1657 = vmatpush1.msra.mxu0 0.0
        %1658 = vmatprep.subr.mxu0 0.0
        %1659 = vmatpush1.msra.mxu0 0.0
        %1660 = vmatprep.subr.mxu0 0.0
        %1661 = vmatpush1.msra.mxu0 0.0
        %1662 = vmatprep.subr.mxu0 0.0
        %1663 = vmatpush1.msra.mxu0 0.0
        %1664 = vmatprep.subr.mxu0 0.0
        %1665 = vmatpush1.msra.mxu0 0.0
        %1666 = vmatprep.subr.mxu0 0.0
        %1667 = vmatpush1.msra.mxu0 0.0
        %1668 = vmatprep.subr.mxu0 0.0
        %1669 = vmatpush1.msra.mxu0 0.0
        %1670 = vmatprep.subr.mxu0 0.0
        %1671 = vmatpush1.msra.mxu0 %v1638
        %1672 = vmatprep.subr.mxu0 0.0
        %1673 = vmatpush2.msra.mxu0 0.0
        %1674 = vmatprep.subr.mxu0 0.0
        %1675 = vmatpush2.msra.mxu0 0.0
        %1676 = vmatprep.subr.mxu0 0.0
        %1677 = vmatpush2.msra.mxu0 0.0
        %1678 = vmatprep.subr.mxu0 0.0
        %1679 = vmatpush2.msra.mxu0 0.0
        %1680 = vmatprep.subr.mxu0 0.0
        %1681 = vmatpush2.msra.mxu0 0.0
        %1682 = vmatprep.subr.mxu0 0.0
        %1683 = vmatpush2.msra.mxu0 0.0
        %1684 = vmatprep.subr.mxu0 0.0
        %1685 = vmatpush2.msra.mxu0 0.0
        %1686 = vmatprep.subr.mxu0 0.0
        %1687 = vmatpush2.msra.mxu0 0.0
        %1688 = vmatprep.subr.mxu0 0.0
        %1689 = vmatpush2.msra.mxu0 0.0
        %1690 = vmatprep.subr.mxu0 0.0
        %1691 = vmatpush2.msra.mxu0 0.0
        %1692 = vmatprep.subr.mxu0 0.0
        %1693 = vmatpush2.msra.mxu0 0.0
        %1694 = vmatprep.subr.mxu0 0.0
        %1695 = vmatpush2.msra.mxu0 0.0
        %1696 = vmatprep.subr.mxu0 0.0
        %1697 = vmatpush2.msra.mxu0 0.0
        %1698 = vmatprep.subr.mxu0 0.0
        %1699 = vmatpush2.msra.mxu0 0.0
        %1700 = vmatprep.subr.mxu0 0.0
        %1701 = vmatpush2.msra.mxu0 0.0
        %1702 = vmatprep.subr.mxu0 0.0
        %1703 = vmatpush2.msra.mxu0 0.0
        %1704 = vmatprep.mubr.f32.mxu0 0.0
        %1705 = vmatmul.mubr.f32.gmra.mxu0 %v369
        %v1706 = vpop.f32.mrf.mxu0
        %v1707 = vadd.f32 0.0, %v1706
        %v1708 = vpop.f32.mrf.mxu0
        %1709 = vmatprep.mubr.f32.mxu0 0.0
        %1710 = vmatmul.mubr.f32.gmra.mxu0 %v371
        %v1711 = vpop.f32.mrf.mxu0
        %v1712 = vadd.f32 0.0, %v1711
        %v1713 = vpop.f32.mrf.mxu0
        %1714 = vmatprep.mubr.f32.mxu0 0.0
        %1715 = vmatmul.mubr.f32.gmra.mxu0 %v373
        %v1716 = vpop.f32.mrf.mxu0
        %v1717 = vadd.f32 0.0, %v1716
        %v1718 = vpop.f32.mrf.mxu0
        %1719 = vmatprep.mubr.f32.mxu0 0.0
        %1720 = vmatmul.mubr.f32.gmra.mxu0 %v375
        %v1721 = vpop.f32.mrf.mxu0
        %v1722 = vadd.f32 0.0, %v1721
        %v1723 = vpop.f32.mrf.mxu0
        %1724 = vmatprep.mubr.f32.mxu0 0.0
        %1725 = vmatmul.mubr.f32.gmra.mxu0 %v377
        %v1726 = vpop.f32.mrf.mxu0
        %v1727 = vadd.f32 0.0, %v1726
        %v1728 = vpop.f32.mrf.mxu0
        %1729 = vmatprep.mubr.f32.mxu0 0.0
        %1730 = vmatmul.mubr.f32.gmra.mxu0 %v379
        %v1731 = vpop.f32.mrf.mxu0
        %v1732 = vadd.f32 0.0, %v1731
        %v1733 = vpop.f32.mrf.mxu0
        %1734 = vmatprep.mubr.f32.mxu0 0.0
        %1735 = vmatmul.mubr.f32.gmra.mxu0 %v381
        %v1736 = vpop.f32.mrf.mxu0
        %v1737 = vadd.f32 0.0, %v1736
        %v1738 = vpop.f32.mrf.mxu0
        %1739 = vmatprep.mubr.f32.mxu0 0.0
        %1740 = vmatmul.mubr.f32.gmra.mxu0 %v383
        %v1741 = vpop.f32.mrf.mxu0
        %v1742 = vadd.f32 0.0, %v1741
        %v1743 = vpop.f32.mrf.mxu0
        %1744 = vmatprep.mubr.f32.mxu0 0.0
        %1745 = vmatmul.mubr.f32.gmra.mxu0 %v385
        %v1746 = vpop.f32.mrf.mxu0
        %v1747 = vadd.f32 0.0, %v1746
        %v1748 = vpop.f32.mrf.mxu0
        %1749 = vmatprep.mubr.f32.mxu0 0.0
        %1750 = vmatmul.mubr.f32.gmra.mxu0 %v387
        %v1751 = vpop.f32.mrf.mxu0
        %v1752 = vadd.f32 0.0, %v1751
        %v1753 = vpop.f32.mrf.mxu0
        %1754 = vmatprep.mubr.f32.mxu0 0.0
        %1755 = vmatmul.mubr.f32.gmra.mxu0 %v389
        %v1756 = vpop.f32.mrf.mxu0
        %v1757 = vadd.f32 0.0, %v1756
        %v1758 = vpop.f32.mrf.mxu0
        %1759 = vmatprep.mubr.f32.mxu0 0.0
        %1760 = vmatmul.mubr.f32.gmra.mxu0 %v391
        %v1761 = vpop.f32.mrf.mxu0
        %v1762 = vadd.f32 0.0, %v1761
        %v1763 = vpop.f32.mrf.mxu0
        %1764 = vmatprep.mubr.f32.mxu0 0.0
        %1765 = vmatmul.mubr.f32.gmra.mxu0 %v393
        %v1766 = vpop.f32.mrf.mxu0
        %v1767 = vadd.f32 0.0, %v1766
        %v1768 = vpop.f32.mrf.mxu0
        %1769 = vmatprep.mubr.f32.mxu0 0.0
        %1770 = vmatmul.mubr.f32.gmra.mxu0 %v395
        %v1771 = vpop.f32.mrf.mxu0
        %v1772 = vadd.f32 0.0, %v1771
        %v1773 = vpop.f32.mrf.mxu0
        %1774 = vmatprep.mubr.f32.mxu0 0.0
        %1775 = vmatmul.mubr.f32.gmra.mxu0 %v397
        %v1776 = vpop.f32.mrf.mxu0
        %v1777 = vadd.f32 0.0, %v1776
        %v1778 = vpop.f32.mrf.mxu0
        %1779 = vmatprep.mubr.f32.mxu0 0.0
        %1780 = vmatmul.mubr.f32.gmra.mxu0 %v399
        %v1781 = vpop.f32.mrf.mxu0
        %v1782 = vadd.f32 0.0, %v1781
        %v1783 = vpop.f32.mrf.mxu0
        %1784 = vmatprep.mubr.f32.mxu0 0.0
        %1785 = vmatmul.mubr.f32.gmra.mxu0 %v401
        %v1786 = vpop.f32.mrf.mxu0
        %v1787 = vadd.f32 0.0, %v1786
        %v1788 = vpop.f32.mrf.mxu0
        %1789 = vmatprep.mubr.f32.mxu0 0.0
        %1790 = vmatmul.mubr.f32.gmra.mxu0 %v403
        %v1791 = vpop.f32.mrf.mxu0
        %v1792 = vadd.f32 0.0, %v1791
        %v1793 = vpop.f32.mrf.mxu0
        %1794 = vmatprep.mubr.f32.mxu0 0.0
        %1795 = vmatmul.mubr.f32.gmra.mxu0 %v405
        %v1796 = vpop.f32.mrf.mxu0
        %v1797 = vadd.f32 0.0, %v1796
        %v1798 = vpop.f32.mrf.mxu0
        %1799 = vmatprep.mubr.f32.mxu0 0.0
        %1800 = vmatmul.mubr.f32.gmra.mxu0 %v407
        %v1801 = vpop.f32.mrf.mxu0
        %v1802 = vadd.f32 0.0, %v1801
        %v1803 = vpop.f32.mrf.mxu0
        %1804 = vmatprep.mubr.f32.mxu0 0.0
        %1805 = vmatmul.mubr.f32.gmra.mxu0 %v409
        %v1806 = vpop.f32.mrf.mxu0
        %v1807 = vadd.f32 0.0, %v1806
        %v1808 = vpop.f32.mrf.mxu0
        %1809 = vmatprep.mubr.f32.mxu0 0.0
        %1810 = vmatmul.mubr.f32.gmra.mxu0 %v411
        %v1811 = vpop.f32.mrf.mxu0
        %v1812 = vadd.f32 0.0, %v1811
        %v1813 = vpop.f32.mrf.mxu0
        %1814 = vmatprep.mubr.f32.mxu0 0.0
        %1815 = vmatmul.mubr.f32.gmra.mxu0 %v413
        %v1816 = vpop.f32.mrf.mxu0
        %v1817 = vadd.f32 0.0, %v1816
        %v1818 = vpop.f32.mrf.mxu0
        %1819 = vmatprep.mubr.f32.mxu0 0.0
        %1820 = vmatmul.mubr.f32.gmra.mxu0 %v415
        %v1821 = vpop.f32.mrf.mxu0
        %v1822 = vadd.f32 0.0, %v1821
        %v1823 = vpop.f32.mrf.mxu0
        %1824 = vmatprep.mubr.f32.mxu0 0.0
        %1825 = vmatmul.mubr.f32.gmra.mxu0 %v417
        %v1826 = vpop.f32.mrf.mxu0
        %v1827 = vadd.f32 0.0, %v1826
        %v1828 = vpop.f32.mrf.mxu0
        %1829 = vmatprep.mubr.f32.mxu0 0.0
        %1830 = vmatmul.mubr.f32.gmra.mxu0 %v419
        %v1831 = vpop.f32.mrf.mxu0
        %v1832 = vadd.f32 0.0, %v1831
        %v1833 = vpop.f32.mrf.mxu0
        %1834 = vmatprep.mubr.f32.mxu0 0.0
        %1835 = vmatmul.mubr.f32.gmra.mxu0 %v421
        %v1836 = vpop.f32.mrf.mxu0
        %v1837 = vadd.f32 0.0, %v1836
        %v1838 = vpop.f32.mrf.mxu0
        %1839 = vmatprep.mubr.f32.mxu0 0.0
        %1840 = vmatmul.mubr.f32.gmra.mxu0 %v423
        %v1841 = vpop.f32.mrf.mxu0
        %v1842 = vadd.f32 0.0, %v1841
        %v1843 = vpop.f32.mrf.mxu0
        %1844 = vmatprep.mubr.f32.mxu0 0.0
        %1845 = vmatmul.mubr.f32.gmra.mxu0 %v425
        %v1846 = vpop.f32.mrf.mxu0
        %v1847 = vadd.f32 0.0, %v1846
        %v1848 = vpop.f32.mrf.mxu0
        %1849 = vmatprep.mubr.f32.mxu0 0.0
        %1850 = vmatmul.mubr.f32.gmra.mxu0 %v427
        %v1851 = vpop.f32.mrf.mxu0
        %v1852 = vadd.f32 0.0, %v1851
        %v1853 = vpop.f32.mrf.mxu0
        %1854 = vmatprep.mubr.f32.mxu0 0.0
        %1855 = vmatmul.mubr.f32.gmra.mxu0 %v1633
        %v1856 = vpop.f32.mrf.mxu0
        %v1857 = vadd.f32 0.0, %v1856
        %v1858 = vpop.f32.mrf.mxu0
        %1859 = vmatprep.mubr.f32.mxu0 0.0
        %1860 = vmatmul.mubr.f32.gmra.mxu0 %v1635
        %v1861 = vpop.f32.mrf.mxu0
        %v1862 = vadd.f32 0.0, %v1861
        %v1863 = vpop.f32.mrf.mxu0
        %1864 = vdwg.mxu0
        %v1865 = vadd.f32 %v1593, %v1707
        %v1866 = vadd.f32 %v1594, %v1712
        %v1867 = vadd.f32 %v1595, %v1717
        %v1868 = vadd.f32 %v1596, %v1722
        %v1869 = vadd.f32 %v1597, %v1727
        %v1870 = vadd.f32 %v1598, %v1732
        %v1871 = vadd.f32 %v1599, %v1737
        %v1872 = vadd.f32 %v1600, %v1742
        %v1873 = vadd.f32 %v1601, %v1747
        %v1874 = vadd.f32 %v1602, %v1752
        %v1875 = vadd.f32 %v1603, %v1757
        %v1876 = vadd.f32 %v1604, %v1762
        %v1877 = vadd.f32 %v1605, %v1767
        %v1878 = vadd.f32 %v1606, %v1772
        %v1879 = vadd.f32 %v1607, %v1777
        %v1880 = vadd.f32 %v1608, %v1782
        %v1881 = vadd.f32 %v1609, %v1787
        %v1882 = vadd.f32 %v1610, %v1792
        %v1883 = vadd.f32 %v1611, %v1797
        %v1884 = vadd.f32 %v1612, %v1802
        %v1885 = vadd.f32 %v1613, %v1807
        %v1886 = vadd.f32 %v1614, %v1812
        %v1887 = vadd.f32 %v1615, %v1817
        %v1888 = vadd.f32 %v1616, %v1822
        %v1889 = vadd.f32 %v1617, %v1827
        %v1890 = vadd.f32 %v1618, %v1832
        %v1891 = vadd.f32 %v1619, %v1837
        %v1892 = vadd.f32 %v1620, %v1842
        %v1893 = vadd.f32 %v1621, %v1847
        %v1894 = vadd.f32 %v1622, %v1852
        %v1895 = vadd.f32 %v1623, %v1857
        %v1896 = vadd.f32 %v1624, %v1862
        %v1897 = vrot.slane %v226, 2
        %v1898 = vrot.slane %v227, 2
        %v1899 = vsel %vm950, %v1897, %v1898
        %v1900 = vrot.slane %v228, 2
        %v1901 = vsel %vm950, %v1898, %v1900
        %s1902 = scalar_lea.vmem %s1, 20
        %v1903 = vld [vmem:[%s1902] sm:$0xf]
        %v1904 = vsel %vm364, %v1899, 0
        %v1906 = vsel %vm364, %v1901, 0
        %v1909 = vsel %vm429, %v1903, 0
        %1911 = vmatprep.subr.mxu0 0.0
        %1912 = vmatpush1.msra.mxu0 0.0
        %1913 = vmatprep.subr.mxu0 0.0
        %1914 = vmatpush1.msra.mxu0 0.0
        %1915 = vmatprep.subr.mxu0 0.0
        %1916 = vmatpush1.msra.mxu0 0.0
        %1917 = vmatprep.subr.mxu0 0.0
        %1918 = vmatpush1.msra.mxu0 0.0
        %1919 = vmatprep.subr.mxu0 0.0
        %1920 = vmatpush1.msra.mxu0 0.0
        %1921 = vmatprep.subr.mxu0 0.0
        %1922 = vmatpush1.msra.mxu0 0.0
        %1923 = vmatprep.subr.mxu0 0.0
        %1924 = vmatpush1.msra.mxu0 0.0
        %1925 = vmatprep.subr.mxu0 0.0
        %1926 = vmatpush1.msra.mxu0 0.0
        %1927 = vmatprep.subr.mxu0 0.0
        %1928 = vmatpush1.msra.mxu0 0.0
        %1929 = vmatprep.subr.mxu0 0.0
        %1930 = vmatpush1.msra.mxu0 0.0
        %1931 = vmatprep.subr.mxu0 0.0
        %1932 = vmatpush1.msra.mxu0 0.0
        %1933 = vmatprep.subr.mxu0 0.0
        %1934 = vmatpush1.msra.mxu0 0.0
        %1935 = vmatprep.subr.mxu0 0.0
        %1936 = vmatpush1.msra.mxu0 0.0
        %1937 = vmatprep.subr.mxu0 0.0
        %1938 = vmatpush1.msra.mxu0 0.0
        %1939 = vmatprep.subr.mxu0 0.0
        %1940 = vmatpush1.msra.mxu0 0.0
        %1941 = vmatprep.subr.mxu0 0.0
        %1942 = vmatpush1.msra.mxu0 %v1909
        %1943 = vmatprep.subr.mxu0 0.0
        %1944 = vmatpush2.msra.mxu0 0.0
        %1945 = vmatprep.subr.mxu0 0.0
        %1946 = vmatpush2.msra.mxu0 0.0
        %1947 = vmatprep.subr.mxu0 0.0
        %1948 = vmatpush2.msra.mxu0 0.0
        %1949 = vmatprep.subr.mxu0 0.0
        %1950 = vmatpush2.msra.mxu0 0.0
        %1951 = vmatprep.subr.mxu0 0.0
        %1952 = vmatpush2.msra.mxu0 0.0
        %1953 = vmatprep.subr.mxu0 0.0
        %1954 = vmatpush2.msra.mxu0 0.0
        %1955 = vmatprep.subr.mxu0 0.0
        %1956 = vmatpush2.msra.mxu0 0.0
        %1957 = vmatprep.subr.mxu0 0.0
        %1958 = vmatpush2.msra.mxu0 0.0
        %1959 = vmatprep.subr.mxu0 0.0
        %1960 = vmatpush2.msra.mxu0 0.0
        %1961 = vmatprep.subr.mxu0 0.0
        %1962 = vmatpush2.msra.mxu0 0.0
        %1963 = vmatprep.subr.mxu0 0.0
        %1964 = vmatpush2.msra.mxu0 0.0
        %1965 = vmatprep.subr.mxu0 0.0
        %1966 = vmatpush2.msra.mxu0 0.0
        %1967 = vmatprep.subr.mxu0 0.0
        %1968 = vmatpush2.msra.mxu0 0.0
        %1969 = vmatprep.subr.mxu0 0.0
        %1970 = vmatpush2.msra.mxu0 0.0
        %1971 = vmatprep.subr.mxu0 0.0
        %1972 = vmatpush2.msra.mxu0 0.0
        %1973 = vmatprep.subr.mxu0 0.0
        %1974 = vmatpush2.msra.mxu0 0.0
        %1975 = vmatprep.mubr.f32.mxu0 0.0
        %1976 = vmatmul.mubr.f32.gmra.mxu0 %v1037
        %v1977 = vpop.f32.mrf.mxu0
        %v1978 = vadd.f32 0.0, %v1977
        %v1979 = vpop.f32.mrf.mxu0
        %1980 = vmatprep.mubr.f32.mxu0 0.0
        %1981 = vmatmul.mubr.f32.gmra.mxu0 %v1039
        %v1982 = vpop.f32.mrf.mxu0
        %v1983 = vadd.f32 0.0, %v1982
        %v1984 = vpop.f32.mrf.mxu0
        %1985 = vmatprep.mubr.f32.mxu0 0.0
        %1986 = vmatmul.mubr.f32.gmra.mxu0 %v1041
        %v1987 = vpop.f32.mrf.mxu0
        %v1988 = vadd.f32 0.0, %v1987
        %v1989 = vpop.f32.mrf.mxu0
        %1990 = vmatprep.mubr.f32.mxu0 0.0
        %1991 = vmatmul.mubr.f32.gmra.mxu0 %v1043
        %v1992 = vpop.f32.mrf.mxu0
        %v1993 = vadd.f32 0.0, %v1992
        %v1994 = vpop.f32.mrf.mxu0
        %1995 = vmatprep.mubr.f32.mxu0 0.0
        %1996 = vmatmul.mubr.f32.gmra.mxu0 %v1045
        %v1997 = vpop.f32.mrf.mxu0
        %v1998 = vadd.f32 0.0, %v1997
        %v1999 = vpop.f32.mrf.mxu0
        %2000 = vmatprep.mubr.f32.mxu0 0.0
        %2001 = vmatmul.mubr.f32.gmra.mxu0 %v1047
        %v2002 = vpop.f32.mrf.mxu0
        %v2003 = vadd.f32 0.0, %v2002
        %v2004 = vpop.f32.mrf.mxu0
        %2005 = vmatprep.mubr.f32.mxu0 0.0
        %2006 = vmatmul.mubr.f32.gmra.mxu0 %v1049
        %v2007 = vpop.f32.mrf.mxu0
        %v2008 = vadd.f32 0.0, %v2007
        %v2009 = vpop.f32.mrf.mxu0
        %2010 = vmatprep.mubr.f32.mxu0 0.0
        %2011 = vmatmul.mubr.f32.gmra.mxu0 %v1051
        %v2012 = vpop.f32.mrf.mxu0
        %v2013 = vadd.f32 0.0, %v2012
        %v2014 = vpop.f32.mrf.mxu0
        %2015 = vmatprep.mubr.f32.mxu0 0.0
        %2016 = vmatmul.mubr.f32.gmra.mxu0 %v1053
        %v2017 = vpop.f32.mrf.mxu0
        %v2018 = vadd.f32 0.0, %v2017
        %v2019 = vpop.f32.mrf.mxu0
        %2020 = vmatprep.mubr.f32.mxu0 0.0
        %2021 = vmatmul.mubr.f32.gmra.mxu0 %v1055
        %v2022 = vpop.f32.mrf.mxu0
        %v2023 = vadd.f32 0.0, %v2022
        %v2024 = vpop.f32.mrf.mxu0
        %2025 = vmatprep.mubr.f32.mxu0 0.0
        %2026 = vmatmul.mubr.f32.gmra.mxu0 %v1057
        %v2027 = vpop.f32.mrf.mxu0
        %v2028 = vadd.f32 0.0, %v2027
        %v2029 = vpop.f32.mrf.mxu0
        %2030 = vmatprep.mubr.f32.mxu0 0.0
        %2031 = vmatmul.mubr.f32.gmra.mxu0 %v1059
        %v2032 = vpop.f32.mrf.mxu0
        %v2033 = vadd.f32 0.0, %v2032
        %v2034 = vpop.f32.mrf.mxu0
        %2035 = vmatprep.mubr.f32.mxu0 0.0
        %2036 = vmatmul.mubr.f32.gmra.mxu0 %v1061
        %v2037 = vpop.f32.mrf.mxu0
        %v2038 = vadd.f32 0.0, %v2037
        %v2039 = vpop.f32.mrf.mxu0
        %2040 = vmatprep.mubr.f32.mxu0 0.0
        %2041 = vmatmul.mubr.f32.gmra.mxu0 %v1063
        %v2042 = vpop.f32.mrf.mxu0
        %v2043 = vadd.f32 0.0, %v2042
        %v2044 = vpop.f32.mrf.mxu0
        %2045 = vmatprep.mubr.f32.mxu0 0.0
        %2046 = vmatmul.mubr.f32.gmra.mxu0 %v1065
        %v2047 = vpop.f32.mrf.mxu0
        %v2048 = vadd.f32 0.0, %v2047
        %v2049 = vpop.f32.mrf.mxu0
        %2050 = vmatprep.mubr.f32.mxu0 0.0
        %2051 = vmatmul.mubr.f32.gmra.mxu0 %v1067
        %v2052 = vpop.f32.mrf.mxu0
        %v2053 = vadd.f32 0.0, %v2052
        %v2054 = vpop.f32.mrf.mxu0
        %2055 = vmatprep.mubr.f32.mxu0 0.0
        %2056 = vmatmul.mubr.f32.gmra.mxu0 %v1069
        %v2057 = vpop.f32.mrf.mxu0
        %v2058 = vadd.f32 0.0, %v2057
        %v2059 = vpop.f32.mrf.mxu0
        %2060 = vmatprep.mubr.f32.mxu0 0.0
        %2061 = vmatmul.mubr.f32.gmra.mxu0 %v1071
        %v2062 = vpop.f32.mrf.mxu0
        %v2063 = vadd.f32 0.0, %v2062
        %v2064 = vpop.f32.mrf.mxu0
        %2065 = vmatprep.mubr.f32.mxu0 0.0
        %2066 = vmatmul.mubr.f32.gmra.mxu0 %v1073
        %v2067 = vpop.f32.mrf.mxu0
        %v2068 = vadd.f32 0.0, %v2067
        %v2069 = vpop.f32.mrf.mxu0
        %2070 = vmatprep.mubr.f32.mxu0 0.0
        %2071 = vmatmul.mubr.f32.gmra.mxu0 %v1075
        %v2072 = vpop.f32.mrf.mxu0
        %v2073 = vadd.f32 0.0, %v2072
        %v2074 = vpop.f32.mrf.mxu0
        %2075 = vmatprep.mubr.f32.mxu0 0.0
        %2076 = vmatmul.mubr.f32.gmra.mxu0 %v1077
        %v2077 = vpop.f32.mrf.mxu0
        %v2078 = vadd.f32 0.0, %v2077
        %v2079 = vpop.f32.mrf.mxu0
        %2080 = vmatprep.mubr.f32.mxu0 0.0
        %2081 = vmatmul.mubr.f32.gmra.mxu0 %v1079
        %v2082 = vpop.f32.mrf.mxu0
        %v2083 = vadd.f32 0.0, %v2082
        %v2084 = vpop.f32.mrf.mxu0
        %2085 = vmatprep.mubr.f32.mxu0 0.0
        %2086 = vmatmul.mubr.f32.gmra.mxu0 %v1081
        %v2087 = vpop.f32.mrf.mxu0
        %v2088 = vadd.f32 0.0, %v2087
        %v2089 = vpop.f32.mrf.mxu0
        %2090 = vmatprep.mubr.f32.mxu0 0.0
        %2091 = vmatmul.mubr.f32.gmra.mxu0 %v1083
        %v2092 = vpop.f32.mrf.mxu0
        %v2093 = vadd.f32 0.0, %v2092
        %v2094 = vpop.f32.mrf.mxu0
        %2095 = vmatprep.mubr.f32.mxu0 0.0
        %2096 = vmatmul.mubr.f32.gmra.mxu0 %v1085
        %v2097 = vpop.f32.mrf.mxu0
        %v2098 = vadd.f32 0.0, %v2097
        %v2099 = vpop.f32.mrf.mxu0
        %2100 = vmatprep.mubr.f32.mxu0 0.0
        %2101 = vmatmul.mubr.f32.gmra.mxu0 %v1087
        %v2102 = vpop.f32.mrf.mxu0
        %v2103 = vadd.f32 0.0, %v2102
        %v2104 = vpop.f32.mrf.mxu0
        %2105 = vmatprep.mubr.f32.mxu0 0.0
        %2106 = vmatmul.mubr.f32.gmra.mxu0 %v1089
        %v2107 = vpop.f32.mrf.mxu0
        %v2108 = vadd.f32 0.0, %v2107
        %v2109 = vpop.f32.mrf.mxu0
        %2110 = vmatprep.mubr.f32.mxu0 0.0
        %2111 = vmatmul.mubr.f32.gmra.mxu0 %v1091
        %v2112 = vpop.f32.mrf.mxu0
        %v2113 = vadd.f32 0.0, %v2112
        %v2114 = vpop.f32.mrf.mxu0
        %2115 = vmatprep.mubr.f32.mxu0 0.0
        %2116 = vmatmul.mubr.f32.gmra.mxu0 %v1093
        %v2117 = vpop.f32.mrf.mxu0
        %v2118 = vadd.f32 0.0, %v2117
        %v2119 = vpop.f32.mrf.mxu0
        %2120 = vmatprep.mubr.f32.mxu0 0.0
        %2121 = vmatmul.mubr.f32.gmra.mxu0 %v1095
        %v2122 = vpop.f32.mrf.mxu0
        %v2123 = vadd.f32 0.0, %v2122
        %v2124 = vpop.f32.mrf.mxu0
        %2125 = vmatprep.mubr.f32.mxu0 0.0
        %2126 = vmatmul.mubr.f32.gmra.mxu0 %v1904
        %v2127 = vpop.f32.mrf.mxu0
        %v2128 = vadd.f32 0.0, %v2127
        %v2129 = vpop.f32.mrf.mxu0
        %2130 = vmatprep.mubr.f32.mxu0 0.0
        %2131 = vmatmul.mubr.f32.gmra.mxu0 %v1906
        %v2132 = vpop.f32.mrf.mxu0
        %v2133 = vadd.f32 0.0, %v2132
        %v2134 = vpop.f32.mrf.mxu0
        %2135 = vdwg.mxu0
        %v2136 = vadd.f32 %v1865, %v1978
        %v2137 = vadd.f32 %v1866, %v1983
        %v2138 = vadd.f32 %v1867, %v1988
        %v2139 = vadd.f32 %v1868, %v1993
        %v2140 = vadd.f32 %v1869, %v1998
        %v2141 = vadd.f32 %v1870, %v2003
        %v2142 = vadd.f32 %v1871, %v2008
        %v2143 = vadd.f32 %v1872, %v2013
        %v2144 = vadd.f32 %v1873, %v2018
        %v2145 = vadd.f32 %v1874, %v2023
        %v2146 = vadd.f32 %v1875, %v2028
        %v2147 = vadd.f32 %v1876, %v2033
        %v2148 = vadd.f32 %v1877, %v2038
        %v2149 = vadd.f32 %v1878, %v2043
        %v2150 = vadd.f32 %v1879, %v2048
        %v2151 = vadd.f32 %v1880, %v2053
        %v2152 = vadd.f32 %v1881, %v2058
        %v2153 = vadd.f32 %v1882, %v2063
        %v2154 = vadd.f32 %v1883, %v2068
        %v2155 = vadd.f32 %v1884, %v2073
        %v2156 = vadd.f32 %v1885, %v2078
        %v2157 = vadd.f32 %v1886, %v2083
        %v2158 = vadd.f32 %v1887, %v2088
        %v2159 = vadd.f32 %v1888, %v2093
        %v2160 = vadd.f32 %v1889, %v2098
        %v2161 = vadd.f32 %v1890, %v2103
        %v2162 = vadd.f32 %v1891, %v2108
        %v2163 = vadd.f32 %v1892, %v2113
        %v2164 = vadd.f32 %v1893, %v2118
        %v2165 = vadd.f32 %v1894, %v2123
        %v2166 = vadd.f32 %v1895, %v2128
        %v2167 = vadd.f32 %v1896, %v2133
        %s2168 = scalar_lea.vmem %s1, 24
        %v2169 = vld [vmem:[%s2168] sm:$0xf]
        %v2171 = vsel %vm364, %v229, 0
        %v2174 = vsel %vm364, %v230, 0
        %v2177 = vsel %vm429, %v2169, 0
        %2179 = vmatprep.subr.mxu0 0.0
        %2180 = vmatpush1.msra.mxu0 0.0
        %2181 = vmatprep.subr.mxu0 0.0
        %2182 = vmatpush1.msra.mxu0 0.0
        %2183 = vmatprep.subr.mxu0 0.0
        %2184 = vmatpush1.msra.mxu0 0.0
        %2185 = vmatprep.subr.mxu0 0.0
        %2186 = vmatpush1.msra.mxu0 0.0
        %2187 = vmatprep.subr.mxu0 0.0
        %2188 = vmatpush1.msra.mxu0 0.0
        %2189 = vmatprep.subr.mxu0 0.0
        %2190 = vmatpush1.msra.mxu0 0.0
        %2191 = vmatprep.subr.mxu0 0.0
        %2192 = vmatpush1.msra.mxu0 0.0
        %2193 = vmatprep.subr.mxu0 0.0
        %2194 = vmatpush1.msra.mxu0 0.0
        %2195 = vmatprep.subr.mxu0 0.0
        %2196 = vmatpush1.msra.mxu0 0.0
        %2197 = vmatprep.subr.mxu0 0.0
        %2198 = vmatpush1.msra.mxu0 0.0
        %2199 = vmatprep.subr.mxu0 0.0
        %2200 = vmatpush1.msra.mxu0 0.0
        %2201 = vmatprep.subr.mxu0 0.0
        %2202 = vmatpush1.msra.mxu0 0.0
        %2203 = vmatprep.subr.mxu0 0.0
        %2204 = vmatpush1.msra.mxu0 0.0
        %2205 = vmatprep.subr.mxu0 0.0
        %2206 = vmatpush1.msra.mxu0 0.0
        %2207 = vmatprep.subr.mxu0 0.0
        %2208 = vmatpush1.msra.mxu0 0.0
        %2209 = vmatprep.subr.mxu0 0.0
        %2210 = vmatpush1.msra.mxu0 %v2177
        %2211 = vmatprep.subr.mxu0 0.0
        %2212 = vmatpush2.msra.mxu0 0.0
        %2213 = vmatprep.subr.mxu0 0.0
        %2214 = vmatpush2.msra.mxu0 0.0
        %2215 = vmatprep.subr.mxu0 0.0
        %2216 = vmatpush2.msra.mxu0 0.0
        %2217 = vmatprep.subr.mxu0 0.0
        %2218 = vmatpush2.msra.mxu0 0.0
        %2219 = vmatprep.subr.mxu0 0.0
        %2220 = vmatpush2.msra.mxu0 0.0
        %2221 = vmatprep.subr.mxu0 0.0
        %2222 = vmatpush2.msra.mxu0 0.0
        %2223 = vmatprep.subr.mxu0 0.0
        %2224 = vmatpush2.msra.mxu0 0.0
        %2225 = vmatprep.subr.mxu0 0.0
        %2226 = vmatpush2.msra.mxu0 0.0
        %2227 = vmatprep.subr.mxu0 0.0
        %2228 = vmatpush2.msra.mxu0 0.0
        %2229 = vmatprep.subr.mxu0 0.0
        %2230 = vmatpush2.msra.mxu0 0.0
        %2231 = vmatprep.subr.mxu0 0.0
        %2232 = vmatpush2.msra.mxu0 0.0
        %2233 = vmatprep.subr.mxu0 0.0
        %2234 = vmatpush2.msra.mxu0 0.0
        %2235 = vmatprep.subr.mxu0 0.0
        %2236 = vmatpush2.msra.mxu0 0.0
        %2237 = vmatprep.subr.mxu0 0.0
        %2238 = vmatpush2.msra.mxu0 0.0
        %2239 = vmatprep.subr.mxu0 0.0
        %2240 = vmatpush2.msra.mxu0 0.0
        %2241 = vmatprep.subr.mxu0 0.0
        %2242 = vmatpush2.msra.mxu0 0.0
        %2243 = vmatprep.mubr.f32.mxu0 0.0
        %2244 = vmatmul.mubr.f32.gmra.mxu0 %v666
        %v2245 = vpop.f32.mrf.mxu0
        %v2246 = vadd.f32 0.0, %v2245
        %v2247 = vpop.f32.mrf.mxu0
        %2248 = vmatprep.mubr.f32.mxu0 0.0
        %2249 = vmatmul.mubr.f32.gmra.mxu0 %v668
        %v2250 = vpop.f32.mrf.mxu0
        %v2251 = vadd.f32 0.0, %v2250
        %v2252 = vpop.f32.mrf.mxu0
        %2253 = vmatprep.mubr.f32.mxu0 0.0
        %2254 = vmatmul.mubr.f32.gmra.mxu0 %v670
        %v2255 = vpop.f32.mrf.mxu0
        %v2256 = vadd.f32 0.0, %v2255
        %v2257 = vpop.f32.mrf.mxu0
        %2258 = vmatprep.mubr.f32.mxu0 0.0
        %2259 = vmatmul.mubr.f32.gmra.mxu0 %v672
        %v2260 = vpop.f32.mrf.mxu0
        %v2261 = vadd.f32 0.0, %v2260
        %v2262 = vpop.f32.mrf.mxu0
        %2263 = vmatprep.mubr.f32.mxu0 0.0
        %2264 = vmatmul.mubr.f32.gmra.mxu0 %v674
        %v2265 = vpop.f32.mrf.mxu0
        %v2266 = vadd.f32 0.0, %v2265
        %v2267 = vpop.f32.mrf.mxu0
        %2268 = vmatprep.mubr.f32.mxu0 0.0
        %2269 = vmatmul.mubr.f32.gmra.mxu0 %v676
        %v2270 = vpop.f32.mrf.mxu0
        %v2271 = vadd.f32 0.0, %v2270
        %v2272 = vpop.f32.mrf.mxu0
        %2273 = vmatprep.mubr.f32.mxu0 0.0
        %2274 = vmatmul.mubr.f32.gmra.mxu0 %v678
        %v2275 = vpop.f32.mrf.mxu0
        %v2276 = vadd.f32 0.0, %v2275
        %v2277 = vpop.f32.mrf.mxu0
        %2278 = vmatprep.mubr.f32.mxu0 0.0
        %2279 = vmatmul.mubr.f32.gmra.mxu0 %v680
        %v2280 = vpop.f32.mrf.mxu0
        %v2281 = vadd.f32 0.0, %v2280
        %v2282 = vpop.f32.mrf.mxu0
        %2283 = vmatprep.mubr.f32.mxu0 0.0
        %2284 = vmatmul.mubr.f32.gmra.mxu0 %v682
        %v2285 = vpop.f32.mrf.mxu0
        %v2286 = vadd.f32 0.0, %v2285
        %v2287 = vpop.f32.mrf.mxu0
        %2288 = vmatprep.mubr.f32.mxu0 0.0
        %2289 = vmatmul.mubr.f32.gmra.mxu0 %v684
        %v2290 = vpop.f32.mrf.mxu0
        %v2291 = vadd.f32 0.0, %v2290
        %v2292 = vpop.f32.mrf.mxu0
        %2293 = vmatprep.mubr.f32.mxu0 0.0
        %2294 = vmatmul.mubr.f32.gmra.mxu0 %v686
        %v2295 = vpop.f32.mrf.mxu0
        %v2296 = vadd.f32 0.0, %v2295
        %v2297 = vpop.f32.mrf.mxu0
        %2298 = vmatprep.mubr.f32.mxu0 0.0
        %2299 = vmatmul.mubr.f32.gmra.mxu0 %v688
        %v2300 = vpop.f32.mrf.mxu0
        %v2301 = vadd.f32 0.0, %v2300
        %v2302 = vpop.f32.mrf.mxu0
        %2303 = vmatprep.mubr.f32.mxu0 0.0
        %2304 = vmatmul.mubr.f32.gmra.mxu0 %v690
        %v2305 = vpop.f32.mrf.mxu0
        %v2306 = vadd.f32 0.0, %v2305
        %v2307 = vpop.f32.mrf.mxu0
        %2308 = vmatprep.mubr.f32.mxu0 0.0
        %2309 = vmatmul.mubr.f32.gmra.mxu0 %v692
        %v2310 = vpop.f32.mrf.mxu0
        %v2311 = vadd.f32 0.0, %v2310
        %v2312 = vpop.f32.mrf.mxu0
        %2313 = vmatprep.mubr.f32.mxu0 0.0
        %2314 = vmatmul.mubr.f32.gmra.mxu0 %v694
        %v2315 = vpop.f32.mrf.mxu0
        %v2316 = vadd.f32 0.0, %v2315
        %v2317 = vpop.f32.mrf.mxu0
        %2318 = vmatprep.mubr.f32.mxu0 0.0
        %2319 = vmatmul.mubr.f32.gmra.mxu0 %v696
        %v2320 = vpop.f32.mrf.mxu0
        %v2321 = vadd.f32 0.0, %v2320
        %v2322 = vpop.f32.mrf.mxu0
        %2323 = vmatprep.mubr.f32.mxu0 0.0
        %2324 = vmatmul.mubr.f32.gmra.mxu0 %v698
        %v2325 = vpop.f32.mrf.mxu0
        %v2326 = vadd.f32 0.0, %v2325
        %v2327 = vpop.f32.mrf.mxu0
        %2328 = vmatprep.mubr.f32.mxu0 0.0
        %2329 = vmatmul.mubr.f32.gmra.mxu0 %v700
        %v2330 = vpop.f32.mrf.mxu0
        %v2331 = vadd.f32 0.0, %v2330
        %v2332 = vpop.f32.mrf.mxu0
        %2333 = vmatprep.mubr.f32.mxu0 0.0
        %2334 = vmatmul.mubr.f32.gmra.mxu0 %v702
        %v2335 = vpop.f32.mrf.mxu0
        %v2336 = vadd.f32 0.0, %v2335
        %v2337 = vpop.f32.mrf.mxu0
        %2338 = vmatprep.mubr.f32.mxu0 0.0
        %2339 = vmatmul.mubr.f32.gmra.mxu0 %v704
        %v2340 = vpop.f32.mrf.mxu0
        %v2341 = vadd.f32 0.0, %v2340
        %v2342 = vpop.f32.mrf.mxu0
        %2343 = vmatprep.mubr.f32.mxu0 0.0
        %2344 = vmatmul.mubr.f32.gmra.mxu0 %v706
        %v2345 = vpop.f32.mrf.mxu0
        %v2346 = vadd.f32 0.0, %v2345
        %v2347 = vpop.f32.mrf.mxu0
        %2348 = vmatprep.mubr.f32.mxu0 0.0
        %2349 = vmatmul.mubr.f32.gmra.mxu0 %v708
        %v2350 = vpop.f32.mrf.mxu0
        %v2351 = vadd.f32 0.0, %v2350
        %v2352 = vpop.f32.mrf.mxu0
        %2353 = vmatprep.mubr.f32.mxu0 0.0
        %2354 = vmatmul.mubr.f32.gmra.mxu0 %v710
        %v2355 = vpop.f32.mrf.mxu0
        %v2356 = vadd.f32 0.0, %v2355
        %v2357 = vpop.f32.mrf.mxu0
        %2358 = vmatprep.mubr.f32.mxu0 0.0
        %2359 = vmatmul.mubr.f32.gmra.mxu0 %v712
        %v2360 = vpop.f32.mrf.mxu0
        %v2361 = vadd.f32 0.0, %v2360
        %v2362 = vpop.f32.mrf.mxu0
        %2363 = vmatprep.mubr.f32.mxu0 0.0
        %2364 = vmatmul.mubr.f32.gmra.mxu0 %v714
        %v2365 = vpop.f32.mrf.mxu0
        %v2366 = vadd.f32 0.0, %v2365
        %v2367 = vpop.f32.mrf.mxu0
        %2368 = vmatprep.mubr.f32.mxu0 0.0
        %2369 = vmatmul.mubr.f32.gmra.mxu0 %v716
        %v2370 = vpop.f32.mrf.mxu0
        %v2371 = vadd.f32 0.0, %v2370
        %v2372 = vpop.f32.mrf.mxu0
        %2373 = vmatprep.mubr.f32.mxu0 0.0
        %2374 = vmatmul.mubr.f32.gmra.mxu0 %v718
        %v2375 = vpop.f32.mrf.mxu0
        %v2376 = vadd.f32 0.0, %v2375
        %v2377 = vpop.f32.mrf.mxu0
        %2378 = vmatprep.mubr.f32.mxu0 0.0
        %2379 = vmatmul.mubr.f32.gmra.mxu0 %v720
        %v2380 = vpop.f32.mrf.mxu0
        %v2381 = vadd.f32 0.0, %v2380
        %v2382 = vpop.f32.mrf.mxu0
        %2383 = vmatprep.mubr.f32.mxu0 0.0
        %2384 = vmatmul.mubr.f32.gmra.mxu0 %v1360
        %v2385 = vpop.f32.mrf.mxu0
        %v2386 = vadd.f32 0.0, %v2385
        %v2387 = vpop.f32.mrf.mxu0
        %2388 = vmatprep.mubr.f32.mxu0 0.0
        %2389 = vmatmul.mubr.f32.gmra.mxu0 %v1363
        %v2390 = vpop.f32.mrf.mxu0
        %v2391 = vadd.f32 0.0, %v2390
        %v2392 = vpop.f32.mrf.mxu0
        %2393 = vmatprep.mubr.f32.mxu0 0.0
        %2394 = vmatmul.mubr.f32.gmra.mxu0 %v2171
        %v2395 = vpop.f32.mrf.mxu0
        %v2396 = vadd.f32 0.0, %v2395
        %v2397 = vpop.f32.mrf.mxu0
        %2398 = vmatprep.mubr.f32.mxu0 0.0
        %2399 = vmatmul.mubr.f32.gmra.mxu0 %v2174
        %v2400 = vpop.f32.mrf.mxu0
        %v2401 = vadd.f32 0.0, %v2400
        %v2402 = vpop.f32.mrf.mxu0
        %2403 = vdwg.mxu0
        %v2404 = vadd.f32 %v2136, %v2246
        %v2405 = vadd.f32 %v2137, %v2251
        %v2406 = vadd.f32 %v2138, %v2256
        %v2407 = vadd.f32 %v2139, %v2261
        %v2408 = vadd.f32 %v2140, %v2266
        %v2409 = vadd.f32 %v2141, %v2271
        %v2410 = vadd.f32 %v2142, %v2276
        %v2411 = vadd.f32 %v2143, %v2281
        %v2412 = vadd.f32 %v2144, %v2286
        %v2413 = vadd.f32 %v2145, %v2291
        %v2414 = vadd.f32 %v2146, %v2296
        %v2415 = vadd.f32 %v2147, %v2301
        %v2416 = vadd.f32 %v2148, %v2306
        %v2417 = vadd.f32 %v2149, %v2311
        %v2418 = vadd.f32 %v2150, %v2316
        %v2419 = vadd.f32 %v2151, %v2321
        %v2420 = vadd.f32 %v2152, %v2326
        %v2421 = vadd.f32 %v2153, %v2331
        %v2422 = vadd.f32 %v2154, %v2336
        %v2423 = vadd.f32 %v2155, %v2341
        %v2424 = vadd.f32 %v2156, %v2346
        %v2425 = vadd.f32 %v2157, %v2351
        %v2426 = vadd.f32 %v2158, %v2356
        %v2427 = vadd.f32 %v2159, %v2361
        %v2428 = vadd.f32 %v2160, %v2366
        %v2429 = vadd.f32 %v2161, %v2371
        %v2430 = vadd.f32 %v2162, %v2376
        %v2431 = vadd.f32 %v2163, %v2381
        %v2432 = vadd.f32 %v2164, %v2386
        %v2433 = vadd.f32 %v2165, %v2391
        %v2434 = vadd.f32 %v2166, %v2396
        %v2435 = vadd.f32 %v2167, %v2401
        %v2437 = vrot.slane %v229, 1
        %v2438 = vrot.slane %v230, 1
        %v2439 = vsel %vm281, %v2437, %v2438
        %v2440 = vrot.slane %v231, 1
        %v2441 = vsel %vm281, %v2438, %v2440
        %s2442 = scalar_lea.vmem %s1, 28
        %v2443 = vld [vmem:[%s2442] sm:$0xf]
        %v2444 = vsel %vm364, %v2439, 0
        %v2446 = vsel %vm364, %v2441, 0
        %v2449 = vsel %vm429, %v2443, 0
        %2451 = vmatprep.subr.mxu0 0.0
        %2452 = vmatpush1.msra.mxu0 0.0
        %2453 = vmatprep.subr.mxu0 0.0
        %2454 = vmatpush1.msra.mxu0 0.0
        %2455 = vmatprep.subr.mxu0 0.0
        %2456 = vmatpush1.msra.mxu0 0.0
        %2457 = vmatprep.subr.mxu0 0.0
        %2458 = vmatpush1.msra.mxu0 0.0
        %2459 = vmatprep.subr.mxu0 0.0
        %2460 = vmatpush1.msra.mxu0 0.0
        %2461 = vmatprep.subr.mxu0 0.0
        %2462 = vmatpush1.msra.mxu0 0.0
        %2463 = vmatprep.subr.mxu0 0.0
        %2464 = vmatpush1.msra.mxu0 0.0
        %2465 = vmatprep.subr.mxu0 0.0
        %2466 = vmatpush1.msra.mxu0 0.0
        %2467 = vmatprep.subr.mxu0 0.0
        %2468 = vmatpush1.msra.mxu0 0.0
        %2469 = vmatprep.subr.mxu0 0.0
        %2470 = vmatpush1.msra.mxu0 0.0
        %2471 = vmatprep.subr.mxu0 0.0
        %2472 = vmatpush1.msra.mxu0 0.0
        %2473 = vmatprep.subr.mxu0 0.0
        %2474 = vmatpush1.msra.mxu0 0.0
        %2475 = vmatprep.subr.mxu0 0.0
        %2476 = vmatpush1.msra.mxu0 0.0
        %2477 = vmatprep.subr.mxu0 0.0
        %2478 = vmatpush1.msra.mxu0 0.0
        %2479 = vmatprep.subr.mxu0 0.0
        %2480 = vmatpush1.msra.mxu0 0.0
        %2481 = vmatprep.subr.mxu0 0.0
        %2482 = vmatpush1.msra.mxu0 %v2449
        %2483 = vmatprep.subr.mxu0 0.0
        %2484 = vmatpush2.msra.mxu0 0.0
        %2485 = vmatprep.subr.mxu0 0.0
        %2486 = vmatpush2.msra.mxu0 0.0
        %2487 = vmatprep.subr.mxu0 0.0
        %2488 = vmatpush2.msra.mxu0 0.0
        %2489 = vmatprep.subr.mxu0 0.0
        %2490 = vmatpush2.msra.mxu0 0.0
        %2491 = vmatprep.subr.mxu0 0.0
        %2492 = vmatpush2.msra.mxu0 0.0
        %2493 = vmatprep.subr.mxu0 0.0
        %2494 = vmatpush2.msra.mxu0 0.0
        %2495 = vmatprep.subr.mxu0 0.0
        %2496 = vmatpush2.msra.mxu0 0.0
        %2497 = vmatprep.subr.mxu0 0.0
        %2498 = vmatpush2.msra.mxu0 0.0
        %2499 = vmatprep.subr.mxu0 0.0
        %2500 = vmatpush2.msra.mxu0 0.0
        %2501 = vmatprep.subr.mxu0 0.0
        %2502 = vmatpush2.msra.mxu0 0.0
        %2503 = vmatprep.subr.mxu0 0.0
        %2504 = vmatpush2.msra.mxu0 0.0
        %2505 = vmatprep.subr.mxu0 0.0
        %2506 = vmatpush2.msra.mxu0 0.0
        %2507 = vmatprep.subr.mxu0 0.0
        %2508 = vmatpush2.msra.mxu0 0.0
        %2509 = vmatprep.subr.mxu0 0.0
        %2510 = vmatpush2.msra.mxu0 0.0
        %2511 = vmatprep.subr.mxu0 0.0
        %2512 = vmatpush2.msra.mxu0 0.0
        %2513 = vmatprep.subr.mxu0 0.0
        %2514 = vmatpush2.msra.mxu0 0.0
        %2515 = vmatprep.mubr.f32.mxu0 0.0
        %2516 = vmatmul.mubr.f32.gmra.mxu0 %v373
        %v2517 = vpop.f32.mrf.mxu0
        %v2518 = vadd.f32 0.0, %v2517
        %v2519 = vpop.f32.mrf.mxu0
        %2520 = vmatprep.mubr.f32.mxu0 0.0
        %2521 = vmatmul.mubr.f32.gmra.mxu0 %v375
        %v2522 = vpop.f32.mrf.mxu0
        %v2523 = vadd.f32 0.0, %v2522
        %v2524 = vpop.f32.mrf.mxu0
        %2525 = vmatprep.mubr.f32.mxu0 0.0
        %2526 = vmatmul.mubr.f32.gmra.mxu0 %v377
        %v2527 = vpop.f32.mrf.mxu0
        %v2528 = vadd.f32 0.0, %v2527
        %v2529 = vpop.f32.mrf.mxu0
        %2530 = vmatprep.mubr.f32.mxu0 0.0
        %2531 = vmatmul.mubr.f32.gmra.mxu0 %v379
        %v2532 = vpop.f32.mrf.mxu0
        %v2533 = vadd.f32 0.0, %v2532
        %v2534 = vpop.f32.mrf.mxu0
        %2535 = vmatprep.mubr.f32.mxu0 0.0
        %2536 = vmatmul.mubr.f32.gmra.mxu0 %v381
        %v2537 = vpop.f32.mrf.mxu0
        %v2538 = vadd.f32 0.0, %v2537
        %v2539 = vpop.f32.mrf.mxu0
        %2540 = vmatprep.mubr.f32.mxu0 0.0
        %2541 = vmatmul.mubr.f32.gmra.mxu0 %v383
        %v2542 = vpop.f32.mrf.mxu0
        %v2543 = vadd.f32 0.0, %v2542
        %v2544 = vpop.f32.mrf.mxu0
        %2545 = vmatprep.mubr.f32.mxu0 0.0
        %2546 = vmatmul.mubr.f32.gmra.mxu0 %v385
        %v2547 = vpop.f32.mrf.mxu0
        %v2548 = vadd.f32 0.0, %v2547
        %v2549 = vpop.f32.mrf.mxu0
        %2550 = vmatprep.mubr.f32.mxu0 0.0
        %2551 = vmatmul.mubr.f32.gmra.mxu0 %v387
        %v2552 = vpop.f32.mrf.mxu0
        %v2553 = vadd.f32 0.0, %v2552
        %v2554 = vpop.f32.mrf.mxu0
        %2555 = vmatprep.mubr.f32.mxu0 0.0
        %2556 = vmatmul.mubr.f32.gmra.mxu0 %v389
        %v2557 = vpop.f32.mrf.mxu0
        %v2558 = vadd.f32 0.0, %v2557
        %v2559 = vpop.f32.mrf.mxu0
        %2560 = vmatprep.mubr.f32.mxu0 0.0
        %2561 = vmatmul.mubr.f32.gmra.mxu0 %v391
        %v2562 = vpop.f32.mrf.mxu0
        %v2563 = vadd.f32 0.0, %v2562
        %v2564 = vpop.f32.mrf.mxu0
        %2565 = vmatprep.mubr.f32.mxu0 0.0
        %2566 = vmatmul.mubr.f32.gmra.mxu0 %v393
        %v2567 = vpop.f32.mrf.mxu0
        %v2568 = vadd.f32 0.0, %v2567
        %v2569 = vpop.f32.mrf.mxu0
        %2570 = vmatprep.mubr.f32.mxu0 0.0
        %2571 = vmatmul.mubr.f32.gmra.mxu0 %v395
        %v2572 = vpop.f32.mrf.mxu0
        %v2573 = vadd.f32 0.0, %v2572
        %v2574 = vpop.f32.mrf.mxu0
        %2575 = vmatprep.mubr.f32.mxu0 0.0
        %2576 = vmatmul.mubr.f32.gmra.mxu0 %v397
        %v2577 = vpop.f32.mrf.mxu0
        %v2578 = vadd.f32 0.0, %v2577
        %v2579 = vpop.f32.mrf.mxu0
        %2580 = vmatprep.mubr.f32.mxu0 0.0
        %2581 = vmatmul.mubr.f32.gmra.mxu0 %v399
        %v2582 = vpop.f32.mrf.mxu0
        %v2583 = vadd.f32 0.0, %v2582
        %v2584 = vpop.f32.mrf.mxu0
        %2585 = vmatprep.mubr.f32.mxu0 0.0
        %2586 = vmatmul.mubr.f32.gmra.mxu0 %v401
        %v2587 = vpop.f32.mrf.mxu0
        %v2588 = vadd.f32 0.0, %v2587
        %v2589 = vpop.f32.mrf.mxu0
        %2590 = vmatprep.mubr.f32.mxu0 0.0
        %2591 = vmatmul.mubr.f32.gmra.mxu0 %v403
        %v2592 = vpop.f32.mrf.mxu0
        %v2593 = vadd.f32 0.0, %v2592
        %v2594 = vpop.f32.mrf.mxu0
        %2595 = vmatprep.mubr.f32.mxu0 0.0
        %2596 = vmatmul.mubr.f32.gmra.mxu0 %v405
        %v2597 = vpop.f32.mrf.mxu0
        %v2598 = vadd.f32 0.0, %v2597
        %v2599 = vpop.f32.mrf.mxu0
        %2600 = vmatprep.mubr.f32.mxu0 0.0
        %2601 = vmatmul.mubr.f32.gmra.mxu0 %v407
        %v2602 = vpop.f32.mrf.mxu0
        %v2603 = vadd.f32 0.0, %v2602
        %v2604 = vpop.f32.mrf.mxu0
        %2605 = vmatprep.mubr.f32.mxu0 0.0
        %2606 = vmatmul.mubr.f32.gmra.mxu0 %v409
        %v2607 = vpop.f32.mrf.mxu0
        %v2608 = vadd.f32 0.0, %v2607
        %v2609 = vpop.f32.mrf.mxu0
        %2610 = vmatprep.mubr.f32.mxu0 0.0
        %2611 = vmatmul.mubr.f32.gmra.mxu0 %v411
        %v2612 = vpop.f32.mrf.mxu0
        %v2613 = vadd.f32 0.0, %v2612
        %v2614 = vpop.f32.mrf.mxu0
        %2615 = vmatprep.mubr.f32.mxu0 0.0
        %2616 = vmatmul.mubr.f32.gmra.mxu0 %v413
        %v2617 = vpop.f32.mrf.mxu0
        %v2618 = vadd.f32 0.0, %v2617
        %v2619 = vpop.f32.mrf.mxu0
        %2620 = vmatprep.mubr.f32.mxu0 0.0
        %2621 = vmatmul.mubr.f32.gmra.mxu0 %v415
        %v2622 = vpop.f32.mrf.mxu0
        %v2623 = vadd.f32 0.0, %v2622
        %v2624 = vpop.f32.mrf.mxu0
        %2625 = vmatprep.mubr.f32.mxu0 0.0
        %2626 = vmatmul.mubr.f32.gmra.mxu0 %v417
        %v2627 = vpop.f32.mrf.mxu0
        %v2628 = vadd.f32 0.0, %v2627
        %v2629 = vpop.f32.mrf.mxu0
        %2630 = vmatprep.mubr.f32.mxu0 0.0
        %2631 = vmatmul.mubr.f32.gmra.mxu0 %v419
        %v2632 = vpop.f32.mrf.mxu0
        %v2633 = vadd.f32 0.0, %v2632
        %v2634 = vpop.f32.mrf.mxu0
        %2635 = vmatprep.mubr.f32.mxu0 0.0
        %2636 = vmatmul.mubr.f32.gmra.mxu0 %v421
        %v2637 = vpop.f32.mrf.mxu0
        %v2638 = vadd.f32 0.0, %v2637
        %v2639 = vpop.f32.mrf.mxu0
        %2640 = vmatprep.mubr.f32.mxu0 0.0
        %2641 = vmatmul.mubr.f32.gmra.mxu0 %v423
        %v2642 = vpop.f32.mrf.mxu0
        %v2643 = vadd.f32 0.0, %v2642
        %v2644 = vpop.f32.mrf.mxu0
        %2645 = vmatprep.mubr.f32.mxu0 0.0
        %2646 = vmatmul.mubr.f32.gmra.mxu0 %v425
        %v2647 = vpop.f32.mrf.mxu0
        %v2648 = vadd.f32 0.0, %v2647
        %v2649 = vpop.f32.mrf.mxu0
        %2650 = vmatprep.mubr.f32.mxu0 0.0
        %2651 = vmatmul.mubr.f32.gmra.mxu0 %v427
        %v2652 = vpop.f32.mrf.mxu0
        %v2653 = vadd.f32 0.0, %v2652
        %v2654 = vpop.f32.mrf.mxu0
        %2655 = vmatprep.mubr.f32.mxu0 0.0
        %2656 = vmatmul.mubr.f32.gmra.mxu0 %v1633
        %v2657 = vpop.f32.mrf.mxu0
        %v2658 = vadd.f32 0.0, %v2657
        %v2659 = vpop.f32.mrf.mxu0
        %2660 = vmatprep.mubr.f32.mxu0 0.0
        %2661 = vmatmul.mubr.f32.gmra.mxu0 %v1635
        %v2662 = vpop.f32.mrf.mxu0
        %v2663 = vadd.f32 0.0, %v2662
        %v2664 = vpop.f32.mrf.mxu0
        %2665 = vmatprep.mubr.f32.mxu0 0.0
        %2666 = vmatmul.mubr.f32.gmra.mxu0 %v2444
        %v2667 = vpop.f32.mrf.mxu0
        %v2668 = vadd.f32 0.0, %v2667
        %v2669 = vpop.f32.mrf.mxu0
        %2670 = vmatprep.mubr.f32.mxu0 0.0
        %2671 = vmatmul.mubr.f32.gmra.mxu0 %v2446
        %v2672 = vpop.f32.mrf.mxu0
        %v2673 = vadd.f32 0.0, %v2672
        %v2674 = vpop.f32.mrf.mxu0
        %2675 = vdwg.mxu0
        %v2676 = vadd.f32 %v2404, %v2518
        %v2677 = vadd.f32 %v2405, %v2523
        %v2678 = vadd.f32 %v2406, %v2528
        %v2679 = vadd.f32 %v2407, %v2533
        %v2680 = vadd.f32 %v2408, %v2538
        %v2681 = vadd.f32 %v2409, %v2543
        %v2682 = vadd.f32 %v2410, %v2548
        %v2683 = vadd.f32 %v2411, %v2553
        %v2684 = vadd.f32 %v2412, %v2558
        %v2685 = vadd.f32 %v2413, %v2563
        %v2686 = vadd.f32 %v2414, %v2568
        %v2687 = vadd.f32 %v2415, %v2573
        %v2688 = vadd.f32 %v2416, %v2578
        %v2689 = vadd.f32 %v2417, %v2583
        %v2690 = vadd.f32 %v2418, %v2588
        %v2691 = vadd.f32 %v2419, %v2593
        %v2692 = vadd.f32 %v2420, %v2598
        %v2693 = vadd.f32 %v2421, %v2603
        %v2694 = vadd.f32 %v2422, %v2608
        %v2695 = vadd.f32 %v2423, %v2613
        %v2696 = vadd.f32 %v2424, %v2618
        %v2697 = vadd.f32 %v2425, %v2623
        %v2698 = vadd.f32 %v2426, %v2628
        %v2699 = vadd.f32 %v2427, %v2633
        %v2700 = vadd.f32 %v2428, %v2638
        %v2701 = vadd.f32 %v2429, %v2643
        %v2702 = vadd.f32 %v2430, %v2648
        %v2703 = vadd.f32 %v2431, %v2653
        %v2704 = vadd.f32 %v2432, %v2658
        %v2705 = vadd.f32 %v2433, %v2663
        %v2706 = vadd.f32 %v2434, %v2668
        %v2707 = vadd.f32 %v2435, %v2673
        %v2708 = vrot.slane %v229, 2
        %v2709 = vrot.slane %v230, 2
        %v2710 = vsel %vm950, %v2708, %v2709
        %v2711 = vrot.slane %v231, 2
        %v2712 = vsel %vm950, %v2709, %v2711
        %s2713 = scalar_lea.vmem %s1, 32
        %v2714 = vld [vmem:[%s2713] sm:$0xf]
        %v2715 = vsel %vm364, %v2710, 0
        %v2717 = vsel %vm364, %v2712, 0
        %v2720 = vsel %vm429, %v2714, 0
        %2722 = vmatprep.subr.mxu0 0.0
        %2723 = vmatpush1.msra.mxu0 0.0
        %2724 = vmatprep.subr.mxu0 0.0
        %2725 = vmatpush1.msra.mxu0 0.0
        %2726 = vmatprep.subr.mxu0 0.0
        %2727 = vmatpush1.msra.mxu0 0.0
        %2728 = vmatprep.subr.mxu0 0.0
        %2729 = vmatpush1.msra.mxu0 0.0
        %2730 = vmatprep.subr.mxu0 0.0
        %2731 = vmatpush1.msra.mxu0 0.0
        %2732 = vmatprep.subr.mxu0 0.0
        %2733 = vmatpush1.msra.mxu0 0.0
        %2734 = vmatprep.subr.mxu0 0.0
        %2735 = vmatpush1.msra.mxu0 0.0
        %2736 = vmatprep.subr.mxu0 0.0
        %2737 = vmatpush1.msra.mxu0 0.0
        %2738 = vmatprep.subr.mxu0 0.0
        %2739 = vmatpush1.msra.mxu0 0.0
        %2740 = vmatprep.subr.mxu0 0.0
        %2741 = vmatpush1.msra.mxu0 0.0
        %2742 = vmatprep.subr.mxu0 0.0
        %2743 = vmatpush1.msra.mxu0 0.0
        %2744 = vmatprep.subr.mxu0 0.0
        %2745 = vmatpush1.msra.mxu0 0.0
        %2746 = vmatprep.subr.mxu0 0.0
        %2747 = vmatpush1.msra.mxu0 0.0
        %2748 = vmatprep.subr.mxu0 0.0
        %2749 = vmatpush1.msra.mxu0 0.0
        %2750 = vmatprep.subr.mxu0 0.0
        %2751 = vmatpush1.msra.mxu0 0.0
        %2752 = vmatprep.subr.mxu0 0.0
        %2753 = vmatpush1.msra.mxu0 %v2720
        %2754 = vmatprep.subr.mxu0 0.0
        %2755 = vmatpush2.msra.mxu0 0.0
        %2756 = vmatprep.subr.mxu0 0.0
        %2757 = vmatpush2.msra.mxu0 0.0
        %2758 = vmatprep.subr.mxu0 0.0
        %2759 = vmatpush2.msra.mxu0 0.0
        %2760 = vmatprep.subr.mxu0 0.0
        %2761 = vmatpush2.msra.mxu0 0.0
        %2762 = vmatprep.subr.mxu0 0.0
        %2763 = vmatpush2.msra.mxu0 0.0
        %2764 = vmatprep.subr.mxu0 0.0
        %2765 = vmatpush2.msra.mxu0 0.0
        %2766 = vmatprep.subr.mxu0 0.0
        %2767 = vmatpush2.msra.mxu0 0.0
        %2768 = vmatprep.subr.mxu0 0.0
        %2769 = vmatpush2.msra.mxu0 0.0
        %2770 = vmatprep.subr.mxu0 0.0
        %2771 = vmatpush2.msra.mxu0 0.0
        %2772 = vmatprep.subr.mxu0 0.0
        %2773 = vmatpush2.msra.mxu0 0.0
        %2774 = vmatprep.subr.mxu0 0.0
        %2775 = vmatpush2.msra.mxu0 0.0
        %2776 = vmatprep.subr.mxu0 0.0
        %2777 = vmatpush2.msra.mxu0 0.0
        %2778 = vmatprep.subr.mxu0 0.0
        %2779 = vmatpush2.msra.mxu0 0.0
        %2780 = vmatprep.subr.mxu0 0.0
        %2781 = vmatpush2.msra.mxu0 0.0
        %2782 = vmatprep.subr.mxu0 0.0
        %2783 = vmatpush2.msra.mxu0 0.0
        %2784 = vmatprep.subr.mxu0 0.0
        %2785 = vmatpush2.msra.mxu0 0.0
        %2786 = vmatprep.mubr.f32.mxu0 0.0
        %2787 = vmatmul.mubr.f32.gmra.mxu0 %v1041
        %v2788 = vpop.f32.mrf.mxu0
        %v2789 = vadd.f32 0.0, %v2788
        %v2790 = vpop.f32.mrf.mxu0
        %2791 = vmatprep.mubr.f32.mxu0 0.0
        %2792 = vmatmul.mubr.f32.gmra.mxu0 %v1043
        %v2793 = vpop.f32.mrf.mxu0
        %v2794 = vadd.f32 0.0, %v2793
        %v2795 = vpop.f32.mrf.mxu0
        %2796 = vmatprep.mubr.f32.mxu0 0.0
        %2797 = vmatmul.mubr.f32.gmra.mxu0 %v1045
        %v2798 = vpop.f32.mrf.mxu0
        %v2799 = vadd.f32 0.0, %v2798
        %v2800 = vpop.f32.mrf.mxu0
        %2801 = vmatprep.mubr.f32.mxu0 0.0
        %2802 = vmatmul.mubr.f32.gmra.mxu0 %v1047
        %v2803 = vpop.f32.mrf.mxu0
        %v2804 = vadd.f32 0.0, %v2803
        %v2805 = vpop.f32.mrf.mxu0
        %2806 = vmatprep.mubr.f32.mxu0 0.0
        %2807 = vmatmul.mubr.f32.gmra.mxu0 %v1049
        %v2808 = vpop.f32.mrf.mxu0
        %v2809 = vadd.f32 0.0, %v2808
        %v2810 = vpop.f32.mrf.mxu0
        %2811 = vmatprep.mubr.f32.mxu0 0.0
        %2812 = vmatmul.mubr.f32.gmra.mxu0 %v1051
        %v2813 = vpop.f32.mrf.mxu0
        %v2814 = vadd.f32 0.0, %v2813
        %v2815 = vpop.f32.mrf.mxu0
        %2816 = vmatprep.mubr.f32.mxu0 0.0
        %2817 = vmatmul.mubr.f32.gmra.mxu0 %v1053
        %v2818 = vpop.f32.mrf.mxu0
        %v2819 = vadd.f32 0.0, %v2818
        %v2820 = vpop.f32.mrf.mxu0
        %2821 = vmatprep.mubr.f32.mxu0 0.0
        %2822 = vmatmul.mubr.f32.gmra.mxu0 %v1055
        %v2823 = vpop.f32.mrf.mxu0
        %v2824 = vadd.f32 0.0, %v2823
        %v2825 = vpop.f32.mrf.mxu0
        %2826 = vmatprep.mubr.f32.mxu0 0.0
        %2827 = vmatmul.mubr.f32.gmra.mxu0 %v1057
        %v2828 = vpop.f32.mrf.mxu0
        %v2829 = vadd.f32 0.0, %v2828
        %v2830 = vpop.f32.mrf.mxu0
        %2831 = vmatprep.mubr.f32.mxu0 0.0
        %2832 = vmatmul.mubr.f32.gmra.mxu0 %v1059
        %v2833 = vpop.f32.mrf.mxu0
        %v2834 = vadd.f32 0.0, %v2833
        %v2835 = vpop.f32.mrf.mxu0
        %2836 = vmatprep.mubr.f32.mxu0 0.0
        %2837 = vmatmul.mubr.f32.gmra.mxu0 %v1061
        %v2838 = vpop.f32.mrf.mxu0
        %v2839 = vadd.f32 0.0, %v2838
        %v2840 = vpop.f32.mrf.mxu0
        %2841 = vmatprep.mubr.f32.mxu0 0.0
        %2842 = vmatmul.mubr.f32.gmra.mxu0 %v1063
        %v2843 = vpop.f32.mrf.mxu0
        %v2844 = vadd.f32 0.0, %v2843
        %v2845 = vpop.f32.mrf.mxu0
        %2846 = vmatprep.mubr.f32.mxu0 0.0
        %2847 = vmatmul.mubr.f32.gmra.mxu0 %v1065
        %v2848 = vpop.f32.mrf.mxu0
        %v2849 = vadd.f32 0.0, %v2848
        %v2850 = vpop.f32.mrf.mxu0
        %2851 = vmatprep.mubr.f32.mxu0 0.0
        %2852 = vmatmul.mubr.f32.gmra.mxu0 %v1067
        %v2853 = vpop.f32.mrf.mxu0
        %v2854 = vadd.f32 0.0, %v2853
        %v2855 = vpop.f32.mrf.mxu0
        %2856 = vmatprep.mubr.f32.mxu0 0.0
        %2857 = vmatmul.mubr.f32.gmra.mxu0 %v1069
        %v2858 = vpop.f32.mrf.mxu0
        %v2859 = vadd.f32 0.0, %v2858
        %v2860 = vpop.f32.mrf.mxu0
        %2861 = vmatprep.mubr.f32.mxu0 0.0
        %2862 = vmatmul.mubr.f32.gmra.mxu0 %v1071
        %v2863 = vpop.f32.mrf.mxu0
        %v2864 = vadd.f32 0.0, %v2863
        %v2865 = vpop.f32.mrf.mxu0
        %2866 = vmatprep.mubr.f32.mxu0 0.0
        %2867 = vmatmul.mubr.f32.gmra.mxu0 %v1073
        %v2868 = vpop.f32.mrf.mxu0
        %v2869 = vadd.f32 0.0, %v2868
        %v2870 = vpop.f32.mrf.mxu0
        %2871 = vmatprep.mubr.f32.mxu0 0.0
        %2872 = vmatmul.mubr.f32.gmra.mxu0 %v1075
        %v2873 = vpop.f32.mrf.mxu0
        %v2874 = vadd.f32 0.0, %v2873
        %v2875 = vpop.f32.mrf.mxu0
        %2876 = vmatprep.mubr.f32.mxu0 0.0
        %2877 = vmatmul.mubr.f32.gmra.mxu0 %v1077
        %v2878 = vpop.f32.mrf.mxu0
        %v2879 = vadd.f32 0.0, %v2878
        %v2880 = vpop.f32.mrf.mxu0
        %2881 = vmatprep.mubr.f32.mxu0 0.0
        %2882 = vmatmul.mubr.f32.gmra.mxu0 %v1079
        %v2883 = vpop.f32.mrf.mxu0
        %v2884 = vadd.f32 0.0, %v2883
        %v2885 = vpop.f32.mrf.mxu0
        %2886 = vmatprep.mubr.f32.mxu0 0.0
        %2887 = vmatmul.mubr.f32.gmra.mxu0 %v1081
        %v2888 = vpop.f32.mrf.mxu0
        %v2889 = vadd.f32 0.0, %v2888
        %v2890 = vpop.f32.mrf.mxu0
        %2891 = vmatprep.mubr.f32.mxu0 0.0
        %2892 = vmatmul.mubr.f32.gmra.mxu0 %v1083
        %v2893 = vpop.f32.mrf.mxu0
        %v2894 = vadd.f32 0.0, %v2893
        %v2895 = vpop.f32.mrf.mxu0
        %2896 = vmatprep.mubr.f32.mxu0 0.0
        %2897 = vmatmul.mubr.f32.gmra.mxu0 %v1085
        %v2898 = vpop.f32.mrf.mxu0
        %v2899 = vadd.f32 0.0, %v2898
        %v2900 = vpop.f32.mrf.mxu0
        %2901 = vmatprep.mubr.f32.mxu0 0.0
        %2902 = vmatmul.mubr.f32.gmra.mxu0 %v1087
        %v2903 = vpop.f32.mrf.mxu0
        %v2904 = vadd.f32 0.0, %v2903
        %v2905 = vpop.f32.mrf.mxu0
        %2906 = vmatprep.mubr.f32.mxu0 0.0
        %2907 = vmatmul.mubr.f32.gmra.mxu0 %v1089
        %v2908 = vpop.f32.mrf.mxu0
        %v2909 = vadd.f32 0.0, %v2908
        %v2910 = vpop.f32.mrf.mxu0
        %2911 = vmatprep.mubr.f32.mxu0 0.0
        %2912 = vmatmul.mubr.f32.gmra.mxu0 %v1091
        %v2913 = vpop.f32.mrf.mxu0
        %v2914 = vadd.f32 0.0, %v2913
        %v2915 = vpop.f32.mrf.mxu0
        %2916 = vmatprep.mubr.f32.mxu0 0.0
        %2917 = vmatmul.mubr.f32.gmra.mxu0 %v1093
        %v2918 = vpop.f32.mrf.mxu0
        %v2919 = vadd.f32 0.0, %v2918
        %v2920 = vpop.f32.mrf.mxu0
        %2921 = vmatprep.mubr.f32.mxu0 0.0
        %2922 = vmatmul.mubr.f32.gmra.mxu0 %v1095
        %v2923 = vpop.f32.mrf.mxu0
        %v2924 = vadd.f32 0.0, %v2923
        %v2925 = vpop.f32.mrf.mxu0
        %2926 = vmatprep.mubr.f32.mxu0 0.0
        %2927 = vmatmul.mubr.f32.gmra.mxu0 %v1904
        %v2928 = vpop.f32.mrf.mxu0
        %v2929 = vadd.f32 0.0, %v2928
        %v2930 = vpop.f32.mrf.mxu0
        %2931 = vmatprep.mubr.f32.mxu0 0.0
        %2932 = vmatmul.mubr.f32.gmra.mxu0 %v1906
        %v2933 = vpop.f32.mrf.mxu0
        %v2934 = vadd.f32 0.0, %v2933
        %v2935 = vpop.f32.mrf.mxu0
        %2936 = vmatprep.mubr.f32.mxu0 0.0
        %2937 = vmatmul.mubr.f32.gmra.mxu0 %v2715
        %v2938 = vpop.f32.mrf.mxu0
        %v2939 = vadd.f32 0.0, %v2938
        %v2940 = vpop.f32.mrf.mxu0
        %2941 = vmatprep.mubr.f32.mxu0 0.0
        %2942 = vmatmul.mubr.f32.gmra.mxu0 %v2717
        %v2943 = vpop.f32.mrf.mxu0
        %v2944 = vadd.f32 0.0, %v2943
        %v2945 = vpop.f32.mrf.mxu0
        %2946 = vdwg.mxu0
        %v2947 = vadd.f32 %v2676, %v2789
        %v2948 = vadd.f32 %v2677, %v2794
        %v2949 = vadd.f32 %v2678, %v2799
        %v2950 = vadd.f32 %v2679, %v2804
        %v2951 = vadd.f32 %v2680, %v2809
        %v2952 = vadd.f32 %v2681, %v2814
        %v2953 = vadd.f32 %v2682, %v2819
        %v2954 = vadd.f32 %v2683, %v2824
        %v2955 = vadd.f32 %v2684, %v2829
        %v2956 = vadd.f32 %v2685, %v2834
        %v2957 = vadd.f32 %v2686, %v2839
        %v2958 = vadd.f32 %v2687, %v2844
        %v2959 = vadd.f32 %v2688, %v2849
        %v2960 = vadd.f32 %v2689, %v2854
        %v2961 = vadd.f32 %v2690, %v2859
        %v2962 = vadd.f32 %v2691, %v2864
        %v2963 = vadd.f32 %v2692, %v2869
        %v2964 = vadd.f32 %v2693, %v2874
        %v2965 = vadd.f32 %v2694, %v2879
        %v2966 = vadd.f32 %v2695, %v2884
        %v2967 = vadd.f32 %v2696, %v2889
        %v2968 = vadd.f32 %v2697, %v2894
        %v2969 = vadd.f32 %v2698, %v2899
        %v2970 = vadd.f32 %v2699, %v2904
        %v2971 = vadd.f32 %v2700, %v2909
        %v2972 = vadd.f32 %v2701, %v2914
        %v2973 = vadd.f32 %v2702, %v2919
        %v2974 = vadd.f32 %v2703, %v2924
        %v2975 = vadd.f32 %v2704, %v2929
        %v2976 = vadd.f32 %v2705, %v2934
        %v2977 = vadd.f32 %v2706, %v2939
        %v2978 = vadd.f32 %v2707, %v2944
        %v2979 = vadd.f32 %v2947, %v2948
        %v2980 = vadd.f32 %v2979, %v2949
        %v2981 = vadd.f32 %v2980, %v2950
        %v2982 = vadd.f32 %v2981, %v2951
        %v2983 = vadd.f32 %v2982, %v2952
        %v2984 = vadd.f32 %v2983, %v2953
        %v2985 = vadd.f32 %v2984, %v2954
        %v2986 = vadd.f32 %v2985, %v2955
        %v2987 = vadd.f32 %v2986, %v2956
        %v2988 = vadd.f32 %v2987, %v2957
        %v2989 = vadd.f32 %v2988, %v2958
        %v2990 = vadd.f32 %v2989, %v2959
        %v2991 = vadd.f32 %v2990, %v2960
        %v2992 = vadd.f32 %v2991, %v2961
        %v2993 = vadd.f32 %v2992, %v2962
        %v2994 = vadd.f32 %v2993, %v2963
        %v2995 = vadd.f32 %v2994, %v2964
        %v2996 = vadd.f32 %v2995, %v2965
        %v2997 = vadd.f32 %v2996, %v2966
        %v2998 = vadd.f32 %v2997, %v2967
        %v2999 = vadd.f32 %v2998, %v2968
        %v3000 = vadd.f32 %v2999, %v2969
        %v3001 = vadd.f32 %v3000, %v2970
        %v3002 = vadd.f32 %v3001, %v2971
        %v3003 = vadd.f32 %v3002, %v2972
        %v3004 = vadd.f32 %v3003, %v2973
        %v3005 = vadd.f32 %v3004, %v2974
        %v3006 = vadd.f32 %v3005, %v2975
        %v3007 = vadd.f32 %v3006, %v2976
        %v3008 = vadd.f32 %v3007, %v2977
        %v3009 = vadd.f32 %v3008, %v2978
        %v3010 = vrot.slane %v3009, 4
        %v3011 = vadd.f32 %v3009, %v3010
        %v3012 = vrot.slane %v3011, 2
        %v3013 = vadd.f32 %v3011, %v3012
        %v3014 = vrot.slane %v3013, 1
        %v3015 = vadd.f32 %v3013, %v3014
        %v3016 = vmul.f32 %v3015, 0.00390625
        %v3017 = vsub.f32 %v2947, %v3016
        %v3018 = vsub.f32 %v2948, %v3016
        %v3019 = vsub.f32 %v2949, %v3016
        %v3020 = vsub.f32 %v2950, %v3016
        %v3021 = vsub.f32 %v2951, %v3016
        %v3022 = vsub.f32 %v2952, %v3016
        %v3023 = vsub.f32 %v2953, %v3016
        %v3024 = vsub.f32 %v2954, %v3016
        %v3025 = vsub.f32 %v2955, %v3016
        %v3026 = vsub.f32 %v2956, %v3016
        %v3027 = vsub.f32 %v2957, %v3016
        %v3028 = vsub.f32 %v2958, %v3016
        %v3029 = vsub.f32 %v2959, %v3016
        %v3030 = vsub.f32 %v2960, %v3016
        %v3031 = vsub.f32 %v2961, %v3016
        %v3032 = vsub.f32 %v2962, %v3016
        %v3033 = vsub.f32 %v2963, %v3016
        %v3034 = vsub.f32 %v2964, %v3016
        %v3035 = vsub.f32 %v2965, %v3016
        %v3036 = vsub.f32 %v2966, %v3016
        %v3037 = vsub.f32 %v2967, %v3016
        %v3038 = vsub.f32 %v2968, %v3016
        %v3039 = vsub.f32 %v2969, %v3016
        %v3040 = vsub.f32 %v2970, %v3016
        %v3041 = vsub.f32 %v2971, %v3016
        %v3042 = vsub.f32 %v2972, %v3016
        %v3043 = vsub.f32 %v2973, %v3016
        %v3044 = vsub.f32 %v2974, %v3016
        %v3045 = vsub.f32 %v2975, %v3016
        %v3046 = vsub.f32 %v2976, %v3016
        %v3047 = vsub.f32 %v2977, %v3016
        %v3048 = vsub.f32 %v2978, %v3016
        %3049 = vst [vmem:[%s166] sm:$0x1] %v3016
        %v3050 = vmul.f32 %v3017, %v3017
        %v3051 = vmul.f32 %v3018, %v3018
        %v3052 = vmul.f32 %v3019, %v3019
        %v3053 = vmul.f32 %v3020, %v3020
        %v3054 = vmul.f32 %v3021, %v3021
        %v3055 = vmul.f32 %v3022, %v3022
        %v3056 = vmul.f32 %v3023, %v3023
        %v3057 = vmul.f32 %v3024, %v3024
        %v3058 = vmul.f32 %v3025, %v3025
        %v3059 = vmul.f32 %v3026, %v3026
        %v3060 = vmul.f32 %v3027, %v3027
        %v3061 = vmul.f32 %v3028, %v3028
        %v3062 = vmul.f32 %v3029, %v3029
        %v3063 = vmul.f32 %v3030, %v3030
        %v3064 = vmul.f32 %v3031, %v3031
        %v3065 = vmul.f32 %v3032, %v3032
        %v3066 = vmul.f32 %v3033, %v3033
        %v3067 = vmul.f32 %v3034, %v3034
        %v3068 = vmul.f32 %v3035, %v3035
        %v3069 = vmul.f32 %v3036, %v3036
        %v3070 = vmul.f32 %v3037, %v3037
        %v3071 = vmul.f32 %v3038, %v3038
        %v3072 = vmul.f32 %v3039, %v3039
        %v3073 = vmul.f32 %v3040, %v3040
        %v3074 = vmul.f32 %v3041, %v3041
        %v3075 = vmul.f32 %v3042, %v3042
        %v3076 = vmul.f32 %v3043, %v3043
        %v3077 = vmul.f32 %v3044, %v3044
        %v3078 = vmul.f32 %v3045, %v3045
        %v3079 = vmul.f32 %v3046, %v3046
        %v3080 = vmul.f32 %v3047, %v3047
        %v3081 = vmul.f32 %v3048, %v3048
        %v3082 = vadd.f32 %v3050, %v3051
        %v3083 = vadd.f32 %v3082, %v3052
        %v3084 = vadd.f32 %v3083, %v3053
        %v3085 = vadd.f32 %v3084, %v3054
        %v3086 = vadd.f32 %v3085, %v3055
        %v3087 = vadd.f32 %v3086, %v3056
        %v3088 = vadd.f32 %v3087, %v3057
        %v3089 = vadd.f32 %v3088, %v3058
        %v3090 = vadd.f32 %v3089, %v3059
        %v3091 = vadd.f32 %v3090, %v3060
        %v3092 = vadd.f32 %v3091, %v3061
        %v3093 = vadd.f32 %v3092, %v3062
        %v3094 = vadd.f32 %v3093, %v3063
        %v3095 = vadd.f32 %v3094, %v3064
        %v3096 = vadd.f32 %v3095, %v3065
        %v3097 = vadd.f32 %v3096, %v3066
        %v3098 = vadd.f32 %v3097, %v3067
        %v3099 = vadd.f32 %v3098, %v3068
        %v3100 = vadd.f32 %v3099, %v3069
        %v3101 = vadd.f32 %v3100, %v3070
        %v3102 = vadd.f32 %v3101, %v3071
        %v3103 = vadd.f32 %v3102, %v3072
        %v3104 = vadd.f32 %v3103, %v3073
        %v3105 = vadd.f32 %v3104, %v3074
        %v3106 = vadd.f32 %v3105, %v3075
        %v3107 = vadd.f32 %v3106, %v3076
        %v3108 = vadd.f32 %v3107, %v3077
        %v3109 = vadd.f32 %v3108, %v3078
        %v3110 = vadd.f32 %v3109, %v3079
        %v3111 = vadd.f32 %v3110, %v3080
        %v3112 = vadd.f32 %v3111, %v3081
        %v3113 = vrot.slane %v3112, 4
        %v3114 = vadd.f32 %v3112, %v3113
        %v3115 = vrot.slane %v3114, 2
        %v3116 = vadd.f32 %v3114, %v3115
        %v3117 = vrot.slane %v3116, 1
        %v3118 = vadd.f32 %v3116, %v3117
        %3119 = vst [vmem:[%s172] sm:$0x1] %v3118
        %s3120 = sand.u32 %s76, 1
        %s3121 = scalar_lea.sflag [#allocation3], %s3120
        %s3122 = sand.u32 %s76, 1
        %s3123 = scalar_lea.vmem [#allocation2], %s3122
        %s3124 = sand.u32 %s102, 1
        %s3125 = scalar_lea.sflag [#allocation5], %s3124
        %s3126 = sand.u32 %s102, 1
        %s3127 = scalar_lea.vmem [#allocation4], %s3126
        // Predicated region
        $region29: #{tpu_custom_call.1} parent=27 // pred_check
          %p3128 = pneg %p86
        $region30: #{tpu_custom_call.1} parent=27 // pred_check_branch
          %3130 = sbr.rel (%p3128) target = $region32
        $region31: #{tpu_custom_call.1} parent=27 // pred_region
          %s3132 = ssub.s32 16, 16
          %3133 = vsyncadd %s3121, %s3132
          %s3134 = smul.addr %s21, 16
          %s3135 = scalar_lea.hbm %s2, %s3134
          %s3137 = sshll.u32 %s3123, 4
          %s3138 = int_to_ptr.vmem [resolvable:$true] %s3137
          %3140 = dma.vmem_to_hbm [thread:$0]  %s3138, 16, %s3135, %s3121
        $region32: #{tpu_custom_call.1} parent=27 // pred_fallthru
          _
        // Predicated region
        $region33: #{tpu_custom_call.1} parent=27 // pred_check
          %p3141 = pneg %p112
        $region34: #{tpu_custom_call.1} parent=27 // pred_check_branch
          %3143 = sbr.rel (%p3141) target = $region36
        $region35: #{tpu_custom_call.1} parent=27 // pred_region
          %s3145 = ssub.s32 16, 16
          %3146 = vsyncadd %s3125, %s3145
          %s3147 = smul.addr %s21, 16
          %s3148 = scalar_lea.hbm %s3, %s3147
          %s3150 = sshll.u32 %s3127, 4
          %s3151 = int_to_ptr.vmem [resolvable:$true] %s3150
          %3153 = dma.vmem_to_hbm [thread:$0]  %s3151, 16, %s3148, %s3125
        $region36: #{tpu_custom_call.1} parent=27 // pred_fallthru
          _
      $region28: #{tpu_custom_call.1} parent=5 // pred_fallthru
        _
      %p3154 = scmp.le.s32.totalorder 2, %s16
      // Predicated region
      $region37: #{tpu_custom_call.1} parent=5 // pred_check
        %p3155 = pneg %p3154
      $region38: #{tpu_custom_call.1} parent=5 // pred_check_branch
        %3157 = sbr.rel (%p3155) target = $region40
      $region39: #{tpu_custom_call.1} parent=5 // pred_region
        %s3158 = ssub.s32 %s16, 2
        // Predicated region
        $region41: #{tpu_custom_call.1} parent=39 // pred_check
          %p3159 = pneg %p92
        $region42: #{tpu_custom_call.1} parent=39 // pred_check_branch
          %3161 = sbr.rel (%p3159) target = $region44
        $region43: #{tpu_custom_call.1} parent=39 // pred_region
          %s3162 = sand.u32 %s77, 1
          %s3163 = scalar_lea.sflag [#allocation3], %s3162
          %s3164 = sand.u32 %s77, 1
          %s3165 = scalar_lea.vmem [#allocation2], %s3164
          %3166 = dma.done %s3163, 16
        $region44: #{tpu_custom_call.1} parent=39 // pred_fallthru
          _
        // Predicated region
        $region45: #{tpu_custom_call.1} parent=39 // pred_check
          %p3167 = pneg %p118
        $region46: #{tpu_custom_call.1} parent=39 // pred_check_branch
          %3169 = sbr.rel (%p3167) target = $region48
        $region47: #{tpu_custom_call.1} parent=39 // pred_region
          %s3170 = sand.u32 %s103, 1
          %s3171 = scalar_lea.sflag [#allocation5], %s3170
          %s3172 = sand.u32 %s103, 1
          %s3173 = scalar_lea.vmem [#allocation4], %s3172
          %3174 = dma.done %s3171, 16
        $region48: #{tpu_custom_call.1} parent=39 // pred_fallthru
          _
      $region40: #{tpu_custom_call.1} parent=5 // pred_fallthru
        _
    $region6: #{tpu_custom_call.1} parent=1 // loop_footer
      %s20 = sadd.s32 1, %s16
    $region7: #{tpu_custom_call.1} parent=1 // loop_footer_branch
      %15 = sbr.rel target = $region3
    $region8: #{tpu_custom_call.1} parent=1 // loop_exit
      _
    %3175 = vsyncpa [#allocation3], 1
    %s3176 = scalar_lea.sflag [#allocation3], 1
    %3177 = vsyncpa %s3176, 1
    %3178 = vsyncpa [#allocation5], 1
    %s3179 = scalar_lea.sflag [#allocation5], 1
    %3180 = vsyncpa %s3179, 1

</llo_original>
